<compile_context>
chip_gen: v7x
topology: tpu7x:2x2x1
jax: 0.10.0
libtpu: 0.0.40
codegen_flags: <defaults>
</compile_context>

<pallas_src>
import functools

import numpy as np
import jax
import jax.numpy as jnp
from jax import lax
from jax.experimental import pallas as pl
from jax.experimental.pallas import tpu as pltpu

_SQRT1_2 = 0.7071067811865476        # 1/sqrt(2)
_SQRT_2_OVER_PI = 0.7978845608028654  # sqrt(2/pi)


def _gelu(x, approximate):
    if approximate:
        # tanh form -> EUP (its own VLIW slot); <~5e-4 abs from exact erf.
        return 0.5 * x * (1.0 + jnp.tanh(_SQRT_2_OVER_PI *
                                         (x + 0.044715 * x * x * x)))
    # nn.GELU() default: exact erf formulation.
    return 0.5 * x * (1.0 + lax.erf(x * _SQRT1_2))


def _conv3x3_fused(slab, w_ref):
    """3x3 SAME conv as ONE MXU matmul.

    slab:  (Bb, H, W*C) f32 lane-dense activations (lane index = w*C + c).
    w_ref: (3*W*C, W*C) fused banded weights: the 3 dy taps are stacked along K
           and the dx taps + W-direction zero padding are folded into the band.
    Returns (Bb, H, W*C) f32.
    """
    Bb, H, WC = slab.shape
    mm_dtype = w_ref.dtype
    zrow = jnp.zeros((Bb, 1, WC), mm_dtype)
    # Cast once (H+2 rows); slices / concat below stay in the narrow dtype.
    xp = jnp.concatenate([zrow, slab.astype(mm_dtype), zrow], axis=1)  # (Bb,H+2,WC)
    # Fold batch into M and the 3 dy taps into K: a single dense dot.
    lhs = jnp.concatenate([xp[:, 0:H], xp[:, 1:H + 1], xp[:, 2:H + 2]],
                          axis=2)                                      # (Bb,H,3*WC)
    prec = lax.Precision.HIGHEST if w_ref.dtype == jnp.float32 else None
    out = jnp.dot(lhs.reshape(Bb * H, 3 * WC), w_ref[...],
                  preferred_element_type=jnp.float32, precision=prec)  # (Bb*H,WC)
    return out.reshape(Bb, H, WC)


def _basic_block_kernel(x_ref, wf1_ref, s1_ref, b1_ref, wf2_ref, s2_ref, b2_ref,
                        out_ref, *, gelu_approximate):
    x = x_ref[...].astype(jnp.float32)          # (Bb, H, WC); residual stays f32

    # --- conv1 + folded BN1 + GELU ---
    h = _conv3x3_fused(x, wf1_ref)
    h = h * s1_ref[...] + b1_ref[...]
    h = _gelu(h, gelu_approximate)

    # --- conv2 + folded BN2 ---
    h2 = _conv3x3_fused(h, wf2_ref)
    h2 = h2 * s2_ref[...] + b2_ref[...]

    # --- residual add (from the resident f32 slab) + GELU ---
    out_ref[...] = _gelu(h2 + x, gelu_approximate).astype(out_ref.dtype)


def _fold_bn(bn, w_dim, eps):
    """Fold BatchNorm (eval mode) into per-lane scale/shift over W*C lanes."""
    gamma, beta, rmean, rvar = bn
    scale = gamma / jnp.sqrt(rvar + eps)
    shift = beta - rmean * scale
    # lane index = w*C + c  ->  tile the per-channel vector W times.
    return (jnp.tile(scale, w_dim).reshape(1, -1).astype(jnp.float32),
            jnp.tile(shift, w_dim).reshape(1, -1).astype(jnp.float32))


def _fused_conv_weights(w_oihw, w_dim, dtype):
    """(Cout, Cin, 3, 3) OIHW -> (3*W*C, W*C) fused banded weights.

    Wfused[dy*W*C + w'*C + ci, w*C + co] = w[co, ci, dy, w'-w+1]
        if 0 <= w'-w+1 <= 2 else 0,
    which also implements the zero padding in the W direction.
    """
    c = w_oihw.shape[1]
    taps = jnp.transpose(w_oihw, (2, 3, 1, 0)).astype(jnp.float32)  # (dy,dx,ci,co)
    wp = jnp.arange(w_dim)[:, None]        # input column w'  (band rows)
    w = jnp.arange(w_dim)[None, :]         # output column w  (band cols)
    dx = wp - w + 1                        # FIX: dx = w' - w + 1 (was flipped)
    valid = (dx >= 0) & (dx <= 2)
    dx_c = jnp.clip(dx, 0, 2)
    blocks = taps[:, dx_c]                                 # (3, W, W, ci, co)
    blocks = blocks * valid[None, :, :, None, None].astype(jnp.float32)
    wb = jnp.transpose(blocks, (0, 1, 3, 2, 4)).reshape(3, w_dim * c, w_dim * c)
    return wb.reshape(3 * w_dim * c, w_dim * c).astype(dtype)


def basic_block_pallas_slab(x_slab, wf1, s1, b1, wf2, s2, b2, *,
                            gelu_approximate=True, out_dtype=jnp.float32):
    """Core entry: (B, H, W*C) lane-dense slab -> (B, H, W*C).

    Chained blocks should call this directly (optionally with
    out_dtype=jnp.bfloat16) to keep the lane-dense layout and halve the
    inter-block HBM traffic.
    """
    B, H, WC = x_slab.shape
    K3 = 3 * WC

    # Batch block: fold several images into the matmul M dimension (target
    # M = Bb*H >= ~128-256), keeping Bb a divisor of B.
    cap = max(1, 256 // H)
    bb = 1
    for d in range(1, B + 1):
        if B % d == 0 and d <= cap:
            bb = d
    grid = B // bb
    # Megacore sharding only when each core still gets a >=2-step pipeline.
    dim_sem = ("parallel",) if grid >= 4 else ("arbitrary",)

    kernel = pl.pallas_call(
        functools.partial(_basic_block_kernel, gelu_approximate=gelu_approximate),
        out_shape=jax.ShapeDtypeStruct((B, H, WC), out_dtype),
        grid=(grid,),
        in_specs=[
            pl.BlockSpec((bb, H, WC), lambda g: (g, 0, 0)),   # activations
            pl.BlockSpec((K3, WC), lambda g: (0, 0)),         # conv1 fused weights
            pl.BlockSpec((1, WC), lambda g: (0, 0)),          # bn1 scale
            pl.BlockSpec((1, WC), lambda g: (0, 0)),          # bn1 shift
            pl.BlockSpec((K3, WC), lambda g: (0, 0)),         # conv2 fused weights
            pl.BlockSpec((1, WC), lambda g: (0, 0)),          # bn2 scale
            pl.BlockSpec((1, WC), lambda g: (0, 0)),          # bn2 shift
        ],
        out_specs=pl.BlockSpec((bb, H, WC), lambda g: (g, 0, 0)),
        compiler_params=pltpu.CompilerParams(
            dimension_semantics=dim_sem,
            vmem_limit_bytes=32 * 1024 * 1024,   # raise v5e's 16 MiB default
        ),
    )
    return kernel(x_slab, wf1, s1, b1, wf2, s2, b2)


def basic_block_pallas(x_nchw, w1_oihw, bn1, w2_oihw, bn2, eps=1e-5,
                       matmul_dtype=jnp.bfloat16, gelu_approximate=True):
    """PyTorch-style NCHW in/out wrapper (layout change only at the boundary).

    Defaults follow the perf review: bf16 MXU operands + tanh GELU.  Pass
    matmul_dtype=jnp.float32, gelu_approximate=False for bit-faithful
    (eval-mode) semantics vs the exact-erf reference.
    """
    B, C, H, W = x_nchw.shape
    # NCHW -> lane-dense (B, H, W*C); lane index = w*C + c.
    x_slab = jnp.transpose(x_nchw, (0, 2, 3, 1)).reshape(B, H, W * C)
    x_slab = x_slab.astype(jnp.float32)

    wf1 = _fused_conv_weights(w1_oihw, W, matmul_dtype)
    wf2 = _fused_conv_weights(w2_oihw, W, matmul_dtype)
    s1, b1 = _fold_bn(bn1, W, eps)
    s2, b2 = _fold_bn(bn2, W, eps)

    out_slab = basic_block_pallas_slab(x_slab, wf1, s1, b1, wf2, s2, b2,
                                       gelu_approximate=gelu_approximate,
                                       out_dtype=jnp.float32)
    return jnp.transpose(out_slab.reshape(B, H, W, C), (0, 3, 1, 2))


# ---------------- pure-JAX reference (for correctness check) ----------------
def _conv3x3_ref(x_nhwc, w_oihw):
    return lax.conv_general_dilated(
        x_nhwc, jnp.transpose(w_oihw, (2, 3, 1, 0)),
        window_strides=(1, 1), padding="SAME",
        dimension_numbers=("NHWC", "HWIO", "NHWC"),
        precision=lax.Precision.HIGHEST)


def basic_block_ref(x_nchw, w1, bn1, w2, bn2, eps=1e-5):
    x = jnp.transpose(x_nchw, (0, 2, 3, 1))

    def bn(h, p):
        gamma, beta, rmean, rvar = p
        scale = gamma / jnp.sqrt(rvar + eps)
        return h * scale + (beta - rmean * scale)

    h = _conv3x3_ref(x, w1)
    h = bn(h, bn1)
    h = jax.nn.gelu(h, approximate=False)
    h = _conv3x3_ref(h, w2)
    h = bn(h, bn2)
    h = jax.nn.gelu(h + x, approximate=False)
    return jnp.transpose(h, (0, 3, 1, 2))


if __name__ == "__main__":
    # inplanes == planes == 8 (downsample=None path); W*C = 16*8 = 128 lanes.
    B, C, H, W = 2, 8, 16, 16
    key = jax.random.PRNGKey(0)
    k = jax.random.split(key, 9)

    x = jax.random.normal(k[0], (B, C, H, W), jnp.float32)

    fan_in = C * 3 * 3
    w1 = jax.random.normal(k[1], (C, C, 3, 3), jnp.float32) / np.sqrt(fan_in)
    w2 = jax.random.normal(k[2], (C, C, 3, 3), jnp.float32) / np.sqrt(fan_in)

    bn1 = (1.0 + 0.1 * jax.random.normal(k[3], (C,), jnp.float32),   # gamma
           0.1 * jax.random.normal(k[4], (C,), jnp.float32),         # beta
           0.1 * jax.random.normal(k[5], (C,), jnp.float32),         # running_mean
           1.0 + 0.1 * jax.random.uniform(k[6], (C,), jnp.float32))  # running_var
    bn2 = (1.0 + 0.1 * jax.random.normal(k[7], (C,), jnp.float32),
           0.1 * jax.random.normal(k[8], (C,), jnp.float32),
           jnp.zeros((C,), jnp.float32),
           jnp.ones((C,), jnp.float32))

    ref = jax.block_until_ready(basic_block_ref(x, w1, bn1, w2, bn2))

    # 1) Exact path (f32 MXU operands, exact-erf GELU): tight check of the
    #    banded-conv / layout math against the lax.conv reference.
    out_exact = jax.block_until_ready(
        basic_block_pallas(x, w1, bn1, w2, bn2,
                           matmul_dtype=jnp.float32, gelu_approximate=False))
    np.testing.assert_allclose(np.asarray(out_exact), np.asarray(ref),
                               rtol=1e-4, atol=1e-4)

    # 2) Default perf path (bf16 MXU operands + tanh GELU): loosened tolerance
    #    per the review (bf16 conv operands + GELU approximation).
    out_fast = jax.block_until_ready(basic_block_pallas(x, w1, bn1, w2, bn2))
    np.testing.assert_allclose(np.asarray(out_fast), np.asarray(ref),
                               rtol=5e-2, atol=6e-2)

    print("KERNEL_OK")
</pallas_src>

<mosaic_0001>
module attributes {stable_mosaic.version = 11 : i64} {
  func.func @_basic_block_kernel(%arg0: i32, %arg1: memref<2x16x128xf32, #tpu.memory_space<vmem>>, %arg2: memref<384x128xf32, #tpu.memory_space<vmem>>, %arg3: memref<1x128xf32, #tpu.memory_space<vmem>>, %arg4: memref<1x128xf32, #tpu.memory_space<vmem>>, %arg5: memref<384x128xf32, #tpu.memory_space<vmem>>, %arg6: memref<1x128xf32, #tpu.memory_space<vmem>>, %arg7: memref<1x128xf32, #tpu.memory_space<vmem>>, %arg8: memref<2x16x128xf32, #tpu.memory_space<vmem>>) attributes {dimension_semantics = [#tpu.dimension_semantics<arbitrary>], iteration_bounds = array<i64: 1>, scalar_prefetch = 0 : i64, scratch_operands = 0 : i64, tpu.core_type = #tpu.core_type<tc>, window_params = [{transform_indices = @transform_0, window_bounds = array<i64: 2, 16, 128>}, {pipeline_mode = #tpu.pipeline_mode<synchronous>, transform_indices = @transform_1, window_bounds = array<i64: 384, 128>}, {pipeline_mode = #tpu.pipeline_mode<synchronous>, transform_indices = @transform_2, window_bounds = array<i64: 1, 128>}, {pipeline_mode = #tpu.pipeline_mode<synchronous>, transform_indices = @transform_3, window_bounds = array<i64: 1, 128>}, {pipeline_mode = #tpu.pipeline_mode<synchronous>, transform_indices = @transform_4, window_bounds = array<i64: 384, 128>}, {pipeline_mode = #tpu.pipeline_mode<synchronous>, transform_indices = @transform_5, window_bounds = array<i64: 1, 128>}, {pipeline_mode = #tpu.pipeline_mode<synchronous>, transform_indices = @transform_6, window_bounds = array<i64: 1, 128>}, {transform_indices = @transform_7, window_bounds = array<i64: 2, 16, 128>}]} {
    %c0 = arith.constant 0 : index
    %c0_0 = arith.constant 0 : index
    %c0_1 = arith.constant 0 : index
    %0 = vector.load %arg1[%c0, %c0_0, %c0_1] : memref<2x16x128xf32, #tpu.memory_space<vmem>>, vector<2x16x128xf32>
    %cst = arith.constant 0.000000e+00 : f32
    %1 = vector.broadcast %cst : f32 to vector<2x1x128xf32>
    %2 = tpu.concatenate %1, %0, %1 in 1 : vector<2x1x128xf32>, vector<2x16x128xf32>, vector<2x1x128xf32> -> vector<2x18x128xf32>
    %3 = vector.extract_strided_slice %2 {offsets = [0, 0, 0], sizes = [2, 16, 128], strides = [1, 1, 1]} : vector<2x18x128xf32> to vector<2x16x128xf32>
    %4 = vector.extract_strided_slice %2 {offsets = [0, 1, 0], sizes = [2, 16, 128], strides = [1, 1, 1]} : vector<2x18x128xf32> to vector<2x16x128xf32>
    %5 = vector.extract_strided_slice %2 {offsets = [0, 2, 0], sizes = [2, 16, 128], strides = [1, 1, 1]} : vector<2x18x128xf32> to vector<2x16x128xf32>
    %6 = tpu.concatenate %3, %4, %5 in 2 : vector<2x16x128xf32>, vector<2x16x128xf32>, vector<2x16x128xf32> -> vector<2x16x384xf32>
    %7 = vector.shape_cast %6 : vector<2x16x384xf32> to vector<32x384xf32>
    %c0_2 = arith.constant 0 : index
    %c0_3 = arith.constant 0 : index
    %8 = vector.load %arg2[%c0_2, %c0_3] : memref<384x128xf32, #tpu.memory_space<vmem>>, vector<384x128xf32>
    %cst_4 = arith.constant dense<0.000000e+00> : vector<32x128xf32>
    %9 = tpu.matmul %7, %8, %cst_4 {dimension_numbers = #tpu.dot_dimension_numbers<[1], [0], [0], [1], [0, 0, 1, 1], [], []>, precision = #tpu.contract_precision<fp32>} : vector<32x384xf32>, vector<384x128xf32>, vector<32x128xf32> -> vector<32x128xf32>
    %10 = vector.shape_cast %9 : vector<32x128xf32> to vector<2x16x128xf32>
    %c0_5 = arith.constant 0 : index
    %c0_6 = arith.constant 0 : index
    %11 = vector.load %arg3[%c0_5, %c0_6] : memref<1x128xf32, #tpu.memory_space<vmem>>, vector<1x128xf32>
    %12 = vector.shape_cast %11 : vector<1x128xf32> to vector<1x1x128xf32>
    %13 = vector.broadcast %12 : vector<1x1x128xf32> to vector<2x16x128xf32>
    %14 = arith.mulf %10, %13 : vector<2x16x128xf32>
    %c0_7 = arith.constant 0 : index
    %c0_8 = arith.constant 0 : index
    %15 = vector.load %arg4[%c0_7, %c0_8] : memref<1x128xf32, #tpu.memory_space<vmem>>, vector<1x128xf32>
    %16 = vector.shape_cast %15 : vector<1x128xf32> to vector<1x1x128xf32>
    %17 = vector.broadcast %16 : vector<1x1x128xf32> to vector<2x16x128xf32>
    %18 = arith.addf %14, %17 : vector<2x16x128xf32>
    %cst_9 = arith.constant 5.000000e-01 : f32
    %19 = vector.broadcast %cst_9 : f32 to vector<2x16x128xf32>
    %20 = arith.mulf %19, %18 : vector<2x16x128xf32>
    %cst_10 = arith.constant 0.707106769 : f32
    %21 = vector.broadcast %cst_10 : f32 to vector<2x16x128xf32>
    %22 = arith.mulf %18, %21 : vector<2x16x128xf32>
    %23 = math.erf %22 : vector<2x16x128xf32>
    %cst_11 = arith.constant 1.000000e+00 : f32
    %24 = vector.broadcast %cst_11 : f32 to vector<2x16x128xf32>
    %25 = arith.addf %24, %23 : vector<2x16x128xf32>
    %26 = arith.mulf %20, %25 : vector<2x16x128xf32>
    %cst_12 = arith.constant 0.000000e+00 : f32
    %27 = vector.broadcast %cst_12 : f32 to vector<2x1x128xf32>
    %28 = tpu.concatenate %27, %26, %27 in 1 : vector<2x1x128xf32>, vector<2x16x128xf32>, vector<2x1x128xf32> -> vector<2x18x128xf32>
    %29 = vector.extract_strided_slice %28 {offsets = [0, 0, 0], sizes = [2, 16, 128], strides = [1, 1, 1]} : vector<2x18x128xf32> to vector<2x16x128xf32>
    %30 = vector.extract_strided_slice %28 {offsets = [0, 1, 0], sizes = [2, 16, 128], strides = [1, 1, 1]} : vector<2x18x128xf32> to vector<2x16x128xf32>
    %31 = vector.extract_strided_slice %28 {offsets = [0, 2, 0], sizes = [2, 16, 128], strides = [1, 1, 1]} : vector<2x18x128xf32> to vector<2x16x128xf32>
    %32 = tpu.concatenate %29, %30, %31 in 2 : vector<2x16x128xf32>, vector<2x16x128xf32>, vector<2x16x128xf32> -> vector<2x16x384xf32>
    %33 = vector.shape_cast %32 : vector<2x16x384xf32> to vector<32x384xf32>
    %c0_13 = arith.constant 0 : index
    %c0_14 = arith.constant 0 : index
    %34 = vector.load %arg5[%c0_13, %c0_14] : memref<384x128xf32, #tpu.memory_space<vmem>>, vector<384x128xf32>
    %cst_15 = arith.constant dense<0.000000e+00> : vector<32x128xf32>
    %35 = tpu.matmul %33, %34, %cst_15 {dimension_numbers = #tpu.dot_dimension_numbers<[1], [0], [0], [1], [0, 0, 1, 1], [], []>, precision = #tpu.contract_precision<fp32>} : vector<32x384xf32>, vector<384x128xf32>, vector<32x128xf32> -> vector<32x128xf32>
    %36 = vector.shape_cast %35 : vector<32x128xf32> to vector<2x16x128xf32>
    %c0_16 = arith.constant 0 : index
    %c0_17 = arith.constant 0 : index
    %37 = vector.load %arg6[%c0_16, %c0_17] : memref<1x128xf32, #tpu.memory_space<vmem>>, vector<1x128xf32>
    %38 = vector.shape_cast %37 : vector<1x128xf32> to vector<1x1x128xf32>
    %39 = vector.broadcast %38 : vector<1x1x128xf32> to vector<2x16x128xf32>
    %40 = arith.mulf %36, %39 : vector<2x16x128xf32>
    %c0_18 = arith.constant 0 : index
    %c0_19 = arith.constant 0 : index
    %41 = vector.load %arg7[%c0_18, %c0_19] : memref<1x128xf32, #tpu.memory_space<vmem>>, vector<1x128xf32>
    %42 = vector.shape_cast %41 : vector<1x128xf32> to vector<1x1x128xf32>
    %43 = vector.broadcast %42 : vector<1x1x128xf32> to vector<2x16x128xf32>
    %44 = arith.addf %40, %43 : vector<2x16x128xf32>
    %45 = arith.addf %44, %0 : vector<2x16x128xf32>
    %cst_20 = arith.constant 5.000000e-01 : f32
    %46 = vector.broadcast %cst_20 : f32 to vector<2x16x128xf32>
    %47 = arith.mulf %46, %45 : vector<2x16x128xf32>
    %cst_21 = arith.constant 0.707106769 : f32
    %48 = vector.broadcast %cst_21 : f32 to vector<2x16x128xf32>
    %49 = arith.mulf %45, %48 : vector<2x16x128xf32>
    %50 = math.erf %49 : vector<2x16x128xf32>
    %cst_22 = arith.constant 1.000000e+00 : f32
    %51 = vector.broadcast %cst_22 : f32 to vector<2x16x128xf32>
    %52 = arith.addf %51, %50 : vector<2x16x128xf32>
    %53 = arith.mulf %47, %52 : vector<2x16x128xf32>
    %c0_23 = arith.constant 0 : index
    %c0_24 = arith.constant 0 : index
    %c0_25 = arith.constant 0 : index
    %54 = vector.load %arg8[%c0_23, %c0_24, %c0_25] : memref<2x16x128xf32, #tpu.memory_space<vmem>>, vector<2x16x128xf32>
    tpu.vector_store %arg8[%c0_23, %c0_24, %c0_25], %53 {strides = array<i32>} : memref<2x16x128xf32, #tpu.memory_space<vmem>>, vector<2x16x128xf32>,
    return
  }
  func.func @transform_0(%arg0: i32) -> (i32, i32, i32) {
    %c0_i32 = arith.constant 0 : i32
    %c0_i32_0 = arith.constant 0 : i32
    %c0_i32_1 = arith.constant 0 : i32
    return %arg0, %c0_i32, %c0_i32_0 : i32, i32, i32
  }
  func.func @transform_1(%arg0: i32) -> (i32, i32) {
    %c0_i32 = arith.constant 0 : i32
    %c0_i32_0 = arith.constant 0 : i32
    %c0_i32_1 = arith.constant 0 : i32
    return %c0_i32, %c0_i32_0 : i32, i32
  }
  func.func @transform_2(%arg0: i32) -> (i32, i32) {
    %c0_i32 = arith.constant 0 : i32
    %c0_i32_0 = arith.constant 0 : i32
    %c0_i32_1 = arith.constant 0 : i32
    return %c0_i32, %c0_i32_0 : i32, i32
  }
  func.func @transform_3(%arg0: i32) -> (i32, i32) {
    %c0_i32 = arith.constant 0 : i32
    %c0_i32_0 = arith.constant 0 : i32
    %c0_i32_1 = arith.constant 0 : i32
    return %c0_i32, %c0_i32_0 : i32, i32
  }
  func.func @transform_4(%arg0: i32) -> (i32, i32) {
    %c0_i32 = arith.constant 0 : i32
    %c0_i32_0 = arith.constant 0 : i32
    %c0_i32_1 = arith.constant 0 : i32
    return %c0_i32, %c0_i32_0 : i32, i32
  }
  func.func @transform_5(%arg0: i32) -> (i32, i32) {
    %c0_i32 = arith.constant 0 : i32
    %c0_i32_0 = arith.constant 0 : i32
    %c0_i32_1 = arith.constant 0 : i32
    return %c0_i32, %c0_i32_0 : i32, i32
  }
  func.func @transform_6(%arg0: i32) -> (i32, i32) {
    %c0_i32 = arith.constant 0 : i32
    %c0_i32_0 = arith.constant 0 : i32
    %c0_i32_1 = arith.constant 0 : i32
    return %c0_i32, %c0_i32_0 : i32, i32
  }
  func.func @transform_7(%arg0: i32) -> (i32, i32, i32) {
    %c0_i32 = arith.constant 0 : i32
    %c0_i32_0 = arith.constant 0 : i32
    %c0_i32_1 = arith.constant 0 : i32
    return %arg0, %c0_i32, %c0_i32_0 : i32, i32, i32
  }
}

</mosaic_0001>

<llo_original>
// kernel: tpu_custom_call.1
$region0: #{tpu_custom_call.1}
  #allocation0 [shape = 'u32[]', space=smem, size = 0x4, offset = 0x4, fixed_abs, tag = 'smem constant byte address 0x4 - core index']
  #allocation1 [shape = 'u32[144,128]{1,0:T(1,128)}', space=vmem, size = 0x12000, scoped, tag = 'internal scratch']
  %s0 = inlined_call_operand.hbm [shape: f32[2,16,128], index: 0, kind: input, shape index: {}]
  %s1 = inlined_call_operand.hbm [shape: f32[384,128], index: 1, kind: input, shape index: {}]
  %s2 = inlined_call_operand.vmem [shape: f32[1,128], index: 2, kind: input, shape index: {}]
  %s3 = inlined_call_operand.vmem [shape: f32[1,128], index: 3, kind: input, shape index: {}]
  %s4 = inlined_call_operand.hbm [shape: f32[384,128], index: 4, kind: input, shape index: {}]
  %s5 = inlined_call_operand.vmem [shape: f32[1,128], index: 5, kind: input, shape index: {}]
  %s6 = inlined_call_operand.vmem [shape: f32[1,128], index: 6, kind: input, shape index: {}]
  %s7 = inlined_call_operand.hbm [shape: f32[2,16,128], index: 7, kind: output, shape index: {}]
  %s8 = sld [smem:[#allocation0]]
  $region50: #{tpu_custom_call.1} parent=0
    _
  %s10 = ssub.s32 1, %s8
  %s11 = scalar_select 0, %s10, %s8
  $region1: #{tpu_custom_call.1} parent=0
    #allocation2 [shape = 'u8[16384]{0}', space=vmem, size = 0x4000, scoped, tag = 'input window, operand 0, single buffered']
    #allocation3 [shape = 's32[1]{0}', space=sflag, size = 0x4, scoped, tag = 'scoped memory for tpu_custom_call.1']
    #allocation4 [shape = 's32[1]{0}', space=sflag, size = 0x4, scoped, tag = 'scoped memory for tpu_custom_call.1']
    #allocation5 [shape = 'u8[196608]{0}', space=vmem, size = 0x30000, scoped, tag = 'input window, operand 1, single buffered']
    #allocation6 [shape = 's32[1]{0}', space=sflag, size = 0x4, scoped, tag = 'scoped memory for tpu_custom_call.1']
    #allocation7 [shape = 'u8[196608]{0}', space=vmem, size = 0x30000, scoped, tag = 'input window, operand 4, single buffered']
    #allocation8 [shape = 'u8[16384]{0}', space=vmem, size = 0x4000, scoped, tag = 'output window, operand 0, single buffered']
    %12 = vsyncpa [#allocation3], 0
    %13 = vsyncpa [#allocation6], 0
    %14 = vsyncpa [#allocation4], 0
    // Predicated region
    $region2: #{tpu_custom_call.1} parent=1 // pred_check
      _
    $region3: #{tpu_custom_call.1} parent=1 // pred_check_branch
      %16 = sbr.rel (0) target = $region5
    $region4: #{tpu_custom_call.1} parent=1 // pred_region
      %s18 = ssub.s32 512, 512
      %19 = vsyncadd [#allocation3], %s18
      %s20 = sshll.u32 [#allocation2], 4
      %s21 = int_to_ptr.vmem [resolvable:$true] %s20
      %26 = dma.hbm_to_vmem [thread:$0]  %s0, 512, %s21, [#allocation3], 128, 128, 8
    $region5: #{tpu_custom_call.1} parent=1 // pred_fallthru
      _
    // Predicated region
    $region6: #{tpu_custom_call.1} parent=1 // pred_check
      _
    $region7: #{tpu_custom_call.1} parent=1 // pred_check_branch
      %28 = sbr.rel (0) target = $region9
    $region8: #{tpu_custom_call.1} parent=1 // pred_region
      %s30 = ssub.s32 6144, 6144
      %31 = vsyncadd [#allocation6], %s30
      %s32 = sshll.u32 [#allocation5], 4
      %s33 = int_to_ptr.vmem [resolvable:$true] %s32
      %38 = dma.hbm_to_vmem [thread:$0]  %s1, 6144, %s33, [#allocation6], 128, 128, 8
    $region9: #{tpu_custom_call.1} parent=1 // pred_fallthru
      _
    // Predicated region
    $region10: #{tpu_custom_call.1} parent=1 // pred_check
      _
    $region11: #{tpu_custom_call.1} parent=1 // pred_check_branch
      %40 = sbr.rel (0) target = $region13
    $region12: #{tpu_custom_call.1} parent=1 // pred_region
      _
    $region13: #{tpu_custom_call.1} parent=1 // pred_fallthru
      _
    // Predicated region
    $region14: #{tpu_custom_call.1} parent=1 // pred_check
      _
    $region15: #{tpu_custom_call.1} parent=1 // pred_check_branch
      %42 = sbr.rel (0) target = $region17
    $region16: #{tpu_custom_call.1} parent=1 // pred_region
      _
    $region17: #{tpu_custom_call.1} parent=1 // pred_fallthru
      _
    // Predicated region
    $region18: #{tpu_custom_call.1} parent=1 // pred_check
      _
    $region19: #{tpu_custom_call.1} parent=1 // pred_check_branch
      %44 = sbr.rel (0) target = $region21
    $region20: #{tpu_custom_call.1} parent=1 // pred_region
      %s46 = ssub.s32 6144, 6144
      %47 = vsyncadd [#allocation6], %s46
      %s48 = sshll.u32 [#allocation7], 4
      %s49 = int_to_ptr.vmem [resolvable:$true] %s48
      %54 = dma.hbm_to_vmem [thread:$0]  %s4, 6144, %s49, [#allocation6], 128, 128, 8
    $region21: #{tpu_custom_call.1} parent=1 // pred_fallthru
      _
    // Predicated region
    $region22: #{tpu_custom_call.1} parent=1 // pred_check
      _
    $region23: #{tpu_custom_call.1} parent=1 // pred_check_branch
      %56 = sbr.rel (0) target = $region25
    $region24: #{tpu_custom_call.1} parent=1 // pred_region
      _
    $region25: #{tpu_custom_call.1} parent=1 // pred_fallthru
      _
    // Predicated region
    $region26: #{tpu_custom_call.1} parent=1 // pred_check
      _
    $region27: #{tpu_custom_call.1} parent=1 // pred_check_branch
      %58 = sbr.rel (0) target = $region29
    $region28: #{tpu_custom_call.1} parent=1 // pred_region
      _
    $region29: #{tpu_custom_call.1} parent=1 // pred_fallthru
      _
    // Predicated region
    $region30: #{tpu_custom_call.1} parent=1 // pred_check
      _
    $region31: #{tpu_custom_call.1} parent=1 // pred_check_branch
      %60 = sbr.rel (0) target = $region33
    $region32: #{tpu_custom_call.1} parent=1 // pred_region
      %61 = dma.done [#allocation3], 512
    $region33: #{tpu_custom_call.1} parent=1 // pred_fallthru
      _
    // Predicated region
    $region34: #{tpu_custom_call.1} parent=1 // pred_check
      _
    $region35: #{tpu_custom_call.1} parent=1 // pred_check_branch
      %63 = sbr.rel (0) target = $region37
    $region36: #{tpu_custom_call.1} parent=1 // pred_region
      %64 = dma.done [#allocation6], 6144
    $region37: #{tpu_custom_call.1} parent=1 // pred_fallthru
      _
    // Predicated region
    $region38: #{tpu_custom_call.1} parent=1 // pred_check
      _
    $region39: #{tpu_custom_call.1} parent=1 // pred_check_branch
      %66 = sbr.rel (0) target = $region41
    $region40: #{tpu_custom_call.1} parent=1 // pred_region
      %67 = dma.done [#allocation6], 6144
    $region41: #{tpu_custom_call.1} parent=1 // pred_fallthru
      _
    %v68 = vld [vmem:[#allocation2] sm:$0xff]
    %v69 = vld [vmem:[#allocation2 + $0x8] sm:$0xff]
    %v70 = vld [vmem:[#allocation2 + $0x10] sm:$0xff]
    %v71 = vld [vmem:[#allocation2 + $0x18] sm:$0xff]
    %vm76 = vcmask 1040384
    %v77 = vrot.slane %v68, 7
    %v78 = vrot.slane %v69, 7
    %v79 = vsel %vm76, %v77, %v78
    %v80 = vrot.slane %v70, 7
    %v81 = vrot.slane %v71, 7
    %v82 = vsel %vm76, %v80, %v81
    %v89 = vsel %vm76, 0.0, %v77
    %v90 = vsel %vm76, 0.0, %v80
    %v91 = vsel %vm76, %v78, 0.0
    %v92 = vsel %vm76, %v81, 0.0
    %vm97 = vcmask 1046528
    %v98 = vrot.slane %v89, 1
    %v99 = vrot.slane %v79, 1
    %v100 = vsel %vm97, %v98, %v99
    %v101 = vrot.slane %v91, 1
    %v102 = vsel %vm97, %v99, %v101
    %v103 = vrot.slane %v90, 1
    %v104 = vrot.slane %v82, 1
    %v105 = vsel %vm97, %v103, %v104
    %v106 = vrot.slane %v92, 1
    %v107 = vsel %vm97, %v104, %v106
    %vm112 = vcmask 1045504
    %v113 = vrot.slane %v89, 2
    %v114 = vrot.slane %v79, 2
    %v115 = vsel %vm112, %v113, %v114
    %v116 = vrot.slane %v91, 2
    %v117 = vsel %vm112, %v114, %v116
    %v118 = vrot.slane %v90, 2
    %v119 = vrot.slane %v82, 2
    %v120 = vsel %vm112, %v118, %v119
    %v121 = vrot.slane %v92, 2
    %v122 = vsel %vm112, %v119, %v121
    %v127 = vld [vmem:[#allocation5] sm:$0xff]
    %v128 = vld [vmem:[#allocation5 + $0x8] sm:$0xff]
    %v129 = vld [vmem:[#allocation5 + $0x10] sm:$0xff]
    %v130 = vld [vmem:[#allocation5 + $0x18] sm:$0xff]
    %v131 = vld [vmem:[#allocation5 + $0x20] sm:$0xff]
    %v132 = vld [vmem:[#allocation5 + $0x28] sm:$0xff]
    %v133 = vld [vmem:[#allocation5 + $0x30] sm:$0xff]
    %v134 = vld [vmem:[#allocation5 + $0x38] sm:$0xff]
    %v135 = vld [vmem:[#allocation5 + $0x40] sm:$0xff]
    %v136 = vld [vmem:[#allocation5 + $0x48] sm:$0xff]
    %v137 = vld [vmem:[#allocation5 + $0x50] sm:$0xff]
    %v138 = vld [vmem:[#allocation5 + $0x58] sm:$0xff]
    %v139 = vld [vmem:[#allocation5 + $0x60] sm:$0xff]
    %v140 = vld [vmem:[#allocation5 + $0x68] sm:$0xff]
    %v141 = vld [vmem:[#allocation5 + $0x70] sm:$0xff]
    %v142 = vld [vmem:[#allocation5 + $0x78] sm:$0xff]
    %v143 = vld [vmem:[#allocation5 + $0x80] sm:$0xff]
    %v144 = vld [vmem:[#allocation5 + $0x88] sm:$0xff]
    %v145 = vld [vmem:[#allocation5 + $0x90] sm:$0xff]
    %v146 = vld [vmem:[#allocation5 + $0x98] sm:$0xff]
    %v147 = vld [vmem:[#allocation5 + $0xa0] sm:$0xff]
    %v148 = vld [vmem:[#allocation5 + $0xa8] sm:$0xff]
    %v149 = vld [vmem:[#allocation5 + $0xb0] sm:$0xff]
    %v150 = vld [vmem:[#allocation5 + $0xb8] sm:$0xff]
    %v151 = vld [vmem:[#allocation5 + $0xc0] sm:$0xff]
    %v152 = vld [vmem:[#allocation5 + $0xc8] sm:$0xff]
    %v153 = vld [vmem:[#allocation5 + $0xd0] sm:$0xff]
    %v154 = vld [vmem:[#allocation5 + $0xd8] sm:$0xff]
    %v155 = vld [vmem:[#allocation5 + $0xe0] sm:$0xff]
    %v156 = vld [vmem:[#allocation5 + $0xe8] sm:$0xff]
    %v157 = vld [vmem:[#allocation5 + $0xf0] sm:$0xff]
    %v158 = vld [vmem:[#allocation5 + $0xf8] sm:$0xff]
    %v159 = vld [vmem:[#allocation5 + $0x100] sm:$0xff]
    %v160 = vld [vmem:[#allocation5 + $0x108] sm:$0xff]
    %v161 = vld [vmem:[#allocation5 + $0x110] sm:$0xff]
    %v162 = vld [vmem:[#allocation5 + $0x118] sm:$0xff]
    %v163 = vld [vmem:[#allocation5 + $0x120] sm:$0xff]
    %v164 = vld [vmem:[#allocation5 + $0x128] sm:$0xff]
    %v165 = vld [vmem:[#allocation5 + $0x130] sm:$0xff]
    %v166 = vld [vmem:[#allocation5 + $0x138] sm:$0xff]
    %v167 = vld [vmem:[#allocation5 + $0x140] sm:$0xff]
    %v168 = vld [vmem:[#allocation5 + $0x148] sm:$0xff]
    %v169 = vld [vmem:[#allocation5 + $0x150] sm:$0xff]
    %v170 = vld [vmem:[#allocation5 + $0x158] sm:$0xff]
    %v171 = vld [vmem:[#allocation5 + $0x160] sm:$0xff]
    %v172 = vld [vmem:[#allocation5 + $0x168] sm:$0xff]
    %v173 = vld [vmem:[#allocation5 + $0x170] sm:$0xff]
    %v174 = vld [vmem:[#allocation5 + $0x178] sm:$0xff]
    %175 = vmatprep.subr.mxu0 0.0
    %v176 = vand.u32 %v127, 4294901760
    %177 = vmatpush1.msra.mxu0 %v176
    %178 = vmatprep.subr.mxu0 0.0
    %v179 = vand.u32 %v128, 4294901760
    %180 = vmatpush1.msra.mxu0 %v179
    %181 = vmatprep.subr.mxu0 0.0
    %v182 = vand.u32 %v129, 4294901760
    %183 = vmatpush1.msra.mxu0 %v182
    %184 = vmatprep.subr.mxu0 0.0
    %v185 = vand.u32 %v130, 4294901760
    %186 = vmatpush1.msra.mxu0 %v185
    %187 = vmatprep.subr.mxu0 0.0
    %v188 = vand.u32 %v131, 4294901760
    %189 = vmatpush1.msra.mxu0 %v188
    %190 = vmatprep.subr.mxu0 0.0
    %v191 = vand.u32 %v132, 4294901760
    %192 = vmatpush1.msra.mxu0 %v191
    %193 = vmatprep.subr.mxu0 0.0
    %v194 = vand.u32 %v133, 4294901760
    %195 = vmatpush1.msra.mxu0 %v194
    %196 = vmatprep.subr.mxu0 0.0
    %v197 = vand.u32 %v134, 4294901760
    %198 = vmatpush1.msra.mxu0 %v197
    %199 = vmatprep.subr.mxu0 0.0
    %v200 = vand.u32 %v135, 4294901760
    %201 = vmatpush1.msra.mxu0 %v200
    %202 = vmatprep.subr.mxu0 0.0
    %v203 = vand.u32 %v136, 4294901760
    %204 = vmatpush1.msra.mxu0 %v203
    %205 = vmatprep.subr.mxu0 0.0
    %v206 = vand.u32 %v137, 4294901760
    %207 = vmatpush1.msra.mxu0 %v206
    %208 = vmatprep.subr.mxu0 0.0
    %v209 = vand.u32 %v138, 4294901760
    %210 = vmatpush1.msra.mxu0 %v209
    %211 = vmatprep.subr.mxu0 0.0
    %v212 = vand.u32 %v139, 4294901760
    %213 = vmatpush1.msra.mxu0 %v212
    %214 = vmatprep.subr.mxu0 0.0
    %v215 = vand.u32 %v140, 4294901760
    %216 = vmatpush1.msra.mxu0 %v215
    %217 = vmatprep.subr.mxu0 0.0
    %v218 = vand.u32 %v141, 4294901760
    %219 = vmatpush1.msra.mxu0 %v218
    %220 = vmatprep.subr.mxu0 0.0
    %v221 = vand.u32 %v142, 4294901760
    %222 = vmatpush1.msra.mxu0 %v221
    %223 = vmatprep.subr.mxu0 0.0
    %v224 = vand.u32 %v143, 4294901760
    %225 = vmatpush1.msra.mxu0 %v224
    %226 = vmatprep.subr.mxu0 0.0
    %v227 = vand.u32 %v144, 4294901760
    %228 = vmatpush1.msra.mxu0 %v227
    %229 = vmatprep.subr.mxu0 0.0
    %v230 = vand.u32 %v145, 4294901760
    %231 = vmatpush1.msra.mxu0 %v230
    %232 = vmatprep.subr.mxu0 0.0
    %v233 = vand.u32 %v146, 4294901760
    %234 = vmatpush1.msra.mxu0 %v233
    %235 = vmatprep.subr.mxu0 0.0
    %v236 = vand.u32 %v147, 4294901760
    %237 = vmatpush1.msra.mxu0 %v236
    %238 = vmatprep.subr.mxu0 0.0
    %v239 = vand.u32 %v148, 4294901760
    %240 = vmatpush1.msra.mxu0 %v239
    %241 = vmatprep.subr.mxu0 0.0
    %v242 = vand.u32 %v149, 4294901760
    %243 = vmatpush1.msra.mxu0 %v242
    %244 = vmatprep.subr.mxu0 0.0
    %v245 = vand.u32 %v150, 4294901760
    %246 = vmatpush1.msra.mxu0 %v245
    %247 = vmatprep.subr.mxu0 0.0
    %v248 = vand.u32 %v151, 4294901760
    %249 = vmatpush1.msra.mxu0 %v248
    %250 = vmatprep.subr.mxu0 0.0
    %v251 = vand.u32 %v152, 4294901760
    %252 = vmatpush1.msra.mxu0 %v251
    %253 = vmatprep.subr.mxu0 0.0
    %v254 = vand.u32 %v153, 4294901760
    %255 = vmatpush1.msra.mxu0 %v254
    %256 = vmatprep.subr.mxu0 0.0
    %v257 = vand.u32 %v154, 4294901760
    %258 = vmatpush1.msra.mxu0 %v257
    %259 = vmatprep.subr.mxu0 0.0
    %v260 = vand.u32 %v155, 4294901760
    %261 = vmatpush1.msra.mxu0 %v260
    %262 = vmatprep.subr.mxu0 0.0
    %v263 = vand.u32 %v156, 4294901760
    %264 = vmatpush1.msra.mxu0 %v263
    %265 = vmatprep.subr.mxu0 0.0
    %v266 = vand.u32 %v157, 4294901760
    %267 = vmatpush1.msra.mxu0 %v266
    %268 = vmatprep.subr.mxu0 0.0
    %v269 = vand.u32 %v158, 4294901760
    %270 = vmatpush1.msra.mxu0 %v269
    %v271 = vand.u32 %v100, 4294901760
    %v272 = vsub.f32 %v100, %v271
    %v273 = vand.u32 %v272, 4294901760
    %v274 = vsub.f32 %v272, %v273
    %v275 = vand.u32 %v274, 4294901760
    %276 = vmatprep.mubr.f32.mxu0 %v275
    %v277 = vand.u32 %v89, 4294901760
    %v278 = vsub.f32 %v89, %v277
    %v279 = vand.u32 %v278, 4294901760
    %v280 = vsub.f32 %v278, %v279
    %v281 = vand.u32 %v280, 4294901760
    %282 = vmatmul.mubr.f32.gmra.mrb[0].mxu0 %v281
    %v283 = vpop.f32.mrb[0].mxu0
    %v284 = vadd.f32 0.0, %v283
    %v285 = vpop.f32.mrb[0].mxu0
    %v286 = vand.u32 %v102, 4294901760
    %v287 = vsub.f32 %v102, %v286
    %v288 = vand.u32 %v287, 4294901760
    %v289 = vsub.f32 %v287, %v288
    %v290 = vand.u32 %v289, 4294901760
    %291 = vmatprep.mubr.f32.mxu0 %v290
    %v292 = vand.u32 %v79, 4294901760
    %v293 = vsub.f32 %v79, %v292
    %v294 = vand.u32 %v293, 4294901760
    %v295 = vsub.f32 %v293, %v294
    %v296 = vand.u32 %v295, 4294901760
    %297 = vmatmul.mubr.f32.gmra.mrb[0].mxu0 %v296
    %v298 = vpop.f32.mrb[0].mxu0
    %v299 = vadd.f32 0.0, %v298
    %v300 = vpop.f32.mrb[0].mxu0
    %v301 = vand.u32 %v105, 4294901760
    %v302 = vsub.f32 %v105, %v301
    %v303 = vand.u32 %v302, 4294901760
    %v304 = vsub.f32 %v302, %v303
    %v305 = vand.u32 %v304, 4294901760
    %306 = vmatprep.mubr.f32.mxu0 %v305
    %v307 = vand.u32 %v90, 4294901760
    %v308 = vsub.f32 %v90, %v307
    %v309 = vand.u32 %v308, 4294901760
    %v310 = vsub.f32 %v308, %v309
    %v311 = vand.u32 %v310, 4294901760
    %312 = vmatmul.mubr.f32.gmra.mrb[0].mxu0 %v311
    %v313 = vpop.f32.mrb[0].mxu0
    %v314 = vadd.f32 0.0, %v313
    %v315 = vpop.f32.mrb[0].mxu0
    %v316 = vand.u32 %v107, 4294901760
    %v317 = vsub.f32 %v107, %v316
    %v318 = vand.u32 %v317, 4294901760
    %v319 = vsub.f32 %v317, %v318
    %v320 = vand.u32 %v319, 4294901760
    %321 = vmatprep.mubr.f32.mxu0 %v320
    %v322 = vand.u32 %v82, 4294901760
    %v323 = vsub.f32 %v82, %v322
    %v324 = vand.u32 %v323, 4294901760
    %v325 = vsub.f32 %v323, %v324
    %v326 = vand.u32 %v325, 4294901760
    %327 = vmatmul.mubr.f32.gmra.mrb[0].mxu0 %v326
    %v328 = vpop.f32.mrb[0].mxu0
    %v329 = vadd.f32 0.0, %v328
    %v330 = vpop.f32.mrb[0].mxu0
    %331 = vdwg.mxu0
    %332 = vmatprep.subr.mxu0 0.0
    %v333 = vand.u32 %v127, 4294901760
    %v334 = vsub.f32 %v127, %v333
    %v335 = vand.u32 %v334, 4294901760
    %v336 = vsub.f32 %v334, %v335
    %v337 = vand.u32 %v336, 4294901760
    %338 = vmatpush1.msra.mxu0 %v337
    %339 = vmatprep.subr.mxu0 0.0
    %v340 = vand.u32 %v128, 4294901760
    %v341 = vsub.f32 %v128, %v340
    %v342 = vand.u32 %v341, 4294901760
    %v343 = vsub.f32 %v341, %v342
    %v344 = vand.u32 %v343, 4294901760
    %345 = vmatpush1.msra.mxu0 %v344
    %346 = vmatprep.subr.mxu0 0.0
    %v347 = vand.u32 %v129, 4294901760
    %v348 = vsub.f32 %v129, %v347
    %v349 = vand.u32 %v348, 4294901760
    %v350 = vsub.f32 %v348, %v349
    %v351 = vand.u32 %v350, 4294901760
    %352 = vmatpush1.msra.mxu0 %v351
    %353 = vmatprep.subr.mxu0 0.0
    %v354 = vand.u32 %v130, 4294901760
    %v355 = vsub.f32 %v130, %v354
    %v356 = vand.u32 %v355, 4294901760
    %v357 = vsub.f32 %v355, %v356
    %v358 = vand.u32 %v357, 4294901760
    %359 = vmatpush1.msra.mxu0 %v358
    %360 = vmatprep.subr.mxu0 0.0
    %v361 = vand.u32 %v131, 4294901760
    %v362 = vsub.f32 %v131, %v361
    %v363 = vand.u32 %v362, 4294901760
    %v364 = vsub.f32 %v362, %v363
    %v365 = vand.u32 %v364, 4294901760
    %366 = vmatpush1.msra.mxu0 %v365
    %367 = vmatprep.subr.mxu0 0.0
    %v368 = vand.u32 %v132, 4294901760
    %v369 = vsub.f32 %v132, %v368
    %v370 = vand.u32 %v369, 4294901760
    %v371 = vsub.f32 %v369, %v370
    %v372 = vand.u32 %v371, 4294901760
    %373 = vmatpush1.msra.mxu0 %v372
    %374 = vmatprep.subr.mxu0 0.0
    %v375 = vand.u32 %v133, 4294901760
    %v376 = vsub.f32 %v133, %v375
    %v377 = vand.u32 %v376, 4294901760
    %v378 = vsub.f32 %v376, %v377
    %v379 = vand.u32 %v378, 4294901760
    %380 = vmatpush1.msra.mxu0 %v379
    %381 = vmatprep.subr.mxu0 0.0
    %v382 = vand.u32 %v134, 4294901760
    %v383 = vsub.f32 %v134, %v382
    %v384 = vand.u32 %v383, 4294901760
    %v385 = vsub.f32 %v383, %v384
    %v386 = vand.u32 %v385, 4294901760
    %387 = vmatpush1.msra.mxu0 %v386
    %388 = vmatprep.subr.mxu0 0.0
    %v389 = vand.u32 %v135, 4294901760
    %v390 = vsub.f32 %v135, %v389
    %v391 = vand.u32 %v390, 4294901760
    %v392 = vsub.f32 %v390, %v391
    %v393 = vand.u32 %v392, 4294901760
    %394 = vmatpush1.msra.mxu0 %v393
    %395 = vmatprep.subr.mxu0 0.0
    %v396 = vand.u32 %v136, 4294901760
    %v397 = vsub.f32 %v136, %v396
    %v398 = vand.u32 %v397, 4294901760
    %v399 = vsub.f32 %v397, %v398
    %v400 = vand.u32 %v399, 4294901760
    %401 = vmatpush1.msra.mxu0 %v400
    %402 = vmatprep.subr.mxu0 0.0
    %v403 = vand.u32 %v137, 4294901760
    %v404 = vsub.f32 %v137, %v403
    %v405 = vand.u32 %v404, 4294901760
    %v406 = vsub.f32 %v404, %v405
    %v407 = vand.u32 %v406, 4294901760
    %408 = vmatpush1.msra.mxu0 %v407
    %409 = vmatprep.subr.mxu0 0.0
    %v410 = vand.u32 %v138, 4294901760
    %v411 = vsub.f32 %v138, %v410
    %v412 = vand.u32 %v411, 4294901760
    %v413 = vsub.f32 %v411, %v412
    %v414 = vand.u32 %v413, 4294901760
    %415 = vmatpush1.msra.mxu0 %v414
    %416 = vmatprep.subr.mxu0 0.0
    %v417 = vand.u32 %v139, 4294901760
    %v418 = vsub.f32 %v139, %v417
    %v419 = vand.u32 %v418, 4294901760
    %v420 = vsub.f32 %v418, %v419
    %v421 = vand.u32 %v420, 4294901760
    %422 = vmatpush1.msra.mxu0 %v421
    %423 = vmatprep.subr.mxu0 0.0
    %v424 = vand.u32 %v140, 4294901760
    %v425 = vsub.f32 %v140, %v424
    %v426 = vand.u32 %v425, 4294901760
    %v427 = vsub.f32 %v425, %v426
    %v428 = vand.u32 %v427, 4294901760
    %429 = vmatpush1.msra.mxu0 %v428
    %430 = vmatprep.subr.mxu0 0.0
    %v431 = vand.u32 %v141, 4294901760
    %v432 = vsub.f32 %v141, %v431
    %v433 = vand.u32 %v432, 4294901760
    %v434 = vsub.f32 %v432, %v433
    %v435 = vand.u32 %v434, 4294901760
    %436 = vmatpush1.msra.mxu0 %v435
    %437 = vmatprep.subr.mxu0 0.0
    %v438 = vand.u32 %v142, 4294901760
    %v439 = vsub.f32 %v142, %v438
    %v440 = vand.u32 %v439, 4294901760
    %v441 = vsub.f32 %v439, %v440
    %v442 = vand.u32 %v441, 4294901760
    %443 = vmatpush1.msra.mxu0 %v442
    %444 = vmatprep.subr.mxu0 0.0
    %v445 = vand.u32 %v143, 4294901760
    %v446 = vsub.f32 %v143, %v445
    %v447 = vand.u32 %v446, 4294901760
    %v448 = vsub.f32 %v446, %v447
    %v449 = vand.u32 %v448, 4294901760
    %450 = vmatpush1.msra.mxu0 %v449
    %451 = vmatprep.subr.mxu0 0.0
    %v452 = vand.u32 %v144, 4294901760
    %v453 = vsub.f32 %v144, %v452
    %v454 = vand.u32 %v453, 4294901760
    %v455 = vsub.f32 %v453, %v454
    %v456 = vand.u32 %v455, 4294901760
    %457 = vmatpush1.msra.mxu0 %v456
    %458 = vmatprep.subr.mxu0 0.0
    %v459 = vand.u32 %v145, 4294901760
    %v460 = vsub.f32 %v145, %v459
    %v461 = vand.u32 %v460, 4294901760
    %v462 = vsub.f32 %v460, %v461
    %v463 = vand.u32 %v462, 4294901760
    %464 = vmatpush1.msra.mxu0 %v463
    %465 = vmatprep.subr.mxu0 0.0
    %v466 = vand.u32 %v146, 4294901760
    %v467 = vsub.f32 %v146, %v466
    %v468 = vand.u32 %v467, 4294901760
    %v469 = vsub.f32 %v467, %v468
    %v470 = vand.u32 %v469, 4294901760
    %471 = vmatpush1.msra.mxu0 %v470
    %472 = vmatprep.subr.mxu0 0.0
    %v473 = vand.u32 %v147, 4294901760
    %v474 = vsub.f32 %v147, %v473
    %v475 = vand.u32 %v474, 4294901760
    %v476 = vsub.f32 %v474, %v475
    %v477 = vand.u32 %v476, 4294901760
    %478 = vmatpush1.msra.mxu0 %v477
    %479 = vmatprep.subr.mxu0 0.0
    %v480 = vand.u32 %v148, 4294901760
    %v481 = vsub.f32 %v148, %v480
    %v482 = vand.u32 %v481, 4294901760
    %v483 = vsub.f32 %v481, %v482
    %v484 = vand.u32 %v483, 4294901760
    %485 = vmatpush1.msra.mxu0 %v484
    %486 = vmatprep.subr.mxu0 0.0
    %v487 = vand.u32 %v149, 4294901760
    %v488 = vsub.f32 %v149, %v487
    %v489 = vand.u32 %v488, 4294901760
    %v490 = vsub.f32 %v488, %v489
    %v491 = vand.u32 %v490, 4294901760
    %492 = vmatpush1.msra.mxu0 %v491
    %493 = vmatprep.subr.mxu0 0.0
    %v494 = vand.u32 %v150, 4294901760
    %v495 = vsub.f32 %v150, %v494
    %v496 = vand.u32 %v495, 4294901760
    %v497 = vsub.f32 %v495, %v496
    %v498 = vand.u32 %v497, 4294901760
    %499 = vmatpush1.msra.mxu0 %v498
    %500 = vmatprep.subr.mxu0 0.0
    %v501 = vand.u32 %v151, 4294901760
    %v502 = vsub.f32 %v151, %v501
    %v503 = vand.u32 %v502, 4294901760
    %v504 = vsub.f32 %v502, %v503
    %v505 = vand.u32 %v504, 4294901760
    %506 = vmatpush1.msra.mxu0 %v505
    %507 = vmatprep.subr.mxu0 0.0
    %v508 = vand.u32 %v152, 4294901760
    %v509 = vsub.f32 %v152, %v508
    %v510 = vand.u32 %v509, 4294901760
    %v511 = vsub.f32 %v509, %v510
    %v512 = vand.u32 %v511, 4294901760
    %513 = vmatpush1.msra.mxu0 %v512
    %514 = vmatprep.subr.mxu0 0.0
    %v515 = vand.u32 %v153, 4294901760
    %v516 = vsub.f32 %v153, %v515
    %v517 = vand.u32 %v516, 4294901760
    %v518 = vsub.f32 %v516, %v517
    %v519 = vand.u32 %v518, 4294901760
    %520 = vmatpush1.msra.mxu0 %v519
    %521 = vmatprep.subr.mxu0 0.0
    %v522 = vand.u32 %v154, 4294901760
    %v523 = vsub.f32 %v154, %v522
    %v524 = vand.u32 %v523, 4294901760
    %v525 = vsub.f32 %v523, %v524
    %v526 = vand.u32 %v525, 4294901760
    %527 = vmatpush1.msra.mxu0 %v526
    %528 = vmatprep.subr.mxu0 0.0
    %v529 = vand.u32 %v155, 4294901760
    %v530 = vsub.f32 %v155, %v529
    %v531 = vand.u32 %v530, 4294901760
    %v532 = vsub.f32 %v530, %v531
    %v533 = vand.u32 %v532, 4294901760
    %534 = vmatpush1.msra.mxu0 %v533
    %535 = vmatprep.subr.mxu0 0.0
    %v536 = vand.u32 %v156, 4294901760
    %v537 = vsub.f32 %v156, %v536
    %v538 = vand.u32 %v537, 4294901760
    %v539 = vsub.f32 %v537, %v538
    %v540 = vand.u32 %v539, 4294901760
    %541 = vmatpush1.msra.mxu0 %v540
    %542 = vmatprep.subr.mxu0 0.0
    %v543 = vand.u32 %v157, 4294901760
    %v544 = vsub.f32 %v157, %v543
    %v545 = vand.u32 %v544, 4294901760
    %v546 = vsub.f32 %v544, %v545
    %v547 = vand.u32 %v546, 4294901760
    %548 = vmatpush1.msra.mxu0 %v547
    %549 = vmatprep.subr.mxu0 0.0
    %v550 = vand.u32 %v158, 4294901760
    %v551 = vsub.f32 %v158, %v550
    %v552 = vand.u32 %v551, 4294901760
    %v553 = vsub.f32 %v551, %v552
    %v554 = vand.u32 %v553, 4294901760
    %555 = vmatpush1.msra.mxu0 %v554
    %v556 = vand.u32 %v100, 4294901760
    %557 = vmatprep.mubr.f32.mxu0 %v556
    %v558 = vand.u32 %v89, 4294901760
    %559 = vmatmul.mubr.f32.gmra.mrb[0].mxu0 %v558
    %v560 = vpop.f32.mrb[0].mxu0
    %v561 = vadd.f32 %v284, %v560
    %v562 = vpop.f32.mrb[0].mxu0
    %v563 = vand.u32 %v102, 4294901760
    %564 = vmatprep.mubr.f32.mxu0 %v563
    %v565 = vand.u32 %v79, 4294901760
    %566 = vmatmul.mubr.f32.gmra.mrb[0].mxu0 %v565
    %v567 = vpop.f32.mrb[0].mxu0
    %v568 = vadd.f32 %v299, %v567
    %v569 = vpop.f32.mrb[0].mxu0
    %v570 = vand.u32 %v105, 4294901760
    %571 = vmatprep.mubr.f32.mxu0 %v570
    %v572 = vand.u32 %v90, 4294901760
    %573 = vmatmul.mubr.f32.gmra.mrb[0].mxu0 %v572
    %v574 = vpop.f32.mrb[0].mxu0
    %v575 = vadd.f32 %v314, %v574
    %v576 = vpop.f32.mrb[0].mxu0
    %v577 = vand.u32 %v107, 4294901760
    %578 = vmatprep.mubr.f32.mxu0 %v577
    %v579 = vand.u32 %v82, 4294901760
    %580 = vmatmul.mubr.f32.gmra.mrb[0].mxu0 %v579
    %v581 = vpop.f32.mrb[0].mxu0
    %v582 = vadd.f32 %v329, %v581
    %v583 = vpop.f32.mrb[0].mxu0
    %584 = vdwg.mxu0
    %585 = vmatprep.subr.mxu0 0.0
    %v586 = vand.u32 %v127, 4294901760
    %v587 = vsub.f32 %v127, %v586
    %588 = vmatpush1.msra.mxu0 %v587
    %589 = vmatprep.subr.mxu0 0.0
    %v590 = vand.u32 %v128, 4294901760
    %v591 = vsub.f32 %v128, %v590
    %592 = vmatpush1.msra.mxu0 %v591
    %593 = vmatprep.subr.mxu0 0.0
    %v594 = vand.u32 %v129, 4294901760
    %v595 = vsub.f32 %v129, %v594
    %596 = vmatpush1.msra.mxu0 %v595
    %597 = vmatprep.subr.mxu0 0.0
    %v598 = vand.u32 %v130, 4294901760
    %v599 = vsub.f32 %v130, %v598
    %600 = vmatpush1.msra.mxu0 %v599
    %601 = vmatprep.subr.mxu0 0.0
    %v602 = vand.u32 %v131, 4294901760
    %v603 = vsub.f32 %v131, %v602
    %604 = vmatpush1.msra.mxu0 %v603
    %605 = vmatprep.subr.mxu0 0.0
    %v606 = vand.u32 %v132, 4294901760
    %v607 = vsub.f32 %v132, %v606
    %608 = vmatpush1.msra.mxu0 %v607
    %609 = vmatprep.subr.mxu0 0.0
    %v610 = vand.u32 %v133, 4294901760
    %v611 = vsub.f32 %v133, %v610
    %612 = vmatpush1.msra.mxu0 %v611
    %613 = vmatprep.subr.mxu0 0.0
    %v614 = vand.u32 %v134, 4294901760
    %v615 = vsub.f32 %v134, %v614
    %616 = vmatpush1.msra.mxu0 %v615
    %617 = vmatprep.subr.mxu0 0.0
    %v618 = vand.u32 %v135, 4294901760
    %v619 = vsub.f32 %v135, %v618
    %620 = vmatpush1.msra.mxu0 %v619
    %621 = vmatprep.subr.mxu0 0.0
    %v622 = vand.u32 %v136, 4294901760
    %v623 = vsub.f32 %v136, %v622
    %624 = vmatpush1.msra.mxu0 %v623
    %625 = vmatprep.subr.mxu0 0.0
    %v626 = vand.u32 %v137, 4294901760
    %v627 = vsub.f32 %v137, %v626
    %628 = vmatpush1.msra.mxu0 %v627
    %629 = vmatprep.subr.mxu0 0.0
    %v630 = vand.u32 %v138, 4294901760
    %v631 = vsub.f32 %v138, %v630
    %632 = vmatpush1.msra.mxu0 %v631
    %633 = vmatprep.subr.mxu0 0.0
    %v634 = vand.u32 %v139, 4294901760
    %v635 = vsub.f32 %v139, %v634
    %636 = vmatpush1.msra.mxu0 %v635
    %637 = vmatprep.subr.mxu0 0.0
    %v638 = vand.u32 %v140, 4294901760
    %v639 = vsub.f32 %v140, %v638
    %640 = vmatpush1.msra.mxu0 %v639
    %641 = vmatprep.subr.mxu0 0.0
    %v642 = vand.u32 %v141, 4294901760
    %v643 = vsub.f32 %v141, %v642
    %644 = vmatpush1.msra.mxu0 %v643
    %645 = vmatprep.subr.mxu0 0.0
    %v646 = vand.u32 %v142, 4294901760
    %v647 = vsub.f32 %v142, %v646
    %648 = vmatpush1.msra.mxu0 %v647
    %649 = vmatprep.subr.mxu0 0.0
    %v650 = vand.u32 %v143, 4294901760
    %v651 = vsub.f32 %v143, %v650
    %652 = vmatpush1.msra.mxu0 %v651
    %653 = vmatprep.subr.mxu0 0.0
    %v654 = vand.u32 %v144, 4294901760
    %v655 = vsub.f32 %v144, %v654
    %656 = vmatpush1.msra.mxu0 %v655
    %657 = vmatprep.subr.mxu0 0.0
    %v658 = vand.u32 %v145, 4294901760
    %v659 = vsub.f32 %v145, %v658
    %660 = vmatpush1.msra.mxu0 %v659
    %661 = vmatprep.subr.mxu0 0.0
    %v662 = vand.u32 %v146, 4294901760
    %v663 = vsub.f32 %v146, %v662
    %664 = vmatpush1.msra.mxu0 %v663
    %665 = vmatprep.subr.mxu0 0.0
    %v666 = vand.u32 %v147, 4294901760
    %v667 = vsub.f32 %v147, %v666
    %668 = vmatpush1.msra.mxu0 %v667
    %669 = vmatprep.subr.mxu0 0.0
    %v670 = vand.u32 %v148, 4294901760
    %v671 = vsub.f32 %v148, %v670
    %672 = vmatpush1.msra.mxu0 %v671
    %673 = vmatprep.subr.mxu0 0.0
    %v674 = vand.u32 %v149, 4294901760
    %v675 = vsub.f32 %v149, %v674
    %676 = vmatpush1.msra.mxu0 %v675
    %677 = vmatprep.subr.mxu0 0.0
    %v678 = vand.u32 %v150, 4294901760
    %v679 = vsub.f32 %v150, %v678
    %680 = vmatpush1.msra.mxu0 %v679
    %681 = vmatprep.subr.mxu0 0.0
    %v682 = vand.u32 %v151, 4294901760
    %v683 = vsub.f32 %v151, %v682
    %684 = vmatpush1.msra.mxu0 %v683
    %685 = vmatprep.subr.mxu0 0.0
    %v686 = vand.u32 %v152, 4294901760
    %v687 = vsub.f32 %v152, %v686
    %688 = vmatpush1.msra.mxu0 %v687
    %689 = vmatprep.subr.mxu0 0.0
    %v690 = vand.u32 %v153, 4294901760
    %v691 = vsub.f32 %v153, %v690
    %692 = vmatpush1.msra.mxu0 %v691
    %693 = vmatprep.subr.mxu0 0.0
    %v694 = vand.u32 %v154, 4294901760
    %v695 = vsub.f32 %v154, %v694
    %696 = vmatpush1.msra.mxu0 %v695
    %697 = vmatprep.subr.mxu0 0.0
    %v698 = vand.u32 %v155, 4294901760
    %v699 = vsub.f32 %v155, %v698
    %700 = vmatpush1.msra.mxu0 %v699
    %701 = vmatprep.subr.mxu0 0.0
    %v702 = vand.u32 %v156, 4294901760
    %v703 = vsub.f32 %v156, %v702
    %704 = vmatpush1.msra.mxu0 %v703
    %705 = vmatprep.subr.mxu0 0.0
    %v706 = vand.u32 %v157, 4294901760
    %v707 = vsub.f32 %v157, %v706
    %708 = vmatpush1.msra.mxu0 %v707
    %709 = vmatprep.subr.mxu0 0.0
    %v710 = vand.u32 %v158, 4294901760
    %v711 = vsub.f32 %v158, %v710
    %712 = vmatpush1.msra.mxu0 %v711
    %v713 = vand.u32 %v100, 4294901760
    %v714 = vsub.f32 %v100, %v713
    %715 = vmatprep.mubr.f32.mxu0 %v714
    %v716 = vand.u32 %v89, 4294901760
    %v717 = vsub.f32 %v89, %v716
    %718 = vmatmul.mubr.f32.gmra.mrb[0].mxu0 %v717
    %v719 = vpop.f32.mrb[0].mxu0
    %v720 = vadd.f32 %v561, %v719
    %v721 = vpop.f32.mrb[0].mxu0
    %v722 = vand.u32 %v102, 4294901760
    %v723 = vsub.f32 %v102, %v722
    %724 = vmatprep.mubr.f32.mxu0 %v723
    %v725 = vand.u32 %v79, 4294901760
    %v726 = vsub.f32 %v79, %v725
    %727 = vmatmul.mubr.f32.gmra.mrb[0].mxu0 %v726
    %v728 = vpop.f32.mrb[0].mxu0
    %v729 = vadd.f32 %v568, %v728
    %v730 = vpop.f32.mrb[0].mxu0
    %v731 = vand.u32 %v105, 4294901760
    %v732 = vsub.f32 %v105, %v731
    %733 = vmatprep.mubr.f32.mxu0 %v732
    %v734 = vand.u32 %v90, 4294901760
    %v735 = vsub.f32 %v90, %v734
    %736 = vmatmul.mubr.f32.gmra.mrb[0].mxu0 %v735
    %v737 = vpop.f32.mrb[0].mxu0
    %v738 = vadd.f32 %v575, %v737
    %v739 = vpop.f32.mrb[0].mxu0
    %v740 = vand.u32 %v107, 4294901760
    %v741 = vsub.f32 %v107, %v740
    %742 = vmatprep.mubr.f32.mxu0 %v741
    %v743 = vand.u32 %v82, 4294901760
    %v744 = vsub.f32 %v82, %v743
    %745 = vmatmul.mubr.f32.gmra.mrb[0].mxu0 %v744
    %v746 = vpop.f32.mrb[0].mxu0
    %v747 = vadd.f32 %v582, %v746
    %v748 = vpop.f32.mrb[0].mxu0
    %749 = vdwg.mxu0
    %750 = vmatprep.subr.mxu0 0.0
    %v751 = vand.u32 %v127, 4294901760
    %752 = vmatpush1.msra.mxu0 %v751
    %753 = vmatprep.subr.mxu0 0.0
    %v754 = vand.u32 %v128, 4294901760
    %755 = vmatpush1.msra.mxu0 %v754
    %756 = vmatprep.subr.mxu0 0.0
    %v757 = vand.u32 %v129, 4294901760
    %758 = vmatpush1.msra.mxu0 %v757
    %759 = vmatprep.subr.mxu0 0.0
    %v760 = vand.u32 %v130, 4294901760
    %761 = vmatpush1.msra.mxu0 %v760
    %762 = vmatprep.subr.mxu0 0.0
    %v763 = vand.u32 %v131, 4294901760
    %764 = vmatpush1.msra.mxu0 %v763
    %765 = vmatprep.subr.mxu0 0.0
    %v766 = vand.u32 %v132, 4294901760
    %767 = vmatpush1.msra.mxu0 %v766
    %768 = vmatprep.subr.mxu0 0.0
    %v769 = vand.u32 %v133, 4294901760
    %770 = vmatpush1.msra.mxu0 %v769
    %771 = vmatprep.subr.mxu0 0.0
    %v772 = vand.u32 %v134, 4294901760
    %773 = vmatpush1.msra.mxu0 %v772
    %774 = vmatprep.subr.mxu0 0.0
    %v775 = vand.u32 %v135, 4294901760
    %776 = vmatpush1.msra.mxu0 %v775
    %777 = vmatprep.subr.mxu0 0.0
    %v778 = vand.u32 %v136, 4294901760
    %779 = vmatpush1.msra.mxu0 %v778
    %780 = vmatprep.subr.mxu0 0.0
    %v781 = vand.u32 %v137, 4294901760
    %782 = vmatpush1.msra.mxu0 %v781
    %783 = vmatprep.subr.mxu0 0.0
    %v784 = vand.u32 %v138, 4294901760
    %785 = vmatpush1.msra.mxu0 %v784
    %786 = vmatprep.subr.mxu0 0.0
    %v787 = vand.u32 %v139, 4294901760
    %788 = vmatpush1.msra.mxu0 %v787
    %789 = vmatprep.subr.mxu0 0.0
    %v790 = vand.u32 %v140, 4294901760
    %791 = vmatpush1.msra.mxu0 %v790
    %792 = vmatprep.subr.mxu0 0.0
    %v793 = vand.u32 %v141, 4294901760
    %794 = vmatpush1.msra.mxu0 %v793
    %795 = vmatprep.subr.mxu0 0.0
    %v796 = vand.u32 %v142, 4294901760
    %797 = vmatpush1.msra.mxu0 %v796
    %798 = vmatprep.subr.mxu0 0.0
    %v799 = vand.u32 %v143, 4294901760
    %800 = vmatpush1.msra.mxu0 %v799
    %801 = vmatprep.subr.mxu0 0.0
    %v802 = vand.u32 %v144, 4294901760
    %803 = vmatpush1.msra.mxu0 %v802
    %804 = vmatprep.subr.mxu0 0.0
    %v805 = vand.u32 %v145, 4294901760
    %806 = vmatpush1.msra.mxu0 %v805
    %807 = vmatprep.subr.mxu0 0.0
    %v808 = vand.u32 %v146, 4294901760
    %809 = vmatpush1.msra.mxu0 %v808
    %810 = vmatprep.subr.mxu0 0.0
    %v811 = vand.u32 %v147, 4294901760
    %812 = vmatpush1.msra.mxu0 %v811
    %813 = vmatprep.subr.mxu0 0.0
    %v814 = vand.u32 %v148, 4294901760
    %815 = vmatpush1.msra.mxu0 %v814
    %816 = vmatprep.subr.mxu0 0.0
    %v817 = vand.u32 %v149, 4294901760
    %818 = vmatpush1.msra.mxu0 %v817
    %819 = vmatprep.subr.mxu0 0.0
    %v820 = vand.u32 %v150, 4294901760
    %821 = vmatpush1.msra.mxu0 %v820
    %822 = vmatprep.subr.mxu0 0.0
    %v823 = vand.u32 %v151, 4294901760
    %824 = vmatpush1.msra.mxu0 %v823
    %825 = vmatprep.subr.mxu0 0.0
    %v826 = vand.u32 %v152, 4294901760
    %827 = vmatpush1.msra.mxu0 %v826
    %828 = vmatprep.subr.mxu0 0.0
    %v829 = vand.u32 %v153, 4294901760
    %830 = vmatpush1.msra.mxu0 %v829
    %831 = vmatprep.subr.mxu0 0.0
    %v832 = vand.u32 %v154, 4294901760
    %833 = vmatpush1.msra.mxu0 %v832
    %834 = vmatprep.subr.mxu0 0.0
    %v835 = vand.u32 %v155, 4294901760
    %836 = vmatpush1.msra.mxu0 %v835
    %837 = vmatprep.subr.mxu0 0.0
    %v838 = vand.u32 %v156, 4294901760
    %839 = vmatpush1.msra.mxu0 %v838
    %840 = vmatprep.subr.mxu0 0.0
    %v841 = vand.u32 %v157, 4294901760
    %842 = vmatpush1.msra.mxu0 %v841
    %843 = vmatprep.subr.mxu0 0.0
    %v844 = vand.u32 %v158, 4294901760
    %845 = vmatpush1.msra.mxu0 %v844
    %v846 = vand.u32 %v100, 4294901760
    %v847 = vsub.f32 %v100, %v846
    %v848 = vand.u32 %v847, 4294901760
    %849 = vmatprep.mubr.f32.mxu0 %v848
    %v850 = vand.u32 %v89, 4294901760
    %v851 = vsub.f32 %v89, %v850
    %v852 = vand.u32 %v851, 4294901760
    %853 = vmatmul.mubr.f32.gmra.mrb[0].mxu0 %v852
    %v854 = vpop.f32.mrb[0].mxu0
    %v855 = vadd.f32 %v720, %v854
    %v856 = vpop.f32.mrb[0].mxu0
    %v857 = vand.u32 %v102, 4294901760
    %v858 = vsub.f32 %v102, %v857
    %v859 = vand.u32 %v858, 4294901760
    %860 = vmatprep.mubr.f32.mxu0 %v859
    %v861 = vand.u32 %v79, 4294901760
    %v862 = vsub.f32 %v79, %v861
    %v863 = vand.u32 %v862, 4294901760
    %864 = vmatmul.mubr.f32.gmra.mrb[0].mxu0 %v863
    %v865 = vpop.f32.mrb[0].mxu0
    %v866 = vadd.f32 %v729, %v865
    %v867 = vpop.f32.mrb[0].mxu0
    %v868 = vand.u32 %v105, 4294901760
    %v869 = vsub.f32 %v105, %v868
    %v870 = vand.u32 %v869, 4294901760
    %871 = vmatprep.mubr.f32.mxu0 %v870
    %v872 = vand.u32 %v90, 4294901760
    %v873 = vsub.f32 %v90, %v872
    %v874 = vand.u32 %v873, 4294901760
    %875 = vmatmul.mubr.f32.gmra.mrb[0].mxu0 %v874
    %v876 = vpop.f32.mrb[0].mxu0
    %v877 = vadd.f32 %v738, %v876
    %v878 = vpop.f32.mrb[0].mxu0
    %v879 = vand.u32 %v107, 4294901760
    %v880 = vsub.f32 %v107, %v879
    %v881 = vand.u32 %v880, 4294901760
    %882 = vmatprep.mubr.f32.mxu0 %v881
    %v883 = vand.u32 %v82, 4294901760
    %v884 = vsub.f32 %v82, %v883
    %v885 = vand.u32 %v884, 4294901760
    %886 = vmatmul.mubr.f32.gmra.mrb[0].mxu0 %v885
    %v887 = vpop.f32.mrb[0].mxu0
    %v888 = vadd.f32 %v747, %v887
    %v889 = vpop.f32.mrb[0].mxu0
    %890 = vdwg.mxu0
    %891 = vmatprep.subr.mxu0 0.0
    %v892 = vand.u32 %v127, 4294901760
    %v893 = vsub.f32 %v127, %v892
    %v894 = vand.u32 %v893, 4294901760
    %895 = vmatpush1.msra.mxu0 %v894
    %896 = vmatprep.subr.mxu0 0.0
    %v897 = vand.u32 %v128, 4294901760
    %v898 = vsub.f32 %v128, %v897
    %v899 = vand.u32 %v898, 4294901760
    %900 = vmatpush1.msra.mxu0 %v899
    %901 = vmatprep.subr.mxu0 0.0
    %v902 = vand.u32 %v129, 4294901760
    %v903 = vsub.f32 %v129, %v902
    %v904 = vand.u32 %v903, 4294901760
    %905 = vmatpush1.msra.mxu0 %v904
    %906 = vmatprep.subr.mxu0 0.0
    %v907 = vand.u32 %v130, 4294901760
    %v908 = vsub.f32 %v130, %v907
    %v909 = vand.u32 %v908, 4294901760
    %910 = vmatpush1.msra.mxu0 %v909
    %911 = vmatprep.subr.mxu0 0.0
    %v912 = vand.u32 %v131, 4294901760
    %v913 = vsub.f32 %v131, %v912
    %v914 = vand.u32 %v913, 4294901760
    %915 = vmatpush1.msra.mxu0 %v914
    %916 = vmatprep.subr.mxu0 0.0
    %v917 = vand.u32 %v132, 4294901760
    %v918 = vsub.f32 %v132, %v917
    %v919 = vand.u32 %v918, 4294901760
    %920 = vmatpush1.msra.mxu0 %v919
    %921 = vmatprep.subr.mxu0 0.0
    %v922 = vand.u32 %v133, 4294901760
    %v923 = vsub.f32 %v133, %v922
    %v924 = vand.u32 %v923, 4294901760
    %925 = vmatpush1.msra.mxu0 %v924
    %926 = vmatprep.subr.mxu0 0.0
    %v927 = vand.u32 %v134, 4294901760
    %v928 = vsub.f32 %v134, %v927
    %v929 = vand.u32 %v928, 4294901760
    %930 = vmatpush1.msra.mxu0 %v929
    %931 = vmatprep.subr.mxu0 0.0
    %v932 = vand.u32 %v135, 4294901760
    %v933 = vsub.f32 %v135, %v932
    %v934 = vand.u32 %v933, 4294901760
    %935 = vmatpush1.msra.mxu0 %v934
    %936 = vmatprep.subr.mxu0 0.0
    %v937 = vand.u32 %v136, 4294901760
    %v938 = vsub.f32 %v136, %v937
    %v939 = vand.u32 %v938, 4294901760
    %940 = vmatpush1.msra.mxu0 %v939
    %941 = vmatprep.subr.mxu0 0.0
    %v942 = vand.u32 %v137, 4294901760
    %v943 = vsub.f32 %v137, %v942
    %v944 = vand.u32 %v943, 4294901760
    %945 = vmatpush1.msra.mxu0 %v944
    %946 = vmatprep.subr.mxu0 0.0
    %v947 = vand.u32 %v138, 4294901760
    %v948 = vsub.f32 %v138, %v947
    %v949 = vand.u32 %v948, 4294901760
    %950 = vmatpush1.msra.mxu0 %v949
    %951 = vmatprep.subr.mxu0 0.0
    %v952 = vand.u32 %v139, 4294901760
    %v953 = vsub.f32 %v139, %v952
    %v954 = vand.u32 %v953, 4294901760
    %955 = vmatpush1.msra.mxu0 %v954
    %956 = vmatprep.subr.mxu0 0.0
    %v957 = vand.u32 %v140, 4294901760
    %v958 = vsub.f32 %v140, %v957
    %v959 = vand.u32 %v958, 4294901760
    %960 = vmatpush1.msra.mxu0 %v959
    %961 = vmatprep.subr.mxu0 0.0
    %v962 = vand.u32 %v141, 4294901760
    %v963 = vsub.f32 %v141, %v962
    %v964 = vand.u32 %v963, 4294901760
    %965 = vmatpush1.msra.mxu0 %v964
    %966 = vmatprep.subr.mxu0 0.0
    %v967 = vand.u32 %v142, 4294901760
    %v968 = vsub.f32 %v142, %v967
    %v969 = vand.u32 %v968, 4294901760
    %970 = vmatpush1.msra.mxu0 %v969
    %971 = vmatprep.subr.mxu0 0.0
    %v972 = vand.u32 %v143, 4294901760
    %v973 = vsub.f32 %v143, %v972
    %v974 = vand.u32 %v973, 4294901760
    %975 = vmatpush1.msra.mxu0 %v974
    %976 = vmatprep.subr.mxu0 0.0
    %v977 = vand.u32 %v144, 4294901760
    %v978 = vsub.f32 %v144, %v977
    %v979 = vand.u32 %v978, 4294901760
    %980 = vmatpush1.msra.mxu0 %v979
    %981 = vmatprep.subr.mxu0 0.0
    %v982 = vand.u32 %v145, 4294901760
    %v983 = vsub.f32 %v145, %v982
    %v984 = vand.u32 %v983, 4294901760
    %985 = vmatpush1.msra.mxu0 %v984
    %986 = vmatprep.subr.mxu0 0.0
    %v987 = vand.u32 %v146, 4294901760
    %v988 = vsub.f32 %v146, %v987
    %v989 = vand.u32 %v988, 4294901760
    %990 = vmatpush1.msra.mxu0 %v989
    %991 = vmatprep.subr.mxu0 0.0
    %v992 = vand.u32 %v147, 4294901760
    %v993 = vsub.f32 %v147, %v992
    %v994 = vand.u32 %v993, 4294901760
    %995 = vmatpush1.msra.mxu0 %v994
    %996 = vmatprep.subr.mxu0 0.0
    %v997 = vand.u32 %v148, 4294901760
    %v998 = vsub.f32 %v148, %v997
    %v999 = vand.u32 %v998, 4294901760
    %1000 = vmatpush1.msra.mxu0 %v999
    %1001 = vmatprep.subr.mxu0 0.0
    %v1002 = vand.u32 %v149, 4294901760
    %v1003 = vsub.f32 %v149, %v1002
    %v1004 = vand.u32 %v1003, 4294901760
    %1005 = vmatpush1.msra.mxu0 %v1004
    %1006 = vmatprep.subr.mxu0 0.0
    %v1007 = vand.u32 %v150, 4294901760
    %v1008 = vsub.f32 %v150, %v1007
    %v1009 = vand.u32 %v1008, 4294901760
    %1010 = vmatpush1.msra.mxu0 %v1009
    %1011 = vmatprep.subr.mxu0 0.0
    %v1012 = vand.u32 %v151, 4294901760
    %v1013 = vsub.f32 %v151, %v1012
    %v1014 = vand.u32 %v1013, 4294901760
    %1015 = vmatpush1.msra.mxu0 %v1014
    %1016 = vmatprep.subr.mxu0 0.0
    %v1017 = vand.u32 %v152, 4294901760
    %v1018 = vsub.f32 %v152, %v1017
    %v1019 = vand.u32 %v1018, 4294901760
    %1020 = vmatpush1.msra.mxu0 %v1019
    %1021 = vmatprep.subr.mxu0 0.0
    %v1022 = vand.u32 %v153, 4294901760
    %v1023 = vsub.f32 %v153, %v1022
    %v1024 = vand.u32 %v1023, 4294901760
    %1025 = vmatpush1.msra.mxu0 %v1024
    %1026 = vmatprep.subr.mxu0 0.0
    %v1027 = vand.u32 %v154, 4294901760
    %v1028 = vsub.f32 %v154, %v1027
    %v1029 = vand.u32 %v1028, 4294901760
    %1030 = vmatpush1.msra.mxu0 %v1029
    %1031 = vmatprep.subr.mxu0 0.0
    %v1032 = vand.u32 %v155, 4294901760
    %v1033 = vsub.f32 %v155, %v1032
    %v1034 = vand.u32 %v1033, 4294901760
    %1035 = vmatpush1.msra.mxu0 %v1034
    %1036 = vmatprep.subr.mxu0 0.0
    %v1037 = vand.u32 %v156, 4294901760
    %v1038 = vsub.f32 %v156, %v1037
    %v1039 = vand.u32 %v1038, 4294901760
    %1040 = vmatpush1.msra.mxu0 %v1039
    %1041 = vmatprep.subr.mxu0 0.0
    %v1042 = vand.u32 %v157, 4294901760
    %v1043 = vsub.f32 %v157, %v1042
    %v1044 = vand.u32 %v1043, 4294901760
    %1045 = vmatpush1.msra.mxu0 %v1044
    %1046 = vmatprep.subr.mxu0 0.0
    %v1047 = vand.u32 %v158, 4294901760
    %v1048 = vsub.f32 %v158, %v1047
    %v1049 = vand.u32 %v1048, 4294901760
    %1050 = vmatpush1.msra.mxu0 %v1049
    %v1051 = vand.u32 %v100, 4294901760
    %1052 = vmatprep.mubr.f32.mxu0 %v1051
    %v1053 = vand.u32 %v89, 4294901760
    %1054 = vmatmul.mubr.f32.gmra.mrb[0].mxu0 %v1053
    %v1055 = vpop.f32.mrb[0].mxu0
    %v1056 = vadd.f32 %v855, %v1055
    %v1057 = vpop.f32.mrb[0].mxu0
    %v1058 = vand.u32 %v102, 4294901760
    %1059 = vmatprep.mubr.f32.mxu0 %v1058
    %v1060 = vand.u32 %v79, 4294901760
    %1061 = vmatmul.mubr.f32.gmra.mrb[0].mxu0 %v1060
    %v1062 = vpop.f32.mrb[0].mxu0
    %v1063 = vadd.f32 %v866, %v1062
    %v1064 = vpop.f32.mrb[0].mxu0
    %v1065 = vand.u32 %v105, 4294901760
    %1066 = vmatprep.mubr.f32.mxu0 %v1065
    %v1067 = vand.u32 %v90, 4294901760
    %1068 = vmatmul.mubr.f32.gmra.mrb[0].mxu0 %v1067
    %v1069 = vpop.f32.mrb[0].mxu0
    %v1070 = vadd.f32 %v877, %v1069
    %v1071 = vpop.f32.mrb[0].mxu0
    %v1072 = vand.u32 %v107, 4294901760
    %1073 = vmatprep.mubr.f32.mxu0 %v1072
    %v1074 = vand.u32 %v82, 4294901760
    %1075 = vmatmul.mubr.f32.gmra.mrb[0].mxu0 %v1074
    %v1076 = vpop.f32.mrb[0].mxu0
    %v1077 = vadd.f32 %v888, %v1076
    %v1078 = vpop.f32.mrb[0].mxu0
    %1079 = vdwg.mxu0
    %1080 = vmatprep.subr.mxu0 0.0
    %v1081 = vand.u32 %v127, 4294901760
    %1082 = vmatpush1.msra.mxu0 %v1081
    %1083 = vmatprep.subr.mxu0 0.0
    %v1084 = vand.u32 %v128, 4294901760
    %1085 = vmatpush1.msra.mxu0 %v1084
    %1086 = vmatprep.subr.mxu0 0.0
    %v1087 = vand.u32 %v129, 4294901760
    %1088 = vmatpush1.msra.mxu0 %v1087
    %1089 = vmatprep.subr.mxu0 0.0
    %v1090 = vand.u32 %v130, 4294901760
    %1091 = vmatpush1.msra.mxu0 %v1090
    %1092 = vmatprep.subr.mxu0 0.0
    %v1093 = vand.u32 %v131, 4294901760
    %1094 = vmatpush1.msra.mxu0 %v1093
    %1095 = vmatprep.subr.mxu0 0.0
    %v1096 = vand.u32 %v132, 4294901760
    %1097 = vmatpush1.msra.mxu0 %v1096
    %1098 = vmatprep.subr.mxu0 0.0
    %v1099 = vand.u32 %v133, 4294901760
    %1100 = vmatpush1.msra.mxu0 %v1099
    %1101 = vmatprep.subr.mxu0 0.0
    %v1102 = vand.u32 %v134, 4294901760
    %1103 = vmatpush1.msra.mxu0 %v1102
    %1104 = vmatprep.subr.mxu0 0.0
    %v1105 = vand.u32 %v135, 4294901760
    %1106 = vmatpush1.msra.mxu0 %v1105
    %1107 = vmatprep.subr.mxu0 0.0
    %v1108 = vand.u32 %v136, 4294901760
    %1109 = vmatpush1.msra.mxu0 %v1108
    %1110 = vmatprep.subr.mxu0 0.0
    %v1111 = vand.u32 %v137, 4294901760
    %1112 = vmatpush1.msra.mxu0 %v1111
    %1113 = vmatprep.subr.mxu0 0.0
    %v1114 = vand.u32 %v138, 4294901760
    %1115 = vmatpush1.msra.mxu0 %v1114
    %1116 = vmatprep.subr.mxu0 0.0
    %v1117 = vand.u32 %v139, 4294901760
    %1118 = vmatpush1.msra.mxu0 %v1117
    %1119 = vmatprep.subr.mxu0 0.0
    %v1120 = vand.u32 %v140, 4294901760
    %1121 = vmatpush1.msra.mxu0 %v1120
    %1122 = vmatprep.subr.mxu0 0.0
    %v1123 = vand.u32 %v141, 4294901760
    %1124 = vmatpush1.msra.mxu0 %v1123
    %1125 = vmatprep.subr.mxu0 0.0
    %v1126 = vand.u32 %v142, 4294901760
    %1127 = vmatpush1.msra.mxu0 %v1126
    %1128 = vmatprep.subr.mxu0 0.0
    %v1129 = vand.u32 %v143, 4294901760
    %1130 = vmatpush1.msra.mxu0 %v1129
    %1131 = vmatprep.subr.mxu0 0.0
    %v1132 = vand.u32 %v144, 4294901760
    %1133 = vmatpush1.msra.mxu0 %v1132
    %1134 = vmatprep.subr.mxu0 0.0
    %v1135 = vand.u32 %v145, 4294901760
    %1136 = vmatpush1.msra.mxu0 %v1135
    %1137 = vmatprep.subr.mxu0 0.0
    %v1138 = vand.u32 %v146, 4294901760
    %1139 = vmatpush1.msra.mxu0 %v1138
    %1140 = vmatprep.subr.mxu0 0.0
    %v1141 = vand.u32 %v147, 4294901760
    %1142 = vmatpush1.msra.mxu0 %v1141
    %1143 = vmatprep.subr.mxu0 0.0
    %v1144 = vand.u32 %v148, 4294901760
    %1145 = vmatpush1.msra.mxu0 %v1144
    %1146 = vmatprep.subr.mxu0 0.0
    %v1147 = vand.u32 %v149, 4294901760
    %1148 = vmatpush1.msra.mxu0 %v1147
    %1149 = vmatprep.subr.mxu0 0.0
    %v1150 = vand.u32 %v150, 4294901760
    %1151 = vmatpush1.msra.mxu0 %v1150
    %1152 = vmatprep.subr.mxu0 0.0
    %v1153 = vand.u32 %v151, 4294901760
    %1154 = vmatpush1.msra.mxu0 %v1153
    %1155 = vmatprep.subr.mxu0 0.0
    %v1156 = vand.u32 %v152, 4294901760
    %1157 = vmatpush1.msra.mxu0 %v1156
    %1158 = vmatprep.subr.mxu0 0.0
    %v1159 = vand.u32 %v153, 4294901760
    %1160 = vmatpush1.msra.mxu0 %v1159
    %1161 = vmatprep.subr.mxu0 0.0
    %v1162 = vand.u32 %v154, 4294901760
    %1163 = vmatpush1.msra.mxu0 %v1162
    %1164 = vmatprep.subr.mxu0 0.0
    %v1165 = vand.u32 %v155, 4294901760
    %1166 = vmatpush1.msra.mxu0 %v1165
    %1167 = vmatprep.subr.mxu0 0.0
    %v1168 = vand.u32 %v156, 4294901760
    %1169 = vmatpush1.msra.mxu0 %v1168
    %1170 = vmatprep.subr.mxu0 0.0
    %v1171 = vand.u32 %v157, 4294901760
    %1172 = vmatpush1.msra.mxu0 %v1171
    %1173 = vmatprep.subr.mxu0 0.0
    %v1174 = vand.u32 %v158, 4294901760
    %1175 = vmatpush1.msra.mxu0 %v1174
    %v1176 = vand.u32 %v100, 4294901760
    %1177 = vmatprep.mubr.f32.mxu0 %v1176
    %v1178 = vand.u32 %v89, 4294901760
    %1179 = vmatmul.mubr.f32.gmra.mrb[0].mxu0 %v1178
    %v1180 = vpop.f32.mrb[0].mxu0
    %v1181 = vadd.f32 %v1056, %v1180
    %v1182 = vpop.f32.mrb[0].mxu0
    %v1183 = vand.u32 %v102, 4294901760
    %1184 = vmatprep.mubr.f32.mxu0 %v1183
    %v1185 = vand.u32 %v79, 4294901760
    %1186 = vmatmul.mubr.f32.gmra.mrb[0].mxu0 %v1185
    %v1187 = vpop.f32.mrb[0].mxu0
    %v1188 = vadd.f32 %v1063, %v1187
    %v1189 = vpop.f32.mrb[0].mxu0
    %v1190 = vand.u32 %v105, 4294901760
    %1191 = vmatprep.mubr.f32.mxu0 %v1190
    %v1192 = vand.u32 %v90, 4294901760
    %1193 = vmatmul.mubr.f32.gmra.mrb[0].mxu0 %v1192
    %v1194 = vpop.f32.mrb[0].mxu0
    %v1195 = vadd.f32 %v1070, %v1194
    %v1196 = vpop.f32.mrb[0].mxu0
    %v1197 = vand.u32 %v107, 4294901760
    %1198 = vmatprep.mubr.f32.mxu0 %v1197
    %v1199 = vand.u32 %v82, 4294901760
    %1200 = vmatmul.mubr.f32.gmra.mrb[0].mxu0 %v1199
    %v1201 = vpop.f32.mrb[0].mxu0
    %v1202 = vadd.f32 %v1077, %v1201
    %v1203 = vpop.f32.mrb[0].mxu0
    %1204 = vdwg.mxu0
    %1205 = vmatprep.subr.mxu0 0.0
    %v1206 = vand.u32 %v159, 4294901760
    %1207 = vmatpush1.msra.mxu0 %v1206
    %1208 = vmatprep.subr.mxu0 0.0
    %v1209 = vand.u32 %v160, 4294901760
    %1210 = vmatpush1.msra.mxu0 %v1209
    %1211 = vmatprep.subr.mxu0 0.0
    %v1212 = vand.u32 %v161, 4294901760
    %1213 = vmatpush1.msra.mxu0 %v1212
    %1214 = vmatprep.subr.mxu0 0.0
    %v1215 = vand.u32 %v162, 4294901760
    %1216 = vmatpush1.msra.mxu0 %v1215
    %1217 = vmatprep.subr.mxu0 0.0
    %v1218 = vand.u32 %v163, 4294901760
    %1219 = vmatpush1.msra.mxu0 %v1218
    %1220 = vmatprep.subr.mxu0 0.0
    %v1221 = vand.u32 %v164, 4294901760
    %1222 = vmatpush1.msra.mxu0 %v1221
    %1223 = vmatprep.subr.mxu0 0.0
    %v1224 = vand.u32 %v165, 4294901760
    %1225 = vmatpush1.msra.mxu0 %v1224
    %1226 = vmatprep.subr.mxu0 0.0
    %v1227 = vand.u32 %v166, 4294901760
    %1228 = vmatpush1.msra.mxu0 %v1227
    %1229 = vmatprep.subr.mxu0 0.0
    %v1230 = vand.u32 %v167, 4294901760
    %1231 = vmatpush1.msra.mxu0 %v1230
    %1232 = vmatprep.subr.mxu0 0.0
    %v1233 = vand.u32 %v168, 4294901760
    %1234 = vmatpush1.msra.mxu0 %v1233
    %1235 = vmatprep.subr.mxu0 0.0
    %v1236 = vand.u32 %v169, 4294901760
    %1237 = vmatpush1.msra.mxu0 %v1236
    %1238 = vmatprep.subr.mxu0 0.0
    %v1239 = vand.u32 %v170, 4294901760
    %1240 = vmatpush1.msra.mxu0 %v1239
    %1241 = vmatprep.subr.mxu0 0.0
    %v1242 = vand.u32 %v171, 4294901760
    %1243 = vmatpush1.msra.mxu0 %v1242
    %1244 = vmatprep.subr.mxu0 0.0
    %v1245 = vand.u32 %v172, 4294901760
    %1246 = vmatpush1.msra.mxu0 %v1245
    %1247 = vmatprep.subr.mxu0 0.0
    %v1248 = vand.u32 %v173, 4294901760
    %1249 = vmatpush1.msra.mxu0 %v1248
    %1250 = vmatprep.subr.mxu0 0.0
    %v1251 = vand.u32 %v174, 4294901760
    %1252 = vmatpush1.msra.mxu0 %v1251
    %1253 = vmatprep.subr.mxu0 0.0
    %1254 = vmatpush1.msra.mxu0 0.0
    %1255 = vmatprep.subr.mxu0 0.0
    %1256 = vmatpush1.msra.mxu0 0.0
    %1257 = vmatprep.subr.mxu0 0.0
    %1258 = vmatpush1.msra.mxu0 0.0
    %1259 = vmatprep.subr.mxu0 0.0
    %1260 = vmatpush1.msra.mxu0 0.0
    %1261 = vmatprep.subr.mxu0 0.0
    %1262 = vmatpush1.msra.mxu0 0.0
    %1263 = vmatprep.subr.mxu0 0.0
    %1264 = vmatpush1.msra.mxu0 0.0
    %1265 = vmatprep.subr.mxu0 0.0
    %1266 = vmatpush1.msra.mxu0 0.0
    %1267 = vmatprep.subr.mxu0 0.0
    %1268 = vmatpush1.msra.mxu0 0.0
    %1269 = vmatprep.subr.mxu0 0.0
    %1270 = vmatpush1.msra.mxu0 0.0
    %1271 = vmatprep.subr.mxu0 0.0
    %1272 = vmatpush1.msra.mxu0 0.0
    %1273 = vmatprep.subr.mxu0 0.0
    %1274 = vmatpush1.msra.mxu0 0.0
    %1275 = vmatprep.subr.mxu0 0.0
    %1276 = vmatpush1.msra.mxu0 0.0
    %1277 = vmatprep.subr.mxu0 0.0
    %1278 = vmatpush1.msra.mxu0 0.0
    %1279 = vmatprep.subr.mxu0 0.0
    %1280 = vmatpush1.msra.mxu0 0.0
    %1281 = vmatprep.subr.mxu0 0.0
    %1282 = vmatpush1.msra.mxu0 0.0
    %1283 = vmatprep.subr.mxu0 0.0
    %1284 = vmatpush1.msra.mxu0 0.0
    %1285 = vmatprep.mubr.f32.mxu0 0.0
    %v1286 = vand.u32 %v115, 4294901760
    %v1287 = vsub.f32 %v115, %v1286
    %v1288 = vand.u32 %v1287, 4294901760
    %v1289 = vsub.f32 %v1287, %v1288
    %v1290 = vand.u32 %v1289, 4294901760
    %1291 = vmatmul.mubr.f32.gmra.mrb[0].mxu0 %v1290
    %v1292 = vpop.f32.mrb[0].mxu0
    %v1293 = vadd.f32 %v1181, %v1292
    %v1294 = vpop.f32.mrb[0].mxu0
    %1295 = vmatprep.mubr.f32.mxu0 0.0
    %v1296 = vand.u32 %v117, 4294901760
    %v1297 = vsub.f32 %v117, %v1296
    %v1298 = vand.u32 %v1297, 4294901760
    %v1299 = vsub.f32 %v1297, %v1298
    %v1300 = vand.u32 %v1299, 4294901760
    %1301 = vmatmul.mubr.f32.gmra.mrb[0].mxu0 %v1300
    %v1302 = vpop.f32.mrb[0].mxu0
    %v1303 = vadd.f32 %v1188, %v1302
    %v1304 = vpop.f32.mrb[0].mxu0
    %1305 = vmatprep.mubr.f32.mxu0 0.0
    %v1306 = vand.u32 %v120, 4294901760
    %v1307 = vsub.f32 %v120, %v1306
    %v1308 = vand.u32 %v1307, 4294901760
    %v1309 = vsub.f32 %v1307, %v1308
    %v1310 = vand.u32 %v1309, 4294901760
    %1311 = vmatmul.mubr.f32.gmra.mrb[0].mxu0 %v1310
    %v1312 = vpop.f32.mrb[0].mxu0
    %v1313 = vadd.f32 %v1195, %v1312
    %v1314 = vpop.f32.mrb[0].mxu0
    %1315 = vmatprep.mubr.f32.mxu0 0.0
    %v1316 = vand.u32 %v122, 4294901760
    %v1317 = vsub.f32 %v122, %v1316
    %v1318 = vand.u32 %v1317, 4294901760
    %v1319 = vsub.f32 %v1317, %v1318
    %v1320 = vand.u32 %v1319, 4294901760
    %1321 = vmatmul.mubr.f32.gmra.mrb[0].mxu0 %v1320
    %v1322 = vpop.f32.mrb[0].mxu0
    %v1323 = vadd.f32 %v1202, %v1322
    %v1324 = vpop.f32.mrb[0].mxu0
    %1325 = vdwg.mxu0
    %1326 = vmatprep.subr.mxu0 0.0
    %v1327 = vand.u32 %v159, 4294901760
    %v1328 = vsub.f32 %v159, %v1327
    %v1329 = vand.u32 %v1328, 4294901760
    %v1330 = vsub.f32 %v1328, %v1329
    %v1331 = vand.u32 %v1330, 4294901760
    %1332 = vmatpush1.msra.mxu0 %v1331
    %1333 = vmatprep.subr.mxu0 0.0
    %v1334 = vand.u32 %v160, 4294901760
    %v1335 = vsub.f32 %v160, %v1334
    %v1336 = vand.u32 %v1335, 4294901760
    %v1337 = vsub.f32 %v1335, %v1336
    %v1338 = vand.u32 %v1337, 4294901760
    %1339 = vmatpush1.msra.mxu0 %v1338
    %1340 = vmatprep.subr.mxu0 0.0
    %v1341 = vand.u32 %v161, 4294901760
    %v1342 = vsub.f32 %v161, %v1341
    %v1343 = vand.u32 %v1342, 4294901760
    %v1344 = vsub.f32 %v1342, %v1343
    %v1345 = vand.u32 %v1344, 4294901760
    %1346 = vmatpush1.msra.mxu0 %v1345
    %1347 = vmatprep.subr.mxu0 0.0
    %v1348 = vand.u32 %v162, 4294901760
    %v1349 = vsub.f32 %v162, %v1348
    %v1350 = vand.u32 %v1349, 4294901760
    %v1351 = vsub.f32 %v1349, %v1350
    %v1352 = vand.u32 %v1351, 4294901760
    %1353 = vmatpush1.msra.mxu0 %v1352
    %1354 = vmatprep.subr.mxu0 0.0
    %v1355 = vand.u32 %v163, 4294901760
    %v1356 = vsub.f32 %v163, %v1355
    %v1357 = vand.u32 %v1356, 4294901760
    %v1358 = vsub.f32 %v1356, %v1357
    %v1359 = vand.u32 %v1358, 4294901760
    %1360 = vmatpush1.msra.mxu0 %v1359
    %1361 = vmatprep.subr.mxu0 0.0
    %v1362 = vand.u32 %v164, 4294901760
    %v1363 = vsub.f32 %v164, %v1362
    %v1364 = vand.u32 %v1363, 4294901760
    %v1365 = vsub.f32 %v1363, %v1364
    %v1366 = vand.u32 %v1365, 4294901760
    %1367 = vmatpush1.msra.mxu0 %v1366
    %1368 = vmatprep.subr.mxu0 0.0
    %v1369 = vand.u32 %v165, 4294901760
    %v1370 = vsub.f32 %v165, %v1369
    %v1371 = vand.u32 %v1370, 4294901760
    %v1372 = vsub.f32 %v1370, %v1371
    %v1373 = vand.u32 %v1372, 4294901760
    %1374 = vmatpush1.msra.mxu0 %v1373
    %1375 = vmatprep.subr.mxu0 0.0
    %v1376 = vand.u32 %v166, 4294901760
    %v1377 = vsub.f32 %v166, %v1376
    %v1378 = vand.u32 %v1377, 4294901760
    %v1379 = vsub.f32 %v1377, %v1378
    %v1380 = vand.u32 %v1379, 4294901760
    %1381 = vmatpush1.msra.mxu0 %v1380
    %1382 = vmatprep.subr.mxu0 0.0
    %v1383 = vand.u32 %v167, 4294901760
    %v1384 = vsub.f32 %v167, %v1383
    %v1385 = vand.u32 %v1384, 4294901760
    %v1386 = vsub.f32 %v1384, %v1385
    %v1387 = vand.u32 %v1386, 4294901760
    %1388 = vmatpush1.msra.mxu0 %v1387
    %1389 = vmatprep.subr.mxu0 0.0
    %v1390 = vand.u32 %v168, 4294901760
    %v1391 = vsub.f32 %v168, %v1390
    %v1392 = vand.u32 %v1391, 4294901760
    %v1393 = vsub.f32 %v1391, %v1392
    %v1394 = vand.u32 %v1393, 4294901760
    %1395 = vmatpush1.msra.mxu0 %v1394
    %1396 = vmatprep.subr.mxu0 0.0
    %v1397 = vand.u32 %v169, 4294901760
    %v1398 = vsub.f32 %v169, %v1397
    %v1399 = vand.u32 %v1398, 4294901760
    %v1400 = vsub.f32 %v1398, %v1399
    %v1401 = vand.u32 %v1400, 4294901760
    %1402 = vmatpush1.msra.mxu0 %v1401
    %1403 = vmatprep.subr.mxu0 0.0
    %v1404 = vand.u32 %v170, 4294901760
    %v1405 = vsub.f32 %v170, %v1404
    %v1406 = vand.u32 %v1405, 4294901760
    %v1407 = vsub.f32 %v1405, %v1406
    %v1408 = vand.u32 %v1407, 4294901760
    %1409 = vmatpush1.msra.mxu0 %v1408
    %1410 = vmatprep.subr.mxu0 0.0
    %v1411 = vand.u32 %v171, 4294901760
    %v1412 = vsub.f32 %v171, %v1411
    %v1413 = vand.u32 %v1412, 4294901760
    %v1414 = vsub.f32 %v1412, %v1413
    %v1415 = vand.u32 %v1414, 4294901760
    %1416 = vmatpush1.msra.mxu0 %v1415
    %1417 = vmatprep.subr.mxu0 0.0
    %v1418 = vand.u32 %v172, 4294901760
    %v1419 = vsub.f32 %v172, %v1418
    %v1420 = vand.u32 %v1419, 4294901760
    %v1421 = vsub.f32 %v1419, %v1420
    %v1422 = vand.u32 %v1421, 4294901760
    %1423 = vmatpush1.msra.mxu0 %v1422
    %1424 = vmatprep.subr.mxu0 0.0
    %v1425 = vand.u32 %v173, 4294901760
    %v1426 = vsub.f32 %v173, %v1425
    %v1427 = vand.u32 %v1426, 4294901760
    %v1428 = vsub.f32 %v1426, %v1427
    %v1429 = vand.u32 %v1428, 4294901760
    %1430 = vmatpush1.msra.mxu0 %v1429
    %1431 = vmatprep.subr.mxu0 0.0
    %v1432 = vand.u32 %v174, 4294901760
    %v1433 = vsub.f32 %v174, %v1432
    %v1434 = vand.u32 %v1433, 4294901760
    %v1435 = vsub.f32 %v1433, %v1434
    %v1436 = vand.u32 %v1435, 4294901760
    %1437 = vmatpush1.msra.mxu0 %v1436
    %1438 = vmatprep.subr.mxu0 0.0
    %1439 = vmatpush1.msra.mxu0 0.0
    %1440 = vmatprep.subr.mxu0 0.0
    %1441 = vmatpush1.msra.mxu0 0.0
    %1442 = vmatprep.subr.mxu0 0.0
    %1443 = vmatpush1.msra.mxu0 0.0
    %1444 = vmatprep.subr.mxu0 0.0
    %1445 = vmatpush1.msra.mxu0 0.0
    %1446 = vmatprep.subr.mxu0 0.0
    %1447 = vmatpush1.msra.mxu0 0.0
    %1448 = vmatprep.subr.mxu0 0.0
    %1449 = vmatpush1.msra.mxu0 0.0
    %1450 = vmatprep.subr.mxu0 0.0
    %1451 = vmatpush1.msra.mxu0 0.0
    %1452 = vmatprep.subr.mxu0 0.0
    %1453 = vmatpush1.msra.mxu0 0.0
    %1454 = vmatprep.subr.mxu0 0.0
    %1455 = vmatpush1.msra.mxu0 0.0
    %1456 = vmatprep.subr.mxu0 0.0
    %1457 = vmatpush1.msra.mxu0 0.0
    %1458 = vmatprep.subr.mxu0 0.0
    %1459 = vmatpush1.msra.mxu0 0.0
    %1460 = vmatprep.subr.mxu0 0.0
    %1461 = vmatpush1.msra.mxu0 0.0
    %1462 = vmatprep.subr.mxu0 0.0
    %1463 = vmatpush1.msra.mxu0 0.0
    %1464 = vmatprep.subr.mxu0 0.0
    %1465 = vmatpush1.msra.mxu0 0.0
    %1466 = vmatprep.subr.mxu0 0.0
    %1467 = vmatpush1.msra.mxu0 0.0
    %1468 = vmatprep.subr.mxu0 0.0
    %1469 = vmatpush1.msra.mxu0 0.0
    %1470 = vmatprep.mubr.f32.mxu0 0.0
    %v1471 = vand.u32 %v115, 4294901760
    %1472 = vmatmul.mubr.f32.gmra.mrb[0].mxu0 %v1471
    %v1473 = vpop.f32.mrb[0].mxu0
    %v1474 = vadd.f32 %v1293, %v1473
    %v1475 = vpop.f32.mrb[0].mxu0
    %1476 = vmatprep.mubr.f32.mxu0 0.0
    %v1477 = vand.u32 %v117, 4294901760
    %1478 = vmatmul.mubr.f32.gmra.mrb[0].mxu0 %v1477
    %v1479 = vpop.f32.mrb[0].mxu0
    %v1480 = vadd.f32 %v1303, %v1479
    %v1481 = vpop.f32.mrb[0].mxu0
    %1482 = vmatprep.mubr.f32.mxu0 0.0
    %v1483 = vand.u32 %v120, 4294901760
    %1484 = vmatmul.mubr.f32.gmra.mrb[0].mxu0 %v1483
    %v1485 = vpop.f32.mrb[0].mxu0
    %v1486 = vadd.f32 %v1313, %v1485
    %v1487 = vpop.f32.mrb[0].mxu0
    %1488 = vmatprep.mubr.f32.mxu0 0.0
    %v1489 = vand.u32 %v122, 4294901760
    %1490 = vmatmul.mubr.f32.gmra.mrb[0].mxu0 %v1489
    %v1491 = vpop.f32.mrb[0].mxu0
    %v1492 = vadd.f32 %v1323, %v1491
    %v1493 = vpop.f32.mrb[0].mxu0
    %1494 = vdwg.mxu0
    %1495 = vmatprep.subr.mxu0 0.0
    %v1496 = vand.u32 %v159, 4294901760
    %v1497 = vsub.f32 %v159, %v1496
    %1498 = vmatpush1.msra.mxu0 %v1497
    %1499 = vmatprep.subr.mxu0 0.0
    %v1500 = vand.u32 %v160, 4294901760
    %v1501 = vsub.f32 %v160, %v1500
    %1502 = vmatpush1.msra.mxu0 %v1501
    %1503 = vmatprep.subr.mxu0 0.0
    %v1504 = vand.u32 %v161, 4294901760
    %v1505 = vsub.f32 %v161, %v1504
    %1506 = vmatpush1.msra.mxu0 %v1505
    %1507 = vmatprep.subr.mxu0 0.0
    %v1508 = vand.u32 %v162, 4294901760
    %v1509 = vsub.f32 %v162, %v1508
    %1510 = vmatpush1.msra.mxu0 %v1509
    %1511 = vmatprep.subr.mxu0 0.0
    %v1512 = vand.u32 %v163, 4294901760
    %v1513 = vsub.f32 %v163, %v1512
    %1514 = vmatpush1.msra.mxu0 %v1513
    %1515 = vmatprep.subr.mxu0 0.0
    %v1516 = vand.u32 %v164, 4294901760
    %v1517 = vsub.f32 %v164, %v1516
    %1518 = vmatpush1.msra.mxu0 %v1517
    %1519 = vmatprep.subr.mxu0 0.0
    %v1520 = vand.u32 %v165, 4294901760
    %v1521 = vsub.f32 %v165, %v1520
    %1522 = vmatpush1.msra.mxu0 %v1521
    %1523 = vmatprep.subr.mxu0 0.0
    %v1524 = vand.u32 %v166, 4294901760
    %v1525 = vsub.f32 %v166, %v1524
    %1526 = vmatpush1.msra.mxu0 %v1525
    %1527 = vmatprep.subr.mxu0 0.0
    %v1528 = vand.u32 %v167, 4294901760
    %v1529 = vsub.f32 %v167, %v1528
    %1530 = vmatpush1.msra.mxu0 %v1529
    %1531 = vmatprep.subr.mxu0 0.0
    %v1532 = vand.u32 %v168, 4294901760
    %v1533 = vsub.f32 %v168, %v1532
    %1534 = vmatpush1.msra.mxu0 %v1533
    %1535 = vmatprep.subr.mxu0 0.0
    %v1536 = vand.u32 %v169, 4294901760
    %v1537 = vsub.f32 %v169, %v1536
    %1538 = vmatpush1.msra.mxu0 %v1537
    %1539 = vmatprep.subr.mxu0 0.0
    %v1540 = vand.u32 %v170, 4294901760
    %v1541 = vsub.f32 %v170, %v1540
    %1542 = vmatpush1.msra.mxu0 %v1541
    %1543 = vmatprep.subr.mxu0 0.0
    %v1544 = vand.u32 %v171, 4294901760
    %v1545 = vsub.f32 %v171, %v1544
    %1546 = vmatpush1.msra.mxu0 %v1545
    %1547 = vmatprep.subr.mxu0 0.0
    %v1548 = vand.u32 %v172, 4294901760
    %v1549 = vsub.f32 %v172, %v1548
    %1550 = vmatpush1.msra.mxu0 %v1549
    %1551 = vmatprep.subr.mxu0 0.0
    %v1552 = vand.u32 %v173, 4294901760
    %v1553 = vsub.f32 %v173, %v1552
    %1554 = vmatpush1.msra.mxu0 %v1553
    %1555 = vmatprep.subr.mxu0 0.0
    %v1556 = vand.u32 %v174, 4294901760
    %v1557 = vsub.f32 %v174, %v1556
    %1558 = vmatpush1.msra.mxu0 %v1557
    %1559 = vmatprep.subr.mxu0 0.0
    %1560 = vmatpush1.msra.mxu0 0.0
    %1561 = vmatprep.subr.mxu0 0.0
    %1562 = vmatpush1.msra.mxu0 0.0
    %1563 = vmatprep.subr.mxu0 0.0
    %1564 = vmatpush1.msra.mxu0 0.0
    %1565 = vmatprep.subr.mxu0 0.0
    %1566 = vmatpush1.msra.mxu0 0.0
    %1567 = vmatprep.subr.mxu0 0.0
    %1568 = vmatpush1.msra.mxu0 0.0
    %1569 = vmatprep.subr.mxu0 0.0
    %1570 = vmatpush1.msra.mxu0 0.0
    %1571 = vmatprep.subr.mxu0 0.0
    %1572 = vmatpush1.msra.mxu0 0.0
    %1573 = vmatprep.subr.mxu0 0.0
    %1574 = vmatpush1.msra.mxu0 0.0
    %1575 = vmatprep.subr.mxu0 0.0
    %1576 = vmatpush1.msra.mxu0 0.0
    %1577 = vmatprep.subr.mxu0 0.0
    %1578 = vmatpush1.msra.mxu0 0.0
    %1579 = vmatprep.subr.mxu0 0.0
    %1580 = vmatpush1.msra.mxu0 0.0
    %1581 = vmatprep.subr.mxu0 0.0
    %1582 = vmatpush1.msra.mxu0 0.0
    %1583 = vmatprep.subr.mxu0 0.0
    %1584 = vmatpush1.msra.mxu0 0.0
    %1585 = vmatprep.subr.mxu0 0.0
    %1586 = vmatpush1.msra.mxu0 0.0
    %1587 = vmatprep.subr.mxu0 0.0
    %1588 = vmatpush1.msra.mxu0 0.0
    %1589 = vmatprep.subr.mxu0 0.0
    %1590 = vmatpush1.msra.mxu0 0.0
    %1591 = vmatprep.mubr.f32.mxu0 0.0
    %v1592 = vand.u32 %v115, 4294901760
    %v1593 = vsub.f32 %v115, %v1592
    %1594 = vmatmul.mubr.f32.gmra.mrb[0].mxu0 %v1593
    %v1595 = vpop.f32.mrb[0].mxu0
    %v1596 = vadd.f32 %v1474, %v1595
    %v1597 = vpop.f32.mrb[0].mxu0
    %1598 = vmatprep.mubr.f32.mxu0 0.0
    %v1599 = vand.u32 %v117, 4294901760
    %v1600 = vsub.f32 %v117, %v1599
    %1601 = vmatmul.mubr.f32.gmra.mrb[0].mxu0 %v1600
    %v1602 = vpop.f32.mrb[0].mxu0
    %v1603 = vadd.f32 %v1480, %v1602
    %v1604 = vpop.f32.mrb[0].mxu0
    %1605 = vmatprep.mubr.f32.mxu0 0.0
    %v1606 = vand.u32 %v120, 4294901760
    %v1607 = vsub.f32 %v120, %v1606
    %1608 = vmatmul.mubr.f32.gmra.mrb[0].mxu0 %v1607
    %v1609 = vpop.f32.mrb[0].mxu0
    %v1610 = vadd.f32 %v1486, %v1609
    %v1611 = vpop.f32.mrb[0].mxu0
    %1612 = vmatprep.mubr.f32.mxu0 0.0
    %v1613 = vand.u32 %v122, 4294901760
    %v1614 = vsub.f32 %v122, %v1613
    %1615 = vmatmul.mubr.f32.gmra.mrb[0].mxu0 %v1614
    %v1616 = vpop.f32.mrb[0].mxu0
    %v1617 = vadd.f32 %v1492, %v1616
    %v1618 = vpop.f32.mrb[0].mxu0
    %1619 = vdwg.mxu0
    %1620 = vmatprep.subr.mxu0 0.0
    %v1621 = vand.u32 %v159, 4294901760
    %1622 = vmatpush1.msra.mxu0 %v1621
    %1623 = vmatprep.subr.mxu0 0.0
    %v1624 = vand.u32 %v160, 4294901760
    %1625 = vmatpush1.msra.mxu0 %v1624
    %1626 = vmatprep.subr.mxu0 0.0
    %v1627 = vand.u32 %v161, 4294901760
    %1628 = vmatpush1.msra.mxu0 %v1627
    %1629 = vmatprep.subr.mxu0 0.0
    %v1630 = vand.u32 %v162, 4294901760
    %1631 = vmatpush1.msra.mxu0 %v1630
    %1632 = vmatprep.subr.mxu0 0.0
    %v1633 = vand.u32 %v163, 4294901760
    %1634 = vmatpush1.msra.mxu0 %v1633
    %1635 = vmatprep.subr.mxu0 0.0
    %v1636 = vand.u32 %v164, 4294901760
    %1637 = vmatpush1.msra.mxu0 %v1636
    %1638 = vmatprep.subr.mxu0 0.0
    %v1639 = vand.u32 %v165, 4294901760
    %1640 = vmatpush1.msra.mxu0 %v1639
    %1641 = vmatprep.subr.mxu0 0.0
    %v1642 = vand.u32 %v166, 4294901760
    %1643 = vmatpush1.msra.mxu0 %v1642
    %1644 = vmatprep.subr.mxu0 0.0
    %v1645 = vand.u32 %v167, 4294901760
    %1646 = vmatpush1.msra.mxu0 %v1645
    %1647 = vmatprep.subr.mxu0 0.0
    %v1648 = vand.u32 %v168, 4294901760
    %1649 = vmatpush1.msra.mxu0 %v1648
    %1650 = vmatprep.subr.mxu0 0.0
    %v1651 = vand.u32 %v169, 4294901760
    %1652 = vmatpush1.msra.mxu0 %v1651
    %1653 = vmatprep.subr.mxu0 0.0
    %v1654 = vand.u32 %v170, 4294901760
    %1655 = vmatpush1.msra.mxu0 %v1654
    %1656 = vmatprep.subr.mxu0 0.0
    %v1657 = vand.u32 %v171, 4294901760
    %1658 = vmatpush1.msra.mxu0 %v1657
    %1659 = vmatprep.subr.mxu0 0.0
    %v1660 = vand.u32 %v172, 4294901760
    %1661 = vmatpush1.msra.mxu0 %v1660
    %1662 = vmatprep.subr.mxu0 0.0
    %v1663 = vand.u32 %v173, 4294901760
    %1664 = vmatpush1.msra.mxu0 %v1663
    %1665 = vmatprep.subr.mxu0 0.0
    %v1666 = vand.u32 %v174, 4294901760
    %1667 = vmatpush1.msra.mxu0 %v1666
    %1668 = vmatprep.subr.mxu0 0.0
    %1669 = vmatpush1.msra.mxu0 0.0
    %1670 = vmatprep.subr.mxu0 0.0
    %1671 = vmatpush1.msra.mxu0 0.0
    %1672 = vmatprep.subr.mxu0 0.0
    %1673 = vmatpush1.msra.mxu0 0.0
    %1674 = vmatprep.subr.mxu0 0.0
    %1675 = vmatpush1.msra.mxu0 0.0
    %1676 = vmatprep.subr.mxu0 0.0
    %1677 = vmatpush1.msra.mxu0 0.0
    %1678 = vmatprep.subr.mxu0 0.0
    %1679 = vmatpush1.msra.mxu0 0.0
    %1680 = vmatprep.subr.mxu0 0.0
    %1681 = vmatpush1.msra.mxu0 0.0
    %1682 = vmatprep.subr.mxu0 0.0
    %1683 = vmatpush1.msra.mxu0 0.0
    %1684 = vmatprep.subr.mxu0 0.0
    %1685 = vmatpush1.msra.mxu0 0.0
    %1686 = vmatprep.subr.mxu0 0.0
    %1687 = vmatpush1.msra.mxu0 0.0
    %1688 = vmatprep.subr.mxu0 0.0
    %1689 = vmatpush1.msra.mxu0 0.0
    %1690 = vmatprep.subr.mxu0 0.0
    %1691 = vmatpush1.msra.mxu0 0.0
    %1692 = vmatprep.subr.mxu0 0.0
    %1693 = vmatpush1.msra.mxu0 0.0
    %1694 = vmatprep.subr.mxu0 0.0
    %1695 = vmatpush1.msra.mxu0 0.0
    %1696 = vmatprep.subr.mxu0 0.0
    %1697 = vmatpush1.msra.mxu0 0.0
    %1698 = vmatprep.subr.mxu0 0.0
    %1699 = vmatpush1.msra.mxu0 0.0
    %1700 = vmatprep.mubr.f32.mxu0 0.0
    %v1701 = vand.u32 %v115, 4294901760
    %v1702 = vsub.f32 %v115, %v1701
    %v1703 = vand.u32 %v1702, 4294901760
    %1704 = vmatmul.mubr.f32.gmra.mrb[0].mxu0 %v1703
    %v1705 = vpop.f32.mrb[0].mxu0
    %v1706 = vadd.f32 %v1596, %v1705
    %v1707 = vpop.f32.mrb[0].mxu0
    %1708 = vmatprep.mubr.f32.mxu0 0.0
    %v1709 = vand.u32 %v117, 4294901760
    %v1710 = vsub.f32 %v117, %v1709
    %v1711 = vand.u32 %v1710, 4294901760
    %1712 = vmatmul.mubr.f32.gmra.mrb[0].mxu0 %v1711
    %v1713 = vpop.f32.mrb[0].mxu0
    %v1714 = vadd.f32 %v1603, %v1713
    %v1715 = vpop.f32.mrb[0].mxu0
    %1716 = vmatprep.mubr.f32.mxu0 0.0
    %v1717 = vand.u32 %v120, 4294901760
    %v1718 = vsub.f32 %v120, %v1717
    %v1719 = vand.u32 %v1718, 4294901760
    %1720 = vmatmul.mubr.f32.gmra.mrb[0].mxu0 %v1719
    %v1721 = vpop.f32.mrb[0].mxu0
    %v1722 = vadd.f32 %v1610, %v1721
    %v1723 = vpop.f32.mrb[0].mxu0
    %1724 = vmatprep.mubr.f32.mxu0 0.0
    %v1725 = vand.u32 %v122, 4294901760
    %v1726 = vsub.f32 %v122, %v1725
    %v1727 = vand.u32 %v1726, 4294901760
    %1728 = vmatmul.mubr.f32.gmra.mrb[0].mxu0 %v1727
    %v1729 = vpop.f32.mrb[0].mxu0
    %v1730 = vadd.f32 %v1617, %v1729
    %v1731 = vpop.f32.mrb[0].mxu0
    %1732 = vdwg.mxu0
    %1733 = vmatprep.subr.mxu0 0.0
    %v1734 = vand.u32 %v159, 4294901760
    %v1735 = vsub.f32 %v159, %v1734
    %v1736 = vand.u32 %v1735, 4294901760
    %1737 = vmatpush1.msra.mxu0 %v1736
    %1738 = vmatprep.subr.mxu0 0.0
    %v1739 = vand.u32 %v160, 4294901760
    %v1740 = vsub.f32 %v160, %v1739
    %v1741 = vand.u32 %v1740, 4294901760
    %1742 = vmatpush1.msra.mxu0 %v1741
    %1743 = vmatprep.subr.mxu0 0.0
    %v1744 = vand.u32 %v161, 4294901760
    %v1745 = vsub.f32 %v161, %v1744
    %v1746 = vand.u32 %v1745, 4294901760
    %1747 = vmatpush1.msra.mxu0 %v1746
    %1748 = vmatprep.subr.mxu0 0.0
    %v1749 = vand.u32 %v162, 4294901760
    %v1750 = vsub.f32 %v162, %v1749
    %v1751 = vand.u32 %v1750, 4294901760
    %1752 = vmatpush1.msra.mxu0 %v1751
    %1753 = vmatprep.subr.mxu0 0.0
    %v1754 = vand.u32 %v163, 4294901760
    %v1755 = vsub.f32 %v163, %v1754
    %v1756 = vand.u32 %v1755, 4294901760
    %1757 = vmatpush1.msra.mxu0 %v1756
    %1758 = vmatprep.subr.mxu0 0.0
    %v1759 = vand.u32 %v164, 4294901760
    %v1760 = vsub.f32 %v164, %v1759
    %v1761 = vand.u32 %v1760, 4294901760
    %1762 = vmatpush1.msra.mxu0 %v1761
    %1763 = vmatprep.subr.mxu0 0.0
    %v1764 = vand.u32 %v165, 4294901760
    %v1765 = vsub.f32 %v165, %v1764
    %v1766 = vand.u32 %v1765, 4294901760
    %1767 = vmatpush1.msra.mxu0 %v1766
    %1768 = vmatprep.subr.mxu0 0.0
    %v1769 = vand.u32 %v166, 4294901760
    %v1770 = vsub.f32 %v166, %v1769
    %v1771 = vand.u32 %v1770, 4294901760
    %1772 = vmatpush1.msra.mxu0 %v1771
    %1773 = vmatprep.subr.mxu0 0.0
    %v1774 = vand.u32 %v167, 4294901760
    %v1775 = vsub.f32 %v167, %v1774
    %v1776 = vand.u32 %v1775, 4294901760
    %1777 = vmatpush1.msra.mxu0 %v1776
    %1778 = vmatprep.subr.mxu0 0.0
    %v1779 = vand.u32 %v168, 4294901760
    %v1780 = vsub.f32 %v168, %v1779
    %v1781 = vand.u32 %v1780, 4294901760
    %1782 = vmatpush1.msra.mxu0 %v1781
    %1783 = vmatprep.subr.mxu0 0.0
    %v1784 = vand.u32 %v169, 4294901760
    %v1785 = vsub.f32 %v169, %v1784
    %v1786 = vand.u32 %v1785, 4294901760
    %1787 = vmatpush1.msra.mxu0 %v1786
    %1788 = vmatprep.subr.mxu0 0.0
    %v1789 = vand.u32 %v170, 4294901760
    %v1790 = vsub.f32 %v170, %v1789
    %v1791 = vand.u32 %v1790, 4294901760
    %1792 = vmatpush1.msra.mxu0 %v1791
    %1793 = vmatprep.subr.mxu0 0.0
    %v1794 = vand.u32 %v171, 4294901760
    %v1795 = vsub.f32 %v171, %v1794
    %v1796 = vand.u32 %v1795, 4294901760
    %1797 = vmatpush1.msra.mxu0 %v1796
    %1798 = vmatprep.subr.mxu0 0.0
    %v1799 = vand.u32 %v172, 4294901760
    %v1800 = vsub.f32 %v172, %v1799
    %v1801 = vand.u32 %v1800, 4294901760
    %1802 = vmatpush1.msra.mxu0 %v1801
    %1803 = vmatprep.subr.mxu0 0.0
    %v1804 = vand.u32 %v173, 4294901760
    %v1805 = vsub.f32 %v173, %v1804
    %v1806 = vand.u32 %v1805, 4294901760
    %1807 = vmatpush1.msra.mxu0 %v1806
    %1808 = vmatprep.subr.mxu0 0.0
    %v1809 = vand.u32 %v174, 4294901760
    %v1810 = vsub.f32 %v174, %v1809
    %v1811 = vand.u32 %v1810, 4294901760
    %1812 = vmatpush1.msra.mxu0 %v1811
    %1813 = vmatprep.subr.mxu0 0.0
    %1814 = vmatpush1.msra.mxu0 0.0
    %1815 = vmatprep.subr.mxu0 0.0
    %1816 = vmatpush1.msra.mxu0 0.0
    %1817 = vmatprep.subr.mxu0 0.0
    %1818 = vmatpush1.msra.mxu0 0.0
    %1819 = vmatprep.subr.mxu0 0.0
    %1820 = vmatpush1.msra.mxu0 0.0
    %1821 = vmatprep.subr.mxu0 0.0
    %1822 = vmatpush1.msra.mxu0 0.0
    %1823 = vmatprep.subr.mxu0 0.0
    %1824 = vmatpush1.msra.mxu0 0.0
    %1825 = vmatprep.subr.mxu0 0.0
    %1826 = vmatpush1.msra.mxu0 0.0
    %1827 = vmatprep.subr.mxu0 0.0
    %1828 = vmatpush1.msra.mxu0 0.0
    %1829 = vmatprep.subr.mxu0 0.0
    %1830 = vmatpush1.msra.mxu0 0.0
    %1831 = vmatprep.subr.mxu0 0.0
    %1832 = vmatpush1.msra.mxu0 0.0
    %1833 = vmatprep.subr.mxu0 0.0
    %1834 = vmatpush1.msra.mxu0 0.0
    %1835 = vmatprep.subr.mxu0 0.0
    %1836 = vmatpush1.msra.mxu0 0.0
    %1837 = vmatprep.subr.mxu0 0.0
    %1838 = vmatpush1.msra.mxu0 0.0
    %1839 = vmatprep.subr.mxu0 0.0
    %1840 = vmatpush1.msra.mxu0 0.0
    %1841 = vmatprep.subr.mxu0 0.0
    %1842 = vmatpush1.msra.mxu0 0.0
    %1843 = vmatprep.subr.mxu0 0.0
    %1844 = vmatpush1.msra.mxu0 0.0
    %1845 = vmatprep.mubr.f32.mxu0 0.0
    %v1846 = vand.u32 %v115, 4294901760
    %1847 = vmatmul.mubr.f32.gmra.mrb[0].mxu0 %v1846
    %v1848 = vpop.f32.mrb[0].mxu0
    %v1849 = vadd.f32 %v1706, %v1848
    %v1850 = vpop.f32.mrb[0].mxu0
    %1851 = vmatprep.mubr.f32.mxu0 0.0
    %v1852 = vand.u32 %v117, 4294901760
    %1853 = vmatmul.mubr.f32.gmra.mrb[0].mxu0 %v1852
    %v1854 = vpop.f32.mrb[0].mxu0
    %v1855 = vadd.f32 %v1714, %v1854
    %v1856 = vpop.f32.mrb[0].mxu0
    %1857 = vmatprep.mubr.f32.mxu0 0.0
    %v1858 = vand.u32 %v120, 4294901760
    %1859 = vmatmul.mubr.f32.gmra.mrb[0].mxu0 %v1858
    %v1860 = vpop.f32.mrb[0].mxu0
    %v1861 = vadd.f32 %v1722, %v1860
    %v1862 = vpop.f32.mrb[0].mxu0
    %1863 = vmatprep.mubr.f32.mxu0 0.0
    %v1864 = vand.u32 %v122, 4294901760
    %1865 = vmatmul.mubr.f32.gmra.mrb[0].mxu0 %v1864
    %v1866 = vpop.f32.mrb[0].mxu0
    %v1867 = vadd.f32 %v1730, %v1866
    %v1868 = vpop.f32.mrb[0].mxu0
    %1869 = vdwg.mxu0
    %1870 = vmatprep.subr.mxu0 0.0
    %v1871 = vand.u32 %v159, 4294901760
    %1872 = vmatpush1.msra.mxu0 %v1871
    %1873 = vmatprep.subr.mxu0 0.0
    %v1874 = vand.u32 %v160, 4294901760
    %1875 = vmatpush1.msra.mxu0 %v1874
    %1876 = vmatprep.subr.mxu0 0.0
    %v1877 = vand.u32 %v161, 4294901760
    %1878 = vmatpush1.msra.mxu0 %v1877
    %1879 = vmatprep.subr.mxu0 0.0
    %v1880 = vand.u32 %v162, 4294901760
    %1881 = vmatpush1.msra.mxu0 %v1880
    %1882 = vmatprep.subr.mxu0 0.0
    %v1883 = vand.u32 %v163, 4294901760
    %1884 = vmatpush1.msra.mxu0 %v1883
    %1885 = vmatprep.subr.mxu0 0.0
    %v1886 = vand.u32 %v164, 4294901760
    %1887 = vmatpush1.msra.mxu0 %v1886
    %1888 = vmatprep.subr.mxu0 0.0
    %v1889 = vand.u32 %v165, 4294901760
    %1890 = vmatpush1.msra.mxu0 %v1889
    %1891 = vmatprep.subr.mxu0 0.0
    %v1892 = vand.u32 %v166, 4294901760
    %1893 = vmatpush1.msra.mxu0 %v1892
    %1894 = vmatprep.subr.mxu0 0.0
    %v1895 = vand.u32 %v167, 4294901760
    %1896 = vmatpush1.msra.mxu0 %v1895
    %1897 = vmatprep.subr.mxu0 0.0
    %v1898 = vand.u32 %v168, 4294901760
    %1899 = vmatpush1.msra.mxu0 %v1898
    %1900 = vmatprep.subr.mxu0 0.0
    %v1901 = vand.u32 %v169, 4294901760
    %1902 = vmatpush1.msra.mxu0 %v1901
    %1903 = vmatprep.subr.mxu0 0.0
    %v1904 = vand.u32 %v170, 4294901760
    %1905 = vmatpush1.msra.mxu0 %v1904
    %1906 = vmatprep.subr.mxu0 0.0
    %v1907 = vand.u32 %v171, 4294901760
    %1908 = vmatpush1.msra.mxu0 %v1907
    %1909 = vmatprep.subr.mxu0 0.0
    %v1910 = vand.u32 %v172, 4294901760
    %1911 = vmatpush1.msra.mxu0 %v1910
    %1912 = vmatprep.subr.mxu0 0.0
    %v1913 = vand.u32 %v173, 4294901760
    %1914 = vmatpush1.msra.mxu0 %v1913
    %1915 = vmatprep.subr.mxu0 0.0
    %v1916 = vand.u32 %v174, 4294901760
    %1917 = vmatpush1.msra.mxu0 %v1916
    %1918 = vmatprep.subr.mxu0 0.0
    %1919 = vmatpush1.msra.mxu0 0.0
    %1920 = vmatprep.subr.mxu0 0.0
    %1921 = vmatpush1.msra.mxu0 0.0
    %1922 = vmatprep.subr.mxu0 0.0
    %1923 = vmatpush1.msra.mxu0 0.0
    %1924 = vmatprep.subr.mxu0 0.0
    %1925 = vmatpush1.msra.mxu0 0.0
    %1926 = vmatprep.subr.mxu0 0.0
    %1927 = vmatpush1.msra.mxu0 0.0
    %1928 = vmatprep.subr.mxu0 0.0
    %1929 = vmatpush1.msra.mxu0 0.0
    %1930 = vmatprep.subr.mxu0 0.0
    %1931 = vmatpush1.msra.mxu0 0.0
    %1932 = vmatprep.subr.mxu0 0.0
    %1933 = vmatpush1.msra.mxu0 0.0
    %1934 = vmatprep.subr.mxu0 0.0
    %1935 = vmatpush1.msra.mxu0 0.0
    %1936 = vmatprep.subr.mxu0 0.0
    %1937 = vmatpush1.msra.mxu0 0.0
    %1938 = vmatprep.subr.mxu0 0.0
    %1939 = vmatpush1.msra.mxu0 0.0
    %1940 = vmatprep.subr.mxu0 0.0
    %1941 = vmatpush1.msra.mxu0 0.0
    %1942 = vmatprep.subr.mxu0 0.0
    %1943 = vmatpush1.msra.mxu0 0.0
    %1944 = vmatprep.subr.mxu0 0.0
    %1945 = vmatpush1.msra.mxu0 0.0
    %1946 = vmatprep.subr.mxu0 0.0
    %1947 = vmatpush1.msra.mxu0 0.0
    %1948 = vmatprep.subr.mxu0 0.0
    %1949 = vmatpush1.msra.mxu0 0.0
    %1950 = vmatprep.mubr.f32.mxu0 0.0
    %v1951 = vand.u32 %v115, 4294901760
    %1952 = vmatmul.mubr.f32.gmra.mrb[0].mxu0 %v1951
    %v1953 = vpop.f32.mrb[0].mxu0
    %v1954 = vadd.f32 %v1849, %v1953
    %v1955 = vpop.f32.mrb[0].mxu0
    %1956 = vmatprep.mubr.f32.mxu0 0.0
    %v1957 = vand.u32 %v117, 4294901760
    %1958 = vmatmul.mubr.f32.gmra.mrb[0].mxu0 %v1957
    %v1959 = vpop.f32.mrb[0].mxu0
    %v1960 = vadd.f32 %v1855, %v1959
    %v1961 = vpop.f32.mrb[0].mxu0
    %1962 = vmatprep.mubr.f32.mxu0 0.0
    %v1963 = vand.u32 %v120, 4294901760
    %1964 = vmatmul.mubr.f32.gmra.mrb[0].mxu0 %v1963
    %v1965 = vpop.f32.mrb[0].mxu0
    %v1966 = vadd.f32 %v1861, %v1965
    %v1967 = vpop.f32.mrb[0].mxu0
    %1968 = vmatprep.mubr.f32.mxu0 0.0
    %v1969 = vand.u32 %v122, 4294901760
    %1970 = vmatmul.mubr.f32.gmra.mrb[0].mxu0 %v1969
    %v1971 = vpop.f32.mrb[0].mxu0
    %v1972 = vadd.f32 %v1867, %v1971
    %v1973 = vpop.f32.mrb[0].mxu0
    %1974 = vdwg.mxu0
    %v1975 = vld [vmem:[%s2] sm:$0x1]
    %v1977 = vlaneseq
    %v1978 = vshrl.u32 %v1977, 7
    %v1979 = vsub.s32 0, %v1978
    %v1980 = vrot.slane %v1975, %v1979
    %v1982 = vmul.f32 %v1954, %v1980
    %v1983 = vmul.f32 %v1960, %v1980
    %v1984 = vmul.f32 %v1966, %v1980
    %v1985 = vmul.f32 %v1972, %v1980
    %v1986 = vld [vmem:[%s3] sm:$0x1]
    %v1988 = vlaneseq
    %v1989 = vshrl.u32 %v1988, 7
    %v1990 = vsub.s32 0, %v1989
    %v1991 = vrot.slane %v1986, %v1990
    %v1993 = vadd.f32 %v1982, %v1991
    %v1994 = vadd.f32 %v1983, %v1991
    %v1995 = vadd.f32 %v1984, %v1991
    %v1996 = vadd.f32 %v1985, %v1991
    %v1997 = vmul.f32 %v1993, 0.5
    %v1998 = vmul.f32 %v1994, 0.5
    %v1999 = vmul.f32 %v1995, 0.5
    %v2000 = vmul.f32 %v1996, 0.5
    %v2001 = vmul.f32 %v1993, 0.70710677
    %v2002 = vmul.f32 %v1994, 0.70710677
    %v2003 = vmul.f32 %v1995, 0.70710677
    %v2004 = vmul.f32 %v1996, 0.70710677
    %v2005 = verf.f32.pop %v2001
    %v2006 = verf.f32.pop %v2002
    %v2007 = verf.f32.pop %v2003
    %v2008 = verf.f32.pop %v2004
    %v2009 = vadd.f32 %v2005, 1.0
    %v2010 = vadd.f32 %v2006, 1.0
    %v2011 = vadd.f32 %v2007, 1.0
    %v2012 = vadd.f32 %v2008, 1.0
    %v2013 = vmul.f32 %v1997, %v2009
    %v2014 = vmul.f32 %v1998, %v2010
    %v2015 = vmul.f32 %v1999, %v2011
    %v2016 = vmul.f32 %v2000, %v2012
    %v2021 = vrot.slane %v2013, 7
    %v2022 = vrot.slane %v2014, 7
    %v2023 = vsel %vm76, %v2021, %v2022
    %v2024 = vrot.slane %v2015, 7
    %v2025 = vrot.slane %v2016, 7
    %v2026 = vsel %vm76, %v2024, %v2025
    %v2033 = vsel %vm76, 0.0, %v2021
    %v2034 = vsel %vm76, 0.0, %v2024
    %v2035 = vsel %vm76, %v2022, 0.0
    %v2036 = vsel %vm76, %v2025, 0.0
    %v2041 = vrot.slane %v2033, 1
    %v2042 = vrot.slane %v2023, 1
    %v2043 = vsel %vm97, %v2041, %v2042
    %v2044 = vrot.slane %v2035, 1
    %v2045 = vsel %vm97, %v2042, %v2044
    %v2046 = vrot.slane %v2034, 1
    %v2047 = vrot.slane %v2026, 1
    %v2048 = vsel %vm97, %v2046, %v2047
    %v2049 = vrot.slane %v2036, 1
    %v2050 = vsel %vm97, %v2047, %v2049
    %v2055 = vrot.slane %v2033, 2
    %v2056 = vrot.slane %v2023, 2
    %v2057 = vsel %vm112, %v2055, %v2056
    %v2058 = vrot.slane %v2035, 2
    %v2059 = vsel %vm112, %v2056, %v2058
    %v2060 = vrot.slane %v2034, 2
    %v2061 = vrot.slane %v2026, 2
    %v2062 = vsel %vm112, %v2060, %v2061
    %v2063 = vrot.slane %v2036, 2
    %v2064 = vsel %vm112, %v2061, %v2063
    %v2069 = vld [vmem:[#allocation7] sm:$0xff]
    %v2070 = vld [vmem:[#allocation7 + $0x8] sm:$0xff]
    %v2071 = vld [vmem:[#allocation7 + $0x10] sm:$0xff]
    %v2072 = vld [vmem:[#allocation7 + $0x18] sm:$0xff]
    %v2073 = vld [vmem:[#allocation7 + $0x20] sm:$0xff]
    %v2074 = vld [vmem:[#allocation7 + $0x28] sm:$0xff]
    %v2075 = vld [vmem:[#allocation7 + $0x30] sm:$0xff]
    %v2076 = vld [vmem:[#allocation7 + $0x38] sm:$0xff]
    %v2077 = vld [vmem:[#allocation7 + $0x40] sm:$0xff]
    %v2078 = vld [vmem:[#allocation7 + $0x48] sm:$0xff]
    %v2079 = vld [vmem:[#allocation7 + $0x50] sm:$0xff]
    %v2080 = vld [vmem:[#allocation7 + $0x58] sm:$0xff]
    %v2081 = vld [vmem:[#allocation7 + $0x60] sm:$0xff]
    %v2082 = vld [vmem:[#allocation7 + $0x68] sm:$0xff]
    %v2083 = vld [vmem:[#allocation7 + $0x70] sm:$0xff]
    %v2084 = vld [vmem:[#allocation7 + $0x78] sm:$0xff]
    %v2085 = vld [vmem:[#allocation7 + $0x80] sm:$0xff]
    %v2086 = vld [vmem:[#allocation7 + $0x88] sm:$0xff]
    %v2087 = vld [vmem:[#allocation7 + $0x90] sm:$0xff]
    %v2088 = vld [vmem:[#allocation7 + $0x98] sm:$0xff]
    %v2089 = vld [vmem:[#allocation7 + $0xa0] sm:$0xff]
    %v2090 = vld [vmem:[#allocation7 + $0xa8] sm:$0xff]
    %v2091 = vld [vmem:[#allocation7 + $0xb0] sm:$0xff]
    %v2092 = vld [vmem:[#allocation7 + $0xb8] sm:$0xff]
    %v2093 = vld [vmem:[#allocation7 + $0xc0] sm:$0xff]
    %v2094 = vld [vmem:[#allocation7 + $0xc8] sm:$0xff]
    %v2095 = vld [vmem:[#allocation7 + $0xd0] sm:$0xff]
    %v2096 = vld [vmem:[#allocation7 + $0xd8] sm:$0xff]
    %v2097 = vld [vmem:[#allocation7 + $0xe0] sm:$0xff]
    %v2098 = vld [vmem:[#allocation7 + $0xe8] sm:$0xff]
    %v2099 = vld [vmem:[#allocation7 + $0xf0] sm:$0xff]
    %v2100 = vld [vmem:[#allocation7 + $0xf8] sm:$0xff]
    %v2101 = vld [vmem:[#allocation7 + $0x100] sm:$0xff]
    %v2102 = vld [vmem:[#allocation7 + $0x108] sm:$0xff]
    %v2103 = vld [vmem:[#allocation7 + $0x110] sm:$0xff]
    %v2104 = vld [vmem:[#allocation7 + $0x118] sm:$0xff]
    %v2105 = vld [vmem:[#allocation7 + $0x120] sm:$0xff]
    %v2106 = vld [vmem:[#allocation7 + $0x128] sm:$0xff]
    %v2107 = vld [vmem:[#allocation7 + $0x130] sm:$0xff]
    %v2108 = vld [vmem:[#allocation7 + $0x138] sm:$0xff]
    %v2109 = vld [vmem:[#allocation7 + $0x140] sm:$0xff]
    %v2110 = vld [vmem:[#allocation7 + $0x148] sm:$0xff]
    %v2111 = vld [vmem:[#allocation7 + $0x150] sm:$0xff]
    %v2112 = vld [vmem:[#allocation7 + $0x158] sm:$0xff]
    %v2113 = vld [vmem:[#allocation7 + $0x160] sm:$0xff]
    %v2114 = vld [vmem:[#allocation7 + $0x168] sm:$0xff]
    %v2115 = vld [vmem:[#allocation7 + $0x170] sm:$0xff]
    %v2116 = vld [vmem:[#allocation7 + $0x178] sm:$0xff]
    %2117 = vmatprep.subr.mxu0 0.0
    %v2118 = vand.u32 %v2069, 4294901760
    %2119 = vmatpush1.msra.mxu0 %v2118
    %2120 = vmatprep.subr.mxu0 0.0
    %v2121 = vand.u32 %v2070, 4294901760
    %2122 = vmatpush1.msra.mxu0 %v2121
    %2123 = vmatprep.subr.mxu0 0.0
    %v2124 = vand.u32 %v2071, 4294901760
    %2125 = vmatpush1.msra.mxu0 %v2124
    %2126 = vmatprep.subr.mxu0 0.0
    %v2127 = vand.u32 %v2072, 4294901760
    %2128 = vmatpush1.msra.mxu0 %v2127
    %2129 = vmatprep.subr.mxu0 0.0
    %v2130 = vand.u32 %v2073, 4294901760
    %2131 = vmatpush1.msra.mxu0 %v2130
    %2132 = vmatprep.subr.mxu0 0.0
    %v2133 = vand.u32 %v2074, 4294901760
    %2134 = vmatpush1.msra.mxu0 %v2133
    %2135 = vmatprep.subr.mxu0 0.0
    %v2136 = vand.u32 %v2075, 4294901760
    %2137 = vmatpush1.msra.mxu0 %v2136
    %2138 = vmatprep.subr.mxu0 0.0
    %v2139 = vand.u32 %v2076, 4294901760
    %2140 = vmatpush1.msra.mxu0 %v2139
    %2141 = vmatprep.subr.mxu0 0.0
    %v2142 = vand.u32 %v2077, 4294901760
    %2143 = vmatpush1.msra.mxu0 %v2142
    %2144 = vmatprep.subr.mxu0 0.0
    %v2145 = vand.u32 %v2078, 4294901760
    %2146 = vmatpush1.msra.mxu0 %v2145
    %2147 = vmatprep.subr.mxu0 0.0
    %v2148 = vand.u32 %v2079, 4294901760
    %2149 = vmatpush1.msra.mxu0 %v2148
    %2150 = vmatprep.subr.mxu0 0.0
    %v2151 = vand.u32 %v2080, 4294901760
    %2152 = vmatpush1.msra.mxu0 %v2151
    %2153 = vmatprep.subr.mxu0 0.0
    %v2154 = vand.u32 %v2081, 4294901760
    %2155 = vmatpush1.msra.mxu0 %v2154
    %2156 = vmatprep.subr.mxu0 0.0
    %v2157 = vand.u32 %v2082, 4294901760
    %2158 = vmatpush1.msra.mxu0 %v2157
    %2159 = vmatprep.subr.mxu0 0.0
    %v2160 = vand.u32 %v2083, 4294901760
    %2161 = vmatpush1.msra.mxu0 %v2160
    %2162 = vmatprep.subr.mxu0 0.0
    %v2163 = vand.u32 %v2084, 4294901760
    %2164 = vmatpush1.msra.mxu0 %v2163
    %2165 = vmatprep.subr.mxu0 0.0
    %v2166 = vand.u32 %v2085, 4294901760
    %2167 = vmatpush1.msra.mxu0 %v2166
    %2168 = vmatprep.subr.mxu0 0.0
    %v2169 = vand.u32 %v2086, 4294901760
    %2170 = vmatpush1.msra.mxu0 %v2169
    %2171 = vmatprep.subr.mxu0 0.0
    %v2172 = vand.u32 %v2087, 4294901760
    %2173 = vmatpush1.msra.mxu0 %v2172
    %2174 = vmatprep.subr.mxu0 0.0
    %v2175 = vand.u32 %v2088, 4294901760
    %2176 = vmatpush1.msra.mxu0 %v2175
    %2177 = vmatprep.subr.mxu0 0.0
    %v2178 = vand.u32 %v2089, 4294901760
    %2179 = vmatpush1.msra.mxu0 %v2178
    %2180 = vmatprep.subr.mxu0 0.0
    %v2181 = vand.u32 %v2090, 4294901760
    %2182 = vmatpush1.msra.mxu0 %v2181
    %2183 = vmatprep.subr.mxu0 0.0
    %v2184 = vand.u32 %v2091, 4294901760
    %2185 = vmatpush1.msra.mxu0 %v2184
    %2186 = vmatprep.subr.mxu0 0.0
    %v2187 = vand.u32 %v2092, 4294901760
    %2188 = vmatpush1.msra.mxu0 %v2187
    %2189 = vmatprep.subr.mxu0 0.0
    %v2190 = vand.u32 %v2093, 4294901760
    %2191 = vmatpush1.msra.mxu0 %v2190
    %2192 = vmatprep.subr.mxu0 0.0
    %v2193 = vand.u32 %v2094, 4294901760
    %2194 = vmatpush1.msra.mxu0 %v2193
    %2195 = vmatprep.subr.mxu0 0.0
    %v2196 = vand.u32 %v2095, 4294901760
    %2197 = vmatpush1.msra.mxu0 %v2196
    %2198 = vmatprep.subr.mxu0 0.0
    %v2199 = vand.u32 %v2096, 4294901760
    %2200 = vmatpush1.msra.mxu0 %v2199
    %2201 = vmatprep.subr.mxu0 0.0
    %v2202 = vand.u32 %v2097, 4294901760
    %2203 = vmatpush1.msra.mxu0 %v2202
    %2204 = vmatprep.subr.mxu0 0.0
    %v2205 = vand.u32 %v2098, 4294901760
    %2206 = vmatpush1.msra.mxu0 %v2205
    %2207 = vmatprep.subr.mxu0 0.0
    %v2208 = vand.u32 %v2099, 4294901760
    %2209 = vmatpush1.msra.mxu0 %v2208
    %2210 = vmatprep.subr.mxu0 0.0
    %v2211 = vand.u32 %v2100, 4294901760
    %2212 = vmatpush1.msra.mxu0 %v2211
    %v2213 = vand.u32 %v2043, 4294901760
    %v2214 = vsub.f32 %v2043, %v2213
    %v2215 = vand.u32 %v2214, 4294901760
    %v2216 = vsub.f32 %v2214, %v2215
    %v2217 = vand.u32 %v2216, 4294901760
    %2218 = vmatprep.mubr.f32.mxu0 %v2217
    %v2219 = vand.u32 %v2033, 4294901760
    %v2220 = vsub.f32 %v2033, %v2219
    %v2221 = vand.u32 %v2220, 4294901760
    %v2222 = vsub.f32 %v2220, %v2221
    %v2223 = vand.u32 %v2222, 4294901760
    %2224 = vmatmul.mubr.f32.gmra.mrb[0].mxu0 %v2223
    %v2225 = vpop.f32.mrb[0].mxu0
    %v2226 = vadd.f32 0.0, %v2225
    %v2227 = vpop.f32.mrb[0].mxu0
    %v2228 = vand.u32 %v2045, 4294901760
    %v2229 = vsub.f32 %v2045, %v2228
    %v2230 = vand.u32 %v2229, 4294901760
    %v2231 = vsub.f32 %v2229, %v2230
    %v2232 = vand.u32 %v2231, 4294901760
    %2233 = vmatprep.mubr.f32.mxu0 %v2232
    %v2234 = vand.u32 %v2023, 4294901760
    %v2235 = vsub.f32 %v2023, %v2234
    %v2236 = vand.u32 %v2235, 4294901760
    %v2237 = vsub.f32 %v2235, %v2236
    %v2238 = vand.u32 %v2237, 4294901760
    %2239 = vmatmul.mubr.f32.gmra.mrb[0].mxu0 %v2238
    %v2240 = vpop.f32.mrb[0].mxu0
    %v2241 = vadd.f32 0.0, %v2240
    %v2242 = vpop.f32.mrb[0].mxu0
    %v2243 = vand.u32 %v2048, 4294901760
    %v2244 = vsub.f32 %v2048, %v2243
    %v2245 = vand.u32 %v2244, 4294901760
    %v2246 = vsub.f32 %v2244, %v2245
    %v2247 = vand.u32 %v2246, 4294901760
    %2248 = vmatprep.mubr.f32.mxu0 %v2247
    %v2249 = vand.u32 %v2034, 4294901760
    %v2250 = vsub.f32 %v2034, %v2249
    %v2251 = vand.u32 %v2250, 4294901760
    %v2252 = vsub.f32 %v2250, %v2251
    %v2253 = vand.u32 %v2252, 4294901760
    %2254 = vmatmul.mubr.f32.gmra.mrb[0].mxu0 %v2253
    %v2255 = vpop.f32.mrb[0].mxu0
    %v2256 = vadd.f32 0.0, %v2255
    %v2257 = vpop.f32.mrb[0].mxu0
    %v2258 = vand.u32 %v2050, 4294901760
    %v2259 = vsub.f32 %v2050, %v2258
    %v2260 = vand.u32 %v2259, 4294901760
    %v2261 = vsub.f32 %v2259, %v2260
    %v2262 = vand.u32 %v2261, 4294901760
    %2263 = vmatprep.mubr.f32.mxu0 %v2262
    %v2264 = vand.u32 %v2026, 4294901760
    %v2265 = vsub.f32 %v2026, %v2264
    %v2266 = vand.u32 %v2265, 4294901760
    %v2267 = vsub.f32 %v2265, %v2266
    %v2268 = vand.u32 %v2267, 4294901760
    %2269 = vmatmul.mubr.f32.gmra.mrb[0].mxu0 %v2268
    %v2270 = vpop.f32.mrb[0].mxu0
    %v2271 = vadd.f32 0.0, %v2270
    %v2272 = vpop.f32.mrb[0].mxu0
    %2273 = vdwg.mxu0
    %2274 = vmatprep.subr.mxu0 0.0
    %v2275 = vand.u32 %v2069, 4294901760
    %v2276 = vsub.f32 %v2069, %v2275
    %v2277 = vand.u32 %v2276, 4294901760
    %v2278 = vsub.f32 %v2276, %v2277
    %v2279 = vand.u32 %v2278, 4294901760
    %2280 = vmatpush1.msra.mxu0 %v2279
    %2281 = vmatprep.subr.mxu0 0.0
    %v2282 = vand.u32 %v2070, 4294901760
    %v2283 = vsub.f32 %v2070, %v2282
    %v2284 = vand.u32 %v2283, 4294901760
    %v2285 = vsub.f32 %v2283, %v2284
    %v2286 = vand.u32 %v2285, 4294901760
    %2287 = vmatpush1.msra.mxu0 %v2286
    %2288 = vmatprep.subr.mxu0 0.0
    %v2289 = vand.u32 %v2071, 4294901760
    %v2290 = vsub.f32 %v2071, %v2289
    %v2291 = vand.u32 %v2290, 4294901760
    %v2292 = vsub.f32 %v2290, %v2291
    %v2293 = vand.u32 %v2292, 4294901760
    %2294 = vmatpush1.msra.mxu0 %v2293
    %2295 = vmatprep.subr.mxu0 0.0
    %v2296 = vand.u32 %v2072, 4294901760
    %v2297 = vsub.f32 %v2072, %v2296
    %v2298 = vand.u32 %v2297, 4294901760
    %v2299 = vsub.f32 %v2297, %v2298
    %v2300 = vand.u32 %v2299, 4294901760
    %2301 = vmatpush1.msra.mxu0 %v2300
    %2302 = vmatprep.subr.mxu0 0.0
    %v2303 = vand.u32 %v2073, 4294901760
    %v2304 = vsub.f32 %v2073, %v2303
    %v2305 = vand.u32 %v2304, 4294901760
    %v2306 = vsub.f32 %v2304, %v2305
    %v2307 = vand.u32 %v2306, 4294901760
    %2308 = vmatpush1.msra.mxu0 %v2307
    %2309 = vmatprep.subr.mxu0 0.0
    %v2310 = vand.u32 %v2074, 4294901760
    %v2311 = vsub.f32 %v2074, %v2310
    %v2312 = vand.u32 %v2311, 4294901760
    %v2313 = vsub.f32 %v2311, %v2312
    %v2314 = vand.u32 %v2313, 4294901760
    %2315 = vmatpush1.msra.mxu0 %v2314
    %2316 = vmatprep.subr.mxu0 0.0
    %v2317 = vand.u32 %v2075, 4294901760
    %v2318 = vsub.f32 %v2075, %v2317
    %v2319 = vand.u32 %v2318, 4294901760
    %v2320 = vsub.f32 %v2318, %v2319
    %v2321 = vand.u32 %v2320, 4294901760
    %2322 = vmatpush1.msra.mxu0 %v2321
    %2323 = vmatprep.subr.mxu0 0.0
    %v2324 = vand.u32 %v2076, 4294901760
    %v2325 = vsub.f32 %v2076, %v2324
    %v2326 = vand.u32 %v2325, 4294901760
    %v2327 = vsub.f32 %v2325, %v2326
    %v2328 = vand.u32 %v2327, 4294901760
    %2329 = vmatpush1.msra.mxu0 %v2328
    %2330 = vmatprep.subr.mxu0 0.0
    %v2331 = vand.u32 %v2077, 4294901760
    %v2332 = vsub.f32 %v2077, %v2331
    %v2333 = vand.u32 %v2332, 4294901760
    %v2334 = vsub.f32 %v2332, %v2333
    %v2335 = vand.u32 %v2334, 4294901760
    %2336 = vmatpush1.msra.mxu0 %v2335
    %2337 = vmatprep.subr.mxu0 0.0
    %v2338 = vand.u32 %v2078, 4294901760
    %v2339 = vsub.f32 %v2078, %v2338
    %v2340 = vand.u32 %v2339, 4294901760
    %v2341 = vsub.f32 %v2339, %v2340
    %v2342 = vand.u32 %v2341, 4294901760
    %2343 = vmatpush1.msra.mxu0 %v2342
    %2344 = vmatprep.subr.mxu0 0.0
    %v2345 = vand.u32 %v2079, 4294901760
    %v2346 = vsub.f32 %v2079, %v2345
    %v2347 = vand.u32 %v2346, 4294901760
    %v2348 = vsub.f32 %v2346, %v2347
    %v2349 = vand.u32 %v2348, 4294901760
    %2350 = vmatpush1.msra.mxu0 %v2349
    %2351 = vmatprep.subr.mxu0 0.0
    %v2352 = vand.u32 %v2080, 4294901760
    %v2353 = vsub.f32 %v2080, %v2352
    %v2354 = vand.u32 %v2353, 4294901760
    %v2355 = vsub.f32 %v2353, %v2354
    %v2356 = vand.u32 %v2355, 4294901760
    %2357 = vmatpush1.msra.mxu0 %v2356
    %2358 = vmatprep.subr.mxu0 0.0
    %v2359 = vand.u32 %v2081, 4294901760
    %v2360 = vsub.f32 %v2081, %v2359
    %v2361 = vand.u32 %v2360, 4294901760
    %v2362 = vsub.f32 %v2360, %v2361
    %v2363 = vand.u32 %v2362, 4294901760
    %2364 = vmatpush1.msra.mxu0 %v2363
    %2365 = vmatprep.subr.mxu0 0.0
    %v2366 = vand.u32 %v2082, 4294901760
    %v2367 = vsub.f32 %v2082, %v2366
    %v2368 = vand.u32 %v2367, 4294901760
    %v2369 = vsub.f32 %v2367, %v2368
    %v2370 = vand.u32 %v2369, 4294901760
    %2371 = vmatpush1.msra.mxu0 %v2370
    %2372 = vmatprep.subr.mxu0 0.0
    %v2373 = vand.u32 %v2083, 4294901760
    %v2374 = vsub.f32 %v2083, %v2373
    %v2375 = vand.u32 %v2374, 4294901760
    %v2376 = vsub.f32 %v2374, %v2375
    %v2377 = vand.u32 %v2376, 4294901760
    %2378 = vmatpush1.msra.mxu0 %v2377
    %2379 = vmatprep.subr.mxu0 0.0
    %v2380 = vand.u32 %v2084, 4294901760
    %v2381 = vsub.f32 %v2084, %v2380
    %v2382 = vand.u32 %v2381, 4294901760
    %v2383 = vsub.f32 %v2381, %v2382
    %v2384 = vand.u32 %v2383, 4294901760
    %2385 = vmatpush1.msra.mxu0 %v2384
    %2386 = vmatprep.subr.mxu0 0.0
    %v2387 = vand.u32 %v2085, 4294901760
    %v2388 = vsub.f32 %v2085, %v2387
    %v2389 = vand.u32 %v2388, 4294901760
    %v2390 = vsub.f32 %v2388, %v2389
    %v2391 = vand.u32 %v2390, 4294901760
    %2392 = vmatpush1.msra.mxu0 %v2391
    %2393 = vmatprep.subr.mxu0 0.0
    %v2394 = vand.u32 %v2086, 4294901760
    %v2395 = vsub.f32 %v2086, %v2394
    %v2396 = vand.u32 %v2395, 4294901760
    %v2397 = vsub.f32 %v2395, %v2396
    %v2398 = vand.u32 %v2397, 4294901760
    %2399 = vmatpush1.msra.mxu0 %v2398
    %2400 = vmatprep.subr.mxu0 0.0
    %v2401 = vand.u32 %v2087, 4294901760
    %v2402 = vsub.f32 %v2087, %v2401
    %v2403 = vand.u32 %v2402, 4294901760
    %v2404 = vsub.f32 %v2402, %v2403
    %v2405 = vand.u32 %v2404, 4294901760
    %2406 = vmatpush1.msra.mxu0 %v2405
    %2407 = vmatprep.subr.mxu0 0.0
    %v2408 = vand.u32 %v2088, 4294901760
    %v2409 = vsub.f32 %v2088, %v2408
    %v2410 = vand.u32 %v2409, 4294901760
    %v2411 = vsub.f32 %v2409, %v2410
    %v2412 = vand.u32 %v2411, 4294901760
    %2413 = vmatpush1.msra.mxu0 %v2412
    %2414 = vmatprep.subr.mxu0 0.0
    %v2415 = vand.u32 %v2089, 4294901760
    %v2416 = vsub.f32 %v2089, %v2415
    %v2417 = vand.u32 %v2416, 4294901760
    %v2418 = vsub.f32 %v2416, %v2417
    %v2419 = vand.u32 %v2418, 4294901760
    %2420 = vmatpush1.msra.mxu0 %v2419
    %2421 = vmatprep.subr.mxu0 0.0
    %v2422 = vand.u32 %v2090, 4294901760
    %v2423 = vsub.f32 %v2090, %v2422
    %v2424 = vand.u32 %v2423, 4294901760
    %v2425 = vsub.f32 %v2423, %v2424
    %v2426 = vand.u32 %v2425, 4294901760
    %2427 = vmatpush1.msra.mxu0 %v2426
    %2428 = vmatprep.subr.mxu0 0.0
    %v2429 = vand.u32 %v2091, 4294901760
    %v2430 = vsub.f32 %v2091, %v2429
    %v2431 = vand.u32 %v2430, 4294901760
    %v2432 = vsub.f32 %v2430, %v2431
    %v2433 = vand.u32 %v2432, 4294901760
    %2434 = vmatpush1.msra.mxu0 %v2433
    %2435 = vmatprep.subr.mxu0 0.0
    %v2436 = vand.u32 %v2092, 4294901760
    %v2437 = vsub.f32 %v2092, %v2436
    %v2438 = vand.u32 %v2437, 4294901760
    %v2439 = vsub.f32 %v2437, %v2438
    %v2440 = vand.u32 %v2439, 4294901760
    %2441 = vmatpush1.msra.mxu0 %v2440
    %2442 = vmatprep.subr.mxu0 0.0
    %v2443 = vand.u32 %v2093, 4294901760
    %v2444 = vsub.f32 %v2093, %v2443
    %v2445 = vand.u32 %v2444, 4294901760
    %v2446 = vsub.f32 %v2444, %v2445
    %v2447 = vand.u32 %v2446, 4294901760
    %2448 = vmatpush1.msra.mxu0 %v2447
    %2449 = vmatprep.subr.mxu0 0.0
    %v2450 = vand.u32 %v2094, 4294901760
    %v2451 = vsub.f32 %v2094, %v2450
    %v2452 = vand.u32 %v2451, 4294901760
    %v2453 = vsub.f32 %v2451, %v2452
    %v2454 = vand.u32 %v2453, 4294901760
    %2455 = vmatpush1.msra.mxu0 %v2454
    %2456 = vmatprep.subr.mxu0 0.0
    %v2457 = vand.u32 %v2095, 4294901760
    %v2458 = vsub.f32 %v2095, %v2457
    %v2459 = vand.u32 %v2458, 4294901760
    %v2460 = vsub.f32 %v2458, %v2459
    %v2461 = vand.u32 %v2460, 4294901760
    %2462 = vmatpush1.msra.mxu0 %v2461
    %2463 = vmatprep.subr.mxu0 0.0
    %v2464 = vand.u32 %v2096, 4294901760
    %v2465 = vsub.f32 %v2096, %v2464
    %v2466 = vand.u32 %v2465, 4294901760
    %v2467 = vsub.f32 %v2465, %v2466
    %v2468 = vand.u32 %v2467, 4294901760
    %2469 = vmatpush1.msra.mxu0 %v2468
    %2470 = vmatprep.subr.mxu0 0.0
    %v2471 = vand.u32 %v2097, 4294901760
    %v2472 = vsub.f32 %v2097, %v2471
    %v2473 = vand.u32 %v2472, 4294901760
    %v2474 = vsub.f32 %v2472, %v2473
    %v2475 = vand.u32 %v2474, 4294901760
    %2476 = vmatpush1.msra.mxu0 %v2475
    %2477 = vmatprep.subr.mxu0 0.0
    %v2478 = vand.u32 %v2098, 4294901760
    %v2479 = vsub.f32 %v2098, %v2478
    %v2480 = vand.u32 %v2479, 4294901760
    %v2481 = vsub.f32 %v2479, %v2480
    %v2482 = vand.u32 %v2481, 4294901760
    %2483 = vmatpush1.msra.mxu0 %v2482
    %2484 = vmatprep.subr.mxu0 0.0
    %v2485 = vand.u32 %v2099, 4294901760
    %v2486 = vsub.f32 %v2099, %v2485
    %v2487 = vand.u32 %v2486, 4294901760
    %v2488 = vsub.f32 %v2486, %v2487
    %v2489 = vand.u32 %v2488, 4294901760
    %2490 = vmatpush1.msra.mxu0 %v2489
    %2491 = vmatprep.subr.mxu0 0.0
    %v2492 = vand.u32 %v2100, 4294901760
    %v2493 = vsub.f32 %v2100, %v2492
    %v2494 = vand.u32 %v2493, 4294901760
    %v2495 = vsub.f32 %v2493, %v2494
    %v2496 = vand.u32 %v2495, 4294901760
    %2497 = vmatpush1.msra.mxu0 %v2496
    %v2498 = vand.u32 %v2043, 4294901760
    %2499 = vmatprep.mubr.f32.mxu0 %v2498
    %v2500 = vand.u32 %v2033, 4294901760
    %2501 = vmatmul.mubr.f32.gmra.mrb[0].mxu0 %v2500
    %v2502 = vpop.f32.mrb[0].mxu0
    %v2503 = vadd.f32 %v2226, %v2502
    %v2504 = vpop.f32.mrb[0].mxu0
    %v2505 = vand.u32 %v2045, 4294901760
    %2506 = vmatprep.mubr.f32.mxu0 %v2505
    %v2507 = vand.u32 %v2023, 4294901760
    %2508 = vmatmul.mubr.f32.gmra.mrb[0].mxu0 %v2507
    %v2509 = vpop.f32.mrb[0].mxu0
    %v2510 = vadd.f32 %v2241, %v2509
    %v2511 = vpop.f32.mrb[0].mxu0
    %v2512 = vand.u32 %v2048, 4294901760
    %2513 = vmatprep.mubr.f32.mxu0 %v2512
    %v2514 = vand.u32 %v2034, 4294901760
    %2515 = vmatmul.mubr.f32.gmra.mrb[0].mxu0 %v2514
    %v2516 = vpop.f32.mrb[0].mxu0
    %v2517 = vadd.f32 %v2256, %v2516
    %v2518 = vpop.f32.mrb[0].mxu0
    %v2519 = vand.u32 %v2050, 4294901760
    %2520 = vmatprep.mubr.f32.mxu0 %v2519
    %v2521 = vand.u32 %v2026, 4294901760
    %2522 = vmatmul.mubr.f32.gmra.mrb[0].mxu0 %v2521
    %v2523 = vpop.f32.mrb[0].mxu0
    %v2524 = vadd.f32 %v2271, %v2523
    %v2525 = vpop.f32.mrb[0].mxu0
    %2526 = vdwg.mxu0
    %2527 = vmatprep.subr.mxu0 0.0
    %v2528 = vand.u32 %v2069, 4294901760
    %v2529 = vsub.f32 %v2069, %v2528
    %2530 = vmatpush1.msra.mxu0 %v2529
    %2531 = vmatprep.subr.mxu0 0.0
    %v2532 = vand.u32 %v2070, 4294901760
    %v2533 = vsub.f32 %v2070, %v2532
    %2534 = vmatpush1.msra.mxu0 %v2533
    %2535 = vmatprep.subr.mxu0 0.0
    %v2536 = vand.u32 %v2071, 4294901760
    %v2537 = vsub.f32 %v2071, %v2536
    %2538 = vmatpush1.msra.mxu0 %v2537
    %2539 = vmatprep.subr.mxu0 0.0
    %v2540 = vand.u32 %v2072, 4294901760
    %v2541 = vsub.f32 %v2072, %v2540
    %2542 = vmatpush1.msra.mxu0 %v2541
    %2543 = vmatprep.subr.mxu0 0.0
    %v2544 = vand.u32 %v2073, 4294901760
    %v2545 = vsub.f32 %v2073, %v2544
    %2546 = vmatpush1.msra.mxu0 %v2545
    %2547 = vmatprep.subr.mxu0 0.0
    %v2548 = vand.u32 %v2074, 4294901760
    %v2549 = vsub.f32 %v2074, %v2548
    %2550 = vmatpush1.msra.mxu0 %v2549
    %2551 = vmatprep.subr.mxu0 0.0
    %v2552 = vand.u32 %v2075, 4294901760
    %v2553 = vsub.f32 %v2075, %v2552
    %2554 = vmatpush1.msra.mxu0 %v2553
    %2555 = vmatprep.subr.mxu0 0.0
    %v2556 = vand.u32 %v2076, 4294901760
    %v2557 = vsub.f32 %v2076, %v2556
    %2558 = vmatpush1.msra.mxu0 %v2557
    %2559 = vmatprep.subr.mxu0 0.0
    %v2560 = vand.u32 %v2077, 4294901760
    %v2561 = vsub.f32 %v2077, %v2560
    %2562 = vmatpush1.msra.mxu0 %v2561
    %2563 = vmatprep.subr.mxu0 0.0
    %v2564 = vand.u32 %v2078, 4294901760
    %v2565 = vsub.f32 %v2078, %v2564
    %2566 = vmatpush1.msra.mxu0 %v2565
    %2567 = vmatprep.subr.mxu0 0.0
    %v2568 = vand.u32 %v2079, 4294901760
    %v2569 = vsub.f32 %v2079, %v2568
    %2570 = vmatpush1.msra.mxu0 %v2569
    %2571 = vmatprep.subr.mxu0 0.0
    %v2572 = vand.u32 %v2080, 4294901760
    %v2573 = vsub.f32 %v2080, %v2572
    %2574 = vmatpush1.msra.mxu0 %v2573
    %2575 = vmatprep.subr.mxu0 0.0
    %v2576 = vand.u32 %v2081, 4294901760
    %v2577 = vsub.f32 %v2081, %v2576
    %2578 = vmatpush1.msra.mxu0 %v2577
    %2579 = vmatprep.subr.mxu0 0.0
    %v2580 = vand.u32 %v2082, 4294901760
    %v2581 = vsub.f32 %v2082, %v2580
    %2582 = vmatpush1.msra.mxu0 %v2581
    %2583 = vmatprep.subr.mxu0 0.0
    %v2584 = vand.u32 %v2083, 4294901760
    %v2585 = vsub.f32 %v2083, %v2584
    %2586 = vmatpush1.msra.mxu0 %v2585
    %2587 = vmatprep.subr.mxu0 0.0
    %v2588 = vand.u32 %v2084, 4294901760
    %v2589 = vsub.f32 %v2084, %v2588
    %2590 = vmatpush1.msra.mxu0 %v2589
    %2591 = vmatprep.subr.mxu0 0.0
    %v2592 = vand.u32 %v2085, 4294901760
    %v2593 = vsub.f32 %v2085, %v2592
    %2594 = vmatpush1.msra.mxu0 %v2593
    %2595 = vmatprep.subr.mxu0 0.0
    %v2596 = vand.u32 %v2086, 4294901760
    %v2597 = vsub.f32 %v2086, %v2596
    %2598 = vmatpush1.msra.mxu0 %v2597
    %2599 = vmatprep.subr.mxu0 0.0
    %v2600 = vand.u32 %v2087, 4294901760
    %v2601 = vsub.f32 %v2087, %v2600
    %2602 = vmatpush1.msra.mxu0 %v2601
    %2603 = vmatprep.subr.mxu0 0.0
    %v2604 = vand.u32 %v2088, 4294901760
    %v2605 = vsub.f32 %v2088, %v2604
    %2606 = vmatpush1.msra.mxu0 %v2605
    %2607 = vmatprep.subr.mxu0 0.0
    %v2608 = vand.u32 %v2089, 4294901760
    %v2609 = vsub.f32 %v2089, %v2608
    %2610 = vmatpush1.msra.mxu0 %v2609
    %2611 = vmatprep.subr.mxu0 0.0
    %v2612 = vand.u32 %v2090, 4294901760
    %v2613 = vsub.f32 %v2090, %v2612
    %2614 = vmatpush1.msra.mxu0 %v2613
    %2615 = vmatprep.subr.mxu0 0.0
    %v2616 = vand.u32 %v2091, 4294901760
    %v2617 = vsub.f32 %v2091, %v2616
    %2618 = vmatpush1.msra.mxu0 %v2617
    %2619 = vmatprep.subr.mxu0 0.0
    %v2620 = vand.u32 %v2092, 4294901760
    %v2621 = vsub.f32 %v2092, %v2620
    %2622 = vmatpush1.msra.mxu0 %v2621
    %2623 = vmatprep.subr.mxu0 0.0
    %v2624 = vand.u32 %v2093, 4294901760
    %v2625 = vsub.f32 %v2093, %v2624
    %2626 = vmatpush1.msra.mxu0 %v2625
    %2627 = vmatprep.subr.mxu0 0.0
    %v2628 = vand.u32 %v2094, 4294901760
    %v2629 = vsub.f32 %v2094, %v2628
    %2630 = vmatpush1.msra.mxu0 %v2629
    %2631 = vmatprep.subr.mxu0 0.0
    %v2632 = vand.u32 %v2095, 4294901760
    %v2633 = vsub.f32 %v2095, %v2632
    %2634 = vmatpush1.msra.mxu0 %v2633
    %2635 = vmatprep.subr.mxu0 0.0
    %v2636 = vand.u32 %v2096, 4294901760
    %v2637 = vsub.f32 %v2096, %v2636
    %2638 = vmatpush1.msra.mxu0 %v2637
    %2639 = vmatprep.subr.mxu0 0.0
    %v2640 = vand.u32 %v2097, 4294901760
    %v2641 = vsub.f32 %v2097, %v2640
    %2642 = vmatpush1.msra.mxu0 %v2641
    %2643 = vmatprep.subr.mxu0 0.0
    %v2644 = vand.u32 %v2098, 4294901760
    %v2645 = vsub.f32 %v2098, %v2644
    %2646 = vmatpush1.msra.mxu0 %v2645
    %2647 = vmatprep.subr.mxu0 0.0
    %v2648 = vand.u32 %v2099, 4294901760
    %v2649 = vsub.f32 %v2099, %v2648
    %2650 = vmatpush1.msra.mxu0 %v2649
    %2651 = vmatprep.subr.mxu0 0.0
    %v2652 = vand.u32 %v2100, 4294901760
    %v2653 = vsub.f32 %v2100, %v2652
    %2654 = vmatpush1.msra.mxu0 %v2653
    %v2655 = vand.u32 %v2043, 4294901760
    %v2656 = vsub.f32 %v2043, %v2655
    %2657 = vmatprep.mubr.f32.mxu0 %v2656
    %v2658 = vand.u32 %v2033, 4294901760
    %v2659 = vsub.f32 %v2033, %v2658
    %2660 = vmatmul.mubr.f32.gmra.mrb[0].mxu0 %v2659
    %v2661 = vpop.f32.mrb[0].mxu0
    %v2662 = vadd.f32 %v2503, %v2661
    %v2663 = vpop.f32.mrb[0].mxu0
    %v2664 = vand.u32 %v2045, 4294901760
    %v2665 = vsub.f32 %v2045, %v2664
    %2666 = vmatprep.mubr.f32.mxu0 %v2665
    %v2667 = vand.u32 %v2023, 4294901760
    %v2668 = vsub.f32 %v2023, %v2667
    %2669 = vmatmul.mubr.f32.gmra.mrb[0].mxu0 %v2668
    %v2670 = vpop.f32.mrb[0].mxu0
    %v2671 = vadd.f32 %v2510, %v2670
    %v2672 = vpop.f32.mrb[0].mxu0
    %v2673 = vand.u32 %v2048, 4294901760
    %v2674 = vsub.f32 %v2048, %v2673
    %2675 = vmatprep.mubr.f32.mxu0 %v2674
    %v2676 = vand.u32 %v2034, 4294901760
    %v2677 = vsub.f32 %v2034, %v2676
    %2678 = vmatmul.mubr.f32.gmra.mrb[0].mxu0 %v2677
    %v2679 = vpop.f32.mrb[0].mxu0
    %v2680 = vadd.f32 %v2517, %v2679
    %v2681 = vpop.f32.mrb[0].mxu0
    %v2682 = vand.u32 %v2050, 4294901760
    %v2683 = vsub.f32 %v2050, %v2682
    %2684 = vmatprep.mubr.f32.mxu0 %v2683
    %v2685 = vand.u32 %v2026, 4294901760
    %v2686 = vsub.f32 %v2026, %v2685
    %2687 = vmatmul.mubr.f32.gmra.mrb[0].mxu0 %v2686
    %v2688 = vpop.f32.mrb[0].mxu0
    %v2689 = vadd.f32 %v2524, %v2688
    %v2690 = vpop.f32.mrb[0].mxu0
    %2691 = vdwg.mxu0
    %2692 = vmatprep.subr.mxu0 0.0
    %v2693 = vand.u32 %v2069, 4294901760
    %2694 = vmatpush1.msra.mxu0 %v2693
    %2695 = vmatprep.subr.mxu0 0.0
    %v2696 = vand.u32 %v2070, 4294901760
    %2697 = vmatpush1.msra.mxu0 %v2696
    %2698 = vmatprep.subr.mxu0 0.0
    %v2699 = vand.u32 %v2071, 4294901760
    %2700 = vmatpush1.msra.mxu0 %v2699
    %2701 = vmatprep.subr.mxu0 0.0
    %v2702 = vand.u32 %v2072, 4294901760
    %2703 = vmatpush1.msra.mxu0 %v2702
    %2704 = vmatprep.subr.mxu0 0.0
    %v2705 = vand.u32 %v2073, 4294901760
    %2706 = vmatpush1.msra.mxu0 %v2705
    %2707 = vmatprep.subr.mxu0 0.0
    %v2708 = vand.u32 %v2074, 4294901760
    %2709 = vmatpush1.msra.mxu0 %v2708
    %2710 = vmatprep.subr.mxu0 0.0
    %v2711 = vand.u32 %v2075, 4294901760
    %2712 = vmatpush1.msra.mxu0 %v2711
    %2713 = vmatprep.subr.mxu0 0.0
    %v2714 = vand.u32 %v2076, 4294901760
    %2715 = vmatpush1.msra.mxu0 %v2714
    %2716 = vmatprep.subr.mxu0 0.0
    %v2717 = vand.u32 %v2077, 4294901760
    %2718 = vmatpush1.msra.mxu0 %v2717
    %2719 = vmatprep.subr.mxu0 0.0
    %v2720 = vand.u32 %v2078, 4294901760
    %2721 = vmatpush1.msra.mxu0 %v2720
    %2722 = vmatprep.subr.mxu0 0.0
    %v2723 = vand.u32 %v2079, 4294901760
    %2724 = vmatpush1.msra.mxu0 %v2723
    %2725 = vmatprep.subr.mxu0 0.0
    %v2726 = vand.u32 %v2080, 4294901760
    %2727 = vmatpush1.msra.mxu0 %v2726
    %2728 = vmatprep.subr.mxu0 0.0
    %v2729 = vand.u32 %v2081, 4294901760
    %2730 = vmatpush1.msra.mxu0 %v2729
    %2731 = vmatprep.subr.mxu0 0.0
    %v2732 = vand.u32 %v2082, 4294901760
    %2733 = vmatpush1.msra.mxu0 %v2732
    %2734 = vmatprep.subr.mxu0 0.0
    %v2735 = vand.u32 %v2083, 4294901760
    %2736 = vmatpush1.msra.mxu0 %v2735
    %2737 = vmatprep.subr.mxu0 0.0
    %v2738 = vand.u32 %v2084, 4294901760
    %2739 = vmatpush1.msra.mxu0 %v2738
    %2740 = vmatprep.subr.mxu0 0.0
    %v2741 = vand.u32 %v2085, 4294901760
    %2742 = vmatpush1.msra.mxu0 %v2741
    %2743 = vmatprep.subr.mxu0 0.0
    %v2744 = vand.u32 %v2086, 4294901760
    %2745 = vmatpush1.msra.mxu0 %v2744
    %2746 = vmatprep.subr.mxu0 0.0
    %v2747 = vand.u32 %v2087, 4294901760
    %2748 = vmatpush1.msra.mxu0 %v2747
    %2749 = vmatprep.subr.mxu0 0.0
    %v2750 = vand.u32 %v2088, 4294901760
    %2751 = vmatpush1.msra.mxu0 %v2750
    %2752 = vmatprep.subr.mxu0 0.0
    %v2753 = vand.u32 %v2089, 4294901760
    %2754 = vmatpush1.msra.mxu0 %v2753
    %2755 = vmatprep.subr.mxu0 0.0
    %v2756 = vand.u32 %v2090, 4294901760
    %2757 = vmatpush1.msra.mxu0 %v2756
    %2758 = vmatprep.subr.mxu0 0.0
    %v2759 = vand.u32 %v2091, 4294901760
    %2760 = vmatpush1.msra.mxu0 %v2759
    %2761 = vmatprep.subr.mxu0 0.0
    %v2762 = vand.u32 %v2092, 4294901760
    %2763 = vmatpush1.msra.mxu0 %v2762
    %2764 = vmatprep.subr.mxu0 0.0
    %v2765 = vand.u32 %v2093, 4294901760
    %2766 = vmatpush1.msra.mxu0 %v2765
    %2767 = vmatprep.subr.mxu0 0.0
    %v2768 = vand.u32 %v2094, 4294901760
    %2769 = vmatpush1.msra.mxu0 %v2768
    %2770 = vmatprep.subr.mxu0 0.0
    %v2771 = vand.u32 %v2095, 4294901760
    %2772 = vmatpush1.msra.mxu0 %v2771
    %2773 = vmatprep.subr.mxu0 0.0
    %v2774 = vand.u32 %v2096, 4294901760
    %2775 = vmatpush1.msra.mxu0 %v2774
    %2776 = vmatprep.subr.mxu0 0.0
    %v2777 = vand.u32 %v2097, 4294901760
    %2778 = vmatpush1.msra.mxu0 %v2777
    %2779 = vmatprep.subr.mxu0 0.0
    %v2780 = vand.u32 %v2098, 4294901760
    %2781 = vmatpush1.msra.mxu0 %v2780
    %2782 = vmatprep.subr.mxu0 0.0
    %v2783 = vand.u32 %v2099, 4294901760
    %2784 = vmatpush1.msra.mxu0 %v2783
    %2785 = vmatprep.subr.mxu0 0.0
    %v2786 = vand.u32 %v2100, 4294901760
    %2787 = vmatpush1.msra.mxu0 %v2786
    %v2788 = vand.u32 %v2043, 4294901760
    %v2789 = vsub.f32 %v2043, %v2788
    %v2790 = vand.u32 %v2789, 4294901760
    %2791 = vmatprep.mubr.f32.mxu0 %v2790
    %v2792 = vand.u32 %v2033, 4294901760
    %v2793 = vsub.f32 %v2033, %v2792
    %v2794 = vand.u32 %v2793, 4294901760
    %2795 = vmatmul.mubr.f32.gmra.mrb[0].mxu0 %v2794
    %v2796 = vpop.f32.mrb[0].mxu0
    %v2797 = vadd.f32 %v2662, %v2796
    %v2798 = vpop.f32.mrb[0].mxu0
    %v2799 = vand.u32 %v2045, 4294901760
    %v2800 = vsub.f32 %v2045, %v2799
    %v2801 = vand.u32 %v2800, 4294901760
    %2802 = vmatprep.mubr.f32.mxu0 %v2801
    %v2803 = vand.u32 %v2023, 4294901760
    %v2804 = vsub.f32 %v2023, %v2803
    %v2805 = vand.u32 %v2804, 4294901760
    %2806 = vmatmul.mubr.f32.gmra.mrb[0].mxu0 %v2805
    %v2807 = vpop.f32.mrb[0].mxu0
    %v2808 = vadd.f32 %v2671, %v2807
    %v2809 = vpop.f32.mrb[0].mxu0
    %v2810 = vand.u32 %v2048, 4294901760
    %v2811 = vsub.f32 %v2048, %v2810
    %v2812 = vand.u32 %v2811, 4294901760
    %2813 = vmatprep.mubr.f32.mxu0 %v2812
    %v2814 = vand.u32 %v2034, 4294901760
    %v2815 = vsub.f32 %v2034, %v2814
    %v2816 = vand.u32 %v2815, 4294901760
    %2817 = vmatmul.mubr.f32.gmra.mrb[0].mxu0 %v2816
    %v2818 = vpop.f32.mrb[0].mxu0
    %v2819 = vadd.f32 %v2680, %v2818
    %v2820 = vpop.f32.mrb[0].mxu0
    %v2821 = vand.u32 %v2050, 4294901760
    %v2822 = vsub.f32 %v2050, %v2821
    %v2823 = vand.u32 %v2822, 4294901760
    %2824 = vmatprep.mubr.f32.mxu0 %v2823
    %v2825 = vand.u32 %v2026, 4294901760
    %v2826 = vsub.f32 %v2026, %v2825
    %v2827 = vand.u32 %v2826, 4294901760
    %2828 = vmatmul.mubr.f32.gmra.mrb[0].mxu0 %v2827
    %v2829 = vpop.f32.mrb[0].mxu0
    %v2830 = vadd.f32 %v2689, %v2829
    %v2831 = vpop.f32.mrb[0].mxu0
    %2832 = vdwg.mxu0
    %2833 = vmatprep.subr.mxu0 0.0
    %v2834 = vand.u32 %v2069, 4294901760
    %v2835 = vsub.f32 %v2069, %v2834
    %v2836 = vand.u32 %v2835, 4294901760
    %2837 = vmatpush1.msra.mxu0 %v2836
    %2838 = vmatprep.subr.mxu0 0.0
    %v2839 = vand.u32 %v2070, 4294901760
    %v2840 = vsub.f32 %v2070, %v2839
    %v2841 = vand.u32 %v2840, 4294901760
    %2842 = vmatpush1.msra.mxu0 %v2841
    %2843 = vmatprep.subr.mxu0 0.0
    %v2844 = vand.u32 %v2071, 4294901760
    %v2845 = vsub.f32 %v2071, %v2844
    %v2846 = vand.u32 %v2845, 4294901760
    %2847 = vmatpush1.msra.mxu0 %v2846
    %2848 = vmatprep.subr.mxu0 0.0
    %v2849 = vand.u32 %v2072, 4294901760
    %v2850 = vsub.f32 %v2072, %v2849
    %v2851 = vand.u32 %v2850, 4294901760
    %2852 = vmatpush1.msra.mxu0 %v2851
    %2853 = vmatprep.subr.mxu0 0.0
    %v2854 = vand.u32 %v2073, 4294901760
    %v2855 = vsub.f32 %v2073, %v2854
    %v2856 = vand.u32 %v2855, 4294901760
    %2857 = vmatpush1.msra.mxu0 %v2856
    %2858 = vmatprep.subr.mxu0 0.0
    %v2859 = vand.u32 %v2074, 4294901760
    %v2860 = vsub.f32 %v2074, %v2859
    %v2861 = vand.u32 %v2860, 4294901760
    %2862 = vmatpush1.msra.mxu0 %v2861
    %2863 = vmatprep.subr.mxu0 0.0
    %v2864 = vand.u32 %v2075, 4294901760
    %v2865 = vsub.f32 %v2075, %v2864
    %v2866 = vand.u32 %v2865, 4294901760
    %2867 = vmatpush1.msra.mxu0 %v2866
    %2868 = vmatprep.subr.mxu0 0.0
    %v2869 = vand.u32 %v2076, 4294901760
    %v2870 = vsub.f32 %v2076, %v2869
    %v2871 = vand.u32 %v2870, 4294901760
    %2872 = vmatpush1.msra.mxu0 %v2871
    %2873 = vmatprep.subr.mxu0 0.0
    %v2874 = vand.u32 %v2077, 4294901760
    %v2875 = vsub.f32 %v2077, %v2874
    %v2876 = vand.u32 %v2875, 4294901760
    %2877 = vmatpush1.msra.mxu0 %v2876
    %2878 = vmatprep.subr.mxu0 0.0
    %v2879 = vand.u32 %v2078, 4294901760
    %v2880 = vsub.f32 %v2078, %v2879
    %v2881 = vand.u32 %v2880, 4294901760
    %2882 = vmatpush1.msra.mxu0 %v2881
    %2883 = vmatprep.subr.mxu0 0.0
    %v2884 = vand.u32 %v2079, 4294901760
    %v2885 = vsub.f32 %v2079, %v2884
    %v2886 = vand.u32 %v2885, 4294901760
    %2887 = vmatpush1.msra.mxu0 %v2886
    %2888 = vmatprep.subr.mxu0 0.0
    %v2889 = vand.u32 %v2080, 4294901760
    %v2890 = vsub.f32 %v2080, %v2889
    %v2891 = vand.u32 %v2890, 4294901760
    %2892 = vmatpush1.msra.mxu0 %v2891
    %2893 = vmatprep.subr.mxu0 0.0
    %v2894 = vand.u32 %v2081, 4294901760
    %v2895 = vsub.f32 %v2081, %v2894
    %v2896 = vand.u32 %v2895, 4294901760
    %2897 = vmatpush1.msra.mxu0 %v2896
    %2898 = vmatprep.subr.mxu0 0.0
    %v2899 = vand.u32 %v2082, 4294901760
    %v2900 = vsub.f32 %v2082, %v2899
    %v2901 = vand.u32 %v2900, 4294901760
    %2902 = vmatpush1.msra.mxu0 %v2901
    %2903 = vmatprep.subr.mxu0 0.0
    %v2904 = vand.u32 %v2083, 4294901760
    %v2905 = vsub.f32 %v2083, %v2904
    %v2906 = vand.u32 %v2905, 4294901760
    %2907 = vmatpush1.msra.mxu0 %v2906
    %2908 = vmatprep.subr.mxu0 0.0
    %v2909 = vand.u32 %v2084, 4294901760
    %v2910 = vsub.f32 %v2084, %v2909
    %v2911 = vand.u32 %v2910, 4294901760
    %2912 = vmatpush1.msra.mxu0 %v2911
    %2913 = vmatprep.subr.mxu0 0.0
    %v2914 = vand.u32 %v2085, 4294901760
    %v2915 = vsub.f32 %v2085, %v2914
    %v2916 = vand.u32 %v2915, 4294901760
    %2917 = vmatpush1.msra.mxu0 %v2916
    %2918 = vmatprep.subr.mxu0 0.0
    %v2919 = vand.u32 %v2086, 4294901760
    %v2920 = vsub.f32 %v2086, %v2919
    %v2921 = vand.u32 %v2920, 4294901760
    %2922 = vmatpush1.msra.mxu0 %v2921
    %2923 = vmatprep.subr.mxu0 0.0
    %v2924 = vand.u32 %v2087, 4294901760
    %v2925 = vsub.f32 %v2087, %v2924
    %v2926 = vand.u32 %v2925, 4294901760
    %2927 = vmatpush1.msra.mxu0 %v2926
    %2928 = vmatprep.subr.mxu0 0.0
    %v2929 = vand.u32 %v2088, 4294901760
    %v2930 = vsub.f32 %v2088, %v2929
    %v2931 = vand.u32 %v2930, 4294901760
    %2932 = vmatpush1.msra.mxu0 %v2931
    %2933 = vmatprep.subr.mxu0 0.0
    %v2934 = vand.u32 %v2089, 4294901760
    %v2935 = vsub.f32 %v2089, %v2934
    %v2936 = vand.u32 %v2935, 4294901760
    %2937 = vmatpush1.msra.mxu0 %v2936
    %2938 = vmatprep.subr.mxu0 0.0
    %v2939 = vand.u32 %v2090, 4294901760
    %v2940 = vsub.f32 %v2090, %v2939
    %v2941 = vand.u32 %v2940, 4294901760
    %2942 = vmatpush1.msra.mxu0 %v2941
    %2943 = vmatprep.subr.mxu0 0.0
    %v2944 = vand.u32 %v2091, 4294901760
    %v2945 = vsub.f32 %v2091, %v2944
    %v2946 = vand.u32 %v2945, 4294901760
    %2947 = vmatpush1.msra.mxu0 %v2946
    %2948 = vmatprep.subr.mxu0 0.0
    %v2949 = vand.u32 %v2092, 4294901760
    %v2950 = vsub.f32 %v2092, %v2949
    %v2951 = vand.u32 %v2950, 4294901760
    %2952 = vmatpush1.msra.mxu0 %v2951
    %2953 = vmatprep.subr.mxu0 0.0
    %v2954 = vand.u32 %v2093, 4294901760
    %v2955 = vsub.f32 %v2093, %v2954
    %v2956 = vand.u32 %v2955, 4294901760
    %2957 = vmatpush1.msra.mxu0 %v2956
    %2958 = vmatprep.subr.mxu0 0.0
    %v2959 = vand.u32 %v2094, 4294901760
    %v2960 = vsub.f32 %v2094, %v2959
    %v2961 = vand.u32 %v2960, 4294901760
    %2962 = vmatpush1.msra.mxu0 %v2961
    %2963 = vmatprep.subr.mxu0 0.0
    %v2964 = vand.u32 %v2095, 4294901760
    %v2965 = vsub.f32 %v2095, %v2964
    %v2966 = vand.u32 %v2965, 4294901760
    %2967 = vmatpush1.msra.mxu0 %v2966
    %2968 = vmatprep.subr.mxu0 0.0
    %v2969 = vand.u32 %v2096, 4294901760
    %v2970 = vsub.f32 %v2096, %v2969
    %v2971 = vand.u32 %v2970, 4294901760
    %2972 = vmatpush1.msra.mxu0 %v2971
    %2973 = vmatprep.subr.mxu0 0.0
    %v2974 = vand.u32 %v2097, 4294901760
    %v2975 = vsub.f32 %v2097, %v2974
    %v2976 = vand.u32 %v2975, 4294901760
    %2977 = vmatpush1.msra.mxu0 %v2976
    %2978 = vmatprep.subr.mxu0 0.0
    %v2979 = vand.u32 %v2098, 4294901760
    %v2980 = vsub.f32 %v2098, %v2979
    %v2981 = vand.u32 %v2980, 4294901760
    %2982 = vmatpush1.msra.mxu0 %v2981
    %2983 = vmatprep.subr.mxu0 0.0
    %v2984 = vand.u32 %v2099, 4294901760
    %v2985 = vsub.f32 %v2099, %v2984
    %v2986 = vand.u32 %v2985, 4294901760
    %2987 = vmatpush1.msra.mxu0 %v2986
    %2988 = vmatprep.subr.mxu0 0.0
    %v2989 = vand.u32 %v2100, 4294901760
    %v2990 = vsub.f32 %v2100, %v2989
    %v2991 = vand.u32 %v2990, 4294901760
    %2992 = vmatpush1.msra.mxu0 %v2991
    %v2993 = vand.u32 %v2043, 4294901760
    %2994 = vmatprep.mubr.f32.mxu0 %v2993
    %v2995 = vand.u32 %v2033, 4294901760
    %2996 = vmatmul.mubr.f32.gmra.mrb[0].mxu0 %v2995
    %v2997 = vpop.f32.mrb[0].mxu0
    %v2998 = vadd.f32 %v2797, %v2997
    %v2999 = vpop.f32.mrb[0].mxu0
    %v3000 = vand.u32 %v2045, 4294901760
    %3001 = vmatprep.mubr.f32.mxu0 %v3000
    %v3002 = vand.u32 %v2023, 4294901760
    %3003 = vmatmul.mubr.f32.gmra.mrb[0].mxu0 %v3002
    %v3004 = vpop.f32.mrb[0].mxu0
    %v3005 = vadd.f32 %v2808, %v3004
    %v3006 = vpop.f32.mrb[0].mxu0
    %v3007 = vand.u32 %v2048, 4294901760
    %3008 = vmatprep.mubr.f32.mxu0 %v3007
    %v3009 = vand.u32 %v2034, 4294901760
    %3010 = vmatmul.mubr.f32.gmra.mrb[0].mxu0 %v3009
    %v3011 = vpop.f32.mrb[0].mxu0
    %v3012 = vadd.f32 %v2819, %v3011
    %v3013 = vpop.f32.mrb[0].mxu0
    %v3014 = vand.u32 %v2050, 4294901760
    %3015 = vmatprep.mubr.f32.mxu0 %v3014
    %v3016 = vand.u32 %v2026, 4294901760
    %3017 = vmatmul.mubr.f32.gmra.mrb[0].mxu0 %v3016
    %v3018 = vpop.f32.mrb[0].mxu0
    %v3019 = vadd.f32 %v2830, %v3018
    %v3020 = vpop.f32.mrb[0].mxu0
    %3021 = vdwg.mxu0
    %3022 = vmatprep.subr.mxu0 0.0
    %v3023 = vand.u32 %v2069, 4294901760
    %3024 = vmatpush1.msra.mxu0 %v3023
    %3025 = vmatprep.subr.mxu0 0.0
    %v3026 = vand.u32 %v2070, 4294901760
    %3027 = vmatpush1.msra.mxu0 %v3026
    %3028 = vmatprep.subr.mxu0 0.0
    %v3029 = vand.u32 %v2071, 4294901760
    %3030 = vmatpush1.msra.mxu0 %v3029
    %3031 = vmatprep.subr.mxu0 0.0
    %v3032 = vand.u32 %v2072, 4294901760
    %3033 = vmatpush1.msra.mxu0 %v3032
    %3034 = vmatprep.subr.mxu0 0.0
    %v3035 = vand.u32 %v2073, 4294901760
    %3036 = vmatpush1.msra.mxu0 %v3035
    %3037 = vmatprep.subr.mxu0 0.0
    %v3038 = vand.u32 %v2074, 4294901760
    %3039 = vmatpush1.msra.mxu0 %v3038
    %3040 = vmatprep.subr.mxu0 0.0
    %v3041 = vand.u32 %v2075, 4294901760
    %3042 = vmatpush1.msra.mxu0 %v3041
    %3043 = vmatprep.subr.mxu0 0.0
    %v3044 = vand.u32 %v2076, 4294901760
    %3045 = vmatpush1.msra.mxu0 %v3044
    %3046 = vmatprep.subr.mxu0 0.0
    %v3047 = vand.u32 %v2077, 4294901760
    %3048 = vmatpush1.msra.mxu0 %v3047
    %3049 = vmatprep.subr.mxu0 0.0
    %v3050 = vand.u32 %v2078, 4294901760
    %3051 = vmatpush1.msra.mxu0 %v3050
    %3052 = vmatprep.subr.mxu0 0.0
    %v3053 = vand.u32 %v2079, 4294901760
    %3054 = vmatpush1.msra.mxu0 %v3053
    %3055 = vmatprep.subr.mxu0 0.0
    %v3056 = vand.u32 %v2080, 4294901760
    %3057 = vmatpush1.msra.mxu0 %v3056
    %3058 = vmatprep.subr.mxu0 0.0
    %v3059 = vand.u32 %v2081, 4294901760
    %3060 = vmatpush1.msra.mxu0 %v3059
    %3061 = vmatprep.subr.mxu0 0.0
    %v3062 = vand.u32 %v2082, 4294901760
    %3063 = vmatpush1.msra.mxu0 %v3062
    %3064 = vmatprep.subr.mxu0 0.0
    %v3065 = vand.u32 %v2083, 4294901760
    %3066 = vmatpush1.msra.mxu0 %v3065
    %3067 = vmatprep.subr.mxu0 0.0
    %v3068 = vand.u32 %v2084, 4294901760
    %3069 = vmatpush1.msra.mxu0 %v3068
    %3070 = vmatprep.subr.mxu0 0.0
    %v3071 = vand.u32 %v2085, 4294901760
    %3072 = vmatpush1.msra.mxu0 %v3071
    %3073 = vmatprep.subr.mxu0 0.0
    %v3074 = vand.u32 %v2086, 4294901760
    %3075 = vmatpush1.msra.mxu0 %v3074
    %3076 = vmatprep.subr.mxu0 0.0
    %v3077 = vand.u32 %v2087, 4294901760
    %3078 = vmatpush1.msra.mxu0 %v3077
    %3079 = vmatprep.subr.mxu0 0.0
    %v3080 = vand.u32 %v2088, 4294901760
    %3081 = vmatpush1.msra.mxu0 %v3080
    %3082 = vmatprep.subr.mxu0 0.0
    %v3083 = vand.u32 %v2089, 4294901760
    %3084 = vmatpush1.msra.mxu0 %v3083
    %3085 = vmatprep.subr.mxu0 0.0
    %v3086 = vand.u32 %v2090, 4294901760
    %3087 = vmatpush1.msra.mxu0 %v3086
    %3088 = vmatprep.subr.mxu0 0.0
    %v3089 = vand.u32 %v2091, 4294901760
    %3090 = vmatpush1.msra.mxu0 %v3089
    %3091 = vmatprep.subr.mxu0 0.0
    %v3092 = vand.u32 %v2092, 4294901760
    %3093 = vmatpush1.msra.mxu0 %v3092
    %3094 = vmatprep.subr.mxu0 0.0
    %v3095 = vand.u32 %v2093, 4294901760
    %3096 = vmatpush1.msra.mxu0 %v3095
    %3097 = vmatprep.subr.mxu0 0.0
    %v3098 = vand.u32 %v2094, 4294901760
    %3099 = vmatpush1.msra.mxu0 %v3098
    %3100 = vmatprep.subr.mxu0 0.0
    %v3101 = vand.u32 %v2095, 4294901760
    %3102 = vmatpush1.msra.mxu0 %v3101
    %3103 = vmatprep.subr.mxu0 0.0
    %v3104 = vand.u32 %v2096, 4294901760
    %3105 = vmatpush1.msra.mxu0 %v3104
    %3106 = vmatprep.subr.mxu0 0.0
    %v3107 = vand.u32 %v2097, 4294901760
    %3108 = vmatpush1.msra.mxu0 %v3107
    %3109 = vmatprep.subr.mxu0 0.0
    %v3110 = vand.u32 %v2098, 4294901760
    %3111 = vmatpush1.msra.mxu0 %v3110
    %3112 = vmatprep.subr.mxu0 0.0
    %v3113 = vand.u32 %v2099, 4294901760
    %3114 = vmatpush1.msra.mxu0 %v3113
    %3115 = vmatprep.subr.mxu0 0.0
    %v3116 = vand.u32 %v2100, 4294901760
    %3117 = vmatpush1.msra.mxu0 %v3116
    %v3118 = vand.u32 %v2043, 4294901760
    %3119 = vmatprep.mubr.f32.mxu0 %v3118
    %v3120 = vand.u32 %v2033, 4294901760
    %3121 = vmatmul.mubr.f32.gmra.mrb[0].mxu0 %v3120
    %v3122 = vpop.f32.mrb[0].mxu0
    %v3123 = vadd.f32 %v2998, %v3122
    %v3124 = vpop.f32.mrb[0].mxu0
    %v3125 = vand.u32 %v2045, 4294901760
    %3126 = vmatprep.mubr.f32.mxu0 %v3125
    %v3127 = vand.u32 %v2023, 4294901760
    %3128 = vmatmul.mubr.f32.gmra.mrb[0].mxu0 %v3127
    %v3129 = vpop.f32.mrb[0].mxu0
    %v3130 = vadd.f32 %v3005, %v3129
    %v3131 = vpop.f32.mrb[0].mxu0
    %v3132 = vand.u32 %v2048, 4294901760
    %3133 = vmatprep.mubr.f32.mxu0 %v3132
    %v3134 = vand.u32 %v2034, 4294901760
    %3135 = vmatmul.mubr.f32.gmra.mrb[0].mxu0 %v3134
    %v3136 = vpop.f32.mrb[0].mxu0
    %v3137 = vadd.f32 %v3012, %v3136
    %v3138 = vpop.f32.mrb[0].mxu0
    %v3139 = vand.u32 %v2050, 4294901760
    %3140 = vmatprep.mubr.f32.mxu0 %v3139
    %v3141 = vand.u32 %v2026, 4294901760
    %3142 = vmatmul.mubr.f32.gmra.mrb[0].mxu0 %v3141
    %v3143 = vpop.f32.mrb[0].mxu0
    %v3144 = vadd.f32 %v3019, %v3143
    %v3145 = vpop.f32.mrb[0].mxu0
    %3146 = vdwg.mxu0
    %3147 = vmatprep.subr.mxu0 0.0
    %v3148 = vand.u32 %v2101, 4294901760
    %3149 = vmatpush1.msra.mxu0 %v3148
    %3150 = vmatprep.subr.mxu0 0.0
    %v3151 = vand.u32 %v2102, 4294901760
    %3152 = vmatpush1.msra.mxu0 %v3151
    %3153 = vmatprep.subr.mxu0 0.0
    %v3154 = vand.u32 %v2103, 4294901760
    %3155 = vmatpush1.msra.mxu0 %v3154
    %3156 = vmatprep.subr.mxu0 0.0
    %v3157 = vand.u32 %v2104, 4294901760
    %3158 = vmatpush1.msra.mxu0 %v3157
    %3159 = vmatprep.subr.mxu0 0.0
    %v3160 = vand.u32 %v2105, 4294901760
    %3161 = vmatpush1.msra.mxu0 %v3160
    %3162 = vmatprep.subr.mxu0 0.0
    %v3163 = vand.u32 %v2106, 4294901760
    %3164 = vmatpush1.msra.mxu0 %v3163
    %3165 = vmatprep.subr.mxu0 0.0
    %v3166 = vand.u32 %v2107, 4294901760
    %3167 = vmatpush1.msra.mxu0 %v3166
    %3168 = vmatprep.subr.mxu0 0.0
    %v3169 = vand.u32 %v2108, 4294901760
    %3170 = vmatpush1.msra.mxu0 %v3169
    %3171 = vmatprep.subr.mxu0 0.0
    %v3172 = vand.u32 %v2109, 4294901760
    %3173 = vmatpush1.msra.mxu0 %v3172
    %3174 = vmatprep.subr.mxu0 0.0
    %v3175 = vand.u32 %v2110, 4294901760
    %3176 = vmatpush1.msra.mxu0 %v3175
    %3177 = vmatprep.subr.mxu0 0.0
    %v3178 = vand.u32 %v2111, 4294901760
    %3179 = vmatpush1.msra.mxu0 %v3178
    %3180 = vmatprep.subr.mxu0 0.0
    %v3181 = vand.u32 %v2112, 4294901760
    %3182 = vmatpush1.msra.mxu0 %v3181
    %3183 = vmatprep.subr.mxu0 0.0
    %v3184 = vand.u32 %v2113, 4294901760
    %3185 = vmatpush1.msra.mxu0 %v3184
    %3186 = vmatprep.subr.mxu0 0.0
    %v3187 = vand.u32 %v2114, 4294901760
    %3188 = vmatpush1.msra.mxu0 %v3187
    %3189 = vmatprep.subr.mxu0 0.0
    %v3190 = vand.u32 %v2115, 4294901760
    %3191 = vmatpush1.msra.mxu0 %v3190
    %3192 = vmatprep.subr.mxu0 0.0
    %v3193 = vand.u32 %v2116, 4294901760
    %3194 = vmatpush1.msra.mxu0 %v3193
    %3195 = vmatprep.subr.mxu0 0.0
    %3196 = vmatpush1.msra.mxu0 0.0
    %3197 = vmatprep.subr.mxu0 0.0
    %3198 = vmatpush1.msra.mxu0 0.0
    %3199 = vmatprep.subr.mxu0 0.0
    %3200 = vmatpush1.msra.mxu0 0.0
    %3201 = vmatprep.subr.mxu0 0.0
    %3202 = vmatpush1.msra.mxu0 0.0
    %3203 = vmatprep.subr.mxu0 0.0
    %3204 = vmatpush1.msra.mxu0 0.0
    %3205 = vmatprep.subr.mxu0 0.0
    %3206 = vmatpush1.msra.mxu0 0.0
    %3207 = vmatprep.subr.mxu0 0.0
    %3208 = vmatpush1.msra.mxu0 0.0
    %3209 = vmatprep.subr.mxu0 0.0
    %3210 = vmatpush1.msra.mxu0 0.0
    %3211 = vmatprep.subr.mxu0 0.0
    %3212 = vmatpush1.msra.mxu0 0.0
    %3213 = vmatprep.subr.mxu0 0.0
    %3214 = vmatpush1.msra.mxu0 0.0
    %3215 = vmatprep.subr.mxu0 0.0
    %3216 = vmatpush1.msra.mxu0 0.0
    %3217 = vmatprep.subr.mxu0 0.0
    %3218 = vmatpush1.msra.mxu0 0.0
    %3219 = vmatprep.subr.mxu0 0.0
    %3220 = vmatpush1.msra.mxu0 0.0
    %3221 = vmatprep.subr.mxu0 0.0
    %3222 = vmatpush1.msra.mxu0 0.0
    %3223 = vmatprep.subr.mxu0 0.0
    %3224 = vmatpush1.msra.mxu0 0.0
    %3225 = vmatprep.subr.mxu0 0.0
    %3226 = vmatpush1.msra.mxu0 0.0
    %3227 = vmatprep.mubr.f32.mxu0 0.0
    %v3228 = vand.u32 %v2057, 4294901760
    %v3229 = vsub.f32 %v2057, %v3228
    %v3230 = vand.u32 %v3229, 4294901760
    %v3231 = vsub.f32 %v3229, %v3230
    %v3232 = vand.u32 %v3231, 4294901760
    %3233 = vmatmul.mubr.f32.gmra.mrb[0].mxu0 %v3232
    %v3234 = vpop.f32.mrb[0].mxu0
    %v3235 = vadd.f32 %v3123, %v3234
    %v3236 = vpop.f32.mrb[0].mxu0
    %3237 = vmatprep.mubr.f32.mxu0 0.0
    %v3238 = vand.u32 %v2059, 4294901760
    %v3239 = vsub.f32 %v2059, %v3238
    %v3240 = vand.u32 %v3239, 4294901760
    %v3241 = vsub.f32 %v3239, %v3240
    %v3242 = vand.u32 %v3241, 4294901760
    %3243 = vmatmul.mubr.f32.gmra.mrb[0].mxu0 %v3242
    %v3244 = vpop.f32.mrb[0].mxu0
    %v3245 = vadd.f32 %v3130, %v3244
    %v3246 = vpop.f32.mrb[0].mxu0
    %3247 = vmatprep.mubr.f32.mxu0 0.0
    %v3248 = vand.u32 %v2062, 4294901760
    %v3249 = vsub.f32 %v2062, %v3248
    %v3250 = vand.u32 %v3249, 4294901760
    %v3251 = vsub.f32 %v3249, %v3250
    %v3252 = vand.u32 %v3251, 4294901760
    %3253 = vmatmul.mubr.f32.gmra.mrb[0].mxu0 %v3252
    %v3254 = vpop.f32.mrb[0].mxu0
    %v3255 = vadd.f32 %v3137, %v3254
    %v3256 = vpop.f32.mrb[0].mxu0
    %3257 = vmatprep.mubr.f32.mxu0 0.0
    %v3258 = vand.u32 %v2064, 4294901760
    %v3259 = vsub.f32 %v2064, %v3258
    %v3260 = vand.u32 %v3259, 4294901760
    %v3261 = vsub.f32 %v3259, %v3260
    %v3262 = vand.u32 %v3261, 4294901760
    %3263 = vmatmul.mubr.f32.gmra.mrb[0].mxu0 %v3262
    %v3264 = vpop.f32.mrb[0].mxu0
    %v3265 = vadd.f32 %v3144, %v3264
    %v3266 = vpop.f32.mrb[0].mxu0
    %3267 = vdwg.mxu0
    %3268 = vmatprep.subr.mxu0 0.0
    %v3269 = vand.u32 %v2101, 4294901760
    %v3270 = vsub.f32 %v2101, %v3269
    %v3271 = vand.u32 %v3270, 4294901760
    %v3272 = vsub.f32 %v3270, %v3271
    %v3273 = vand.u32 %v3272, 4294901760
    %3274 = vmatpush1.msra.mxu0 %v3273
    %3275 = vmatprep.subr.mxu0 0.0
    %v3276 = vand.u32 %v2102, 4294901760
    %v3277 = vsub.f32 %v2102, %v3276
    %v3278 = vand.u32 %v3277, 4294901760
    %v3279 = vsub.f32 %v3277, %v3278
    %v3280 = vand.u32 %v3279, 4294901760
    %3281 = vmatpush1.msra.mxu0 %v3280
    %3282 = vmatprep.subr.mxu0 0.0
    %v3283 = vand.u32 %v2103, 4294901760
    %v3284 = vsub.f32 %v2103, %v3283
    %v3285 = vand.u32 %v3284, 4294901760
    %v3286 = vsub.f32 %v3284, %v3285
    %v3287 = vand.u32 %v3286, 4294901760
    %3288 = vmatpush1.msra.mxu0 %v3287
    %3289 = vmatprep.subr.mxu0 0.0
    %v3290 = vand.u32 %v2104, 4294901760
    %v3291 = vsub.f32 %v2104, %v3290
    %v3292 = vand.u32 %v3291, 4294901760
    %v3293 = vsub.f32 %v3291, %v3292
    %v3294 = vand.u32 %v3293, 4294901760
    %3295 = vmatpush1.msra.mxu0 %v3294
    %3296 = vmatprep.subr.mxu0 0.0
    %v3297 = vand.u32 %v2105, 4294901760
    %v3298 = vsub.f32 %v2105, %v3297
    %v3299 = vand.u32 %v3298, 4294901760
    %v3300 = vsub.f32 %v3298, %v3299
    %v3301 = vand.u32 %v3300, 4294901760
    %3302 = vmatpush1.msra.mxu0 %v3301
    %3303 = vmatprep.subr.mxu0 0.0
    %v3304 = vand.u32 %v2106, 4294901760
    %v3305 = vsub.f32 %v2106, %v3304
    %v3306 = vand.u32 %v3305, 4294901760
    %v3307 = vsub.f32 %v3305, %v3306
    %v3308 = vand.u32 %v3307, 4294901760
    %3309 = vmatpush1.msra.mxu0 %v3308
    %3310 = vmatprep.subr.mxu0 0.0
    %v3311 = vand.u32 %v2107, 4294901760
    %v3312 = vsub.f32 %v2107, %v3311
    %v3313 = vand.u32 %v3312, 4294901760
    %v3314 = vsub.f32 %v3312, %v3313
    %v3315 = vand.u32 %v3314, 4294901760
    %3316 = vmatpush1.msra.mxu0 %v3315
    %3317 = vmatprep.subr.mxu0 0.0
    %v3318 = vand.u32 %v2108, 4294901760
    %v3319 = vsub.f32 %v2108, %v3318
    %v3320 = vand.u32 %v3319, 4294901760
    %v3321 = vsub.f32 %v3319, %v3320
    %v3322 = vand.u32 %v3321, 4294901760
    %3323 = vmatpush1.msra.mxu0 %v3322
    %3324 = vmatprep.subr.mxu0 0.0
    %v3325 = vand.u32 %v2109, 4294901760
    %v3326 = vsub.f32 %v2109, %v3325
    %v3327 = vand.u32 %v3326, 4294901760
    %v3328 = vsub.f32 %v3326, %v3327
    %v3329 = vand.u32 %v3328, 4294901760
    %3330 = vmatpush1.msra.mxu0 %v3329
    %3331 = vmatprep.subr.mxu0 0.0
    %v3332 = vand.u32 %v2110, 4294901760
    %v3333 = vsub.f32 %v2110, %v3332
    %v3334 = vand.u32 %v3333, 4294901760
    %v3335 = vsub.f32 %v3333, %v3334
    %v3336 = vand.u32 %v3335, 4294901760
    %3337 = vmatpush1.msra.mxu0 %v3336
    %3338 = vmatprep.subr.mxu0 0.0
    %v3339 = vand.u32 %v2111, 4294901760
    %v3340 = vsub.f32 %v2111, %v3339
    %v3341 = vand.u32 %v3340, 4294901760
    %v3342 = vsub.f32 %v3340, %v3341
    %v3343 = vand.u32 %v3342, 4294901760
    %3344 = vmatpush1.msra.mxu0 %v3343
    %3345 = vmatprep.subr.mxu0 0.0
    %v3346 = vand.u32 %v2112, 4294901760
    %v3347 = vsub.f32 %v2112, %v3346
    %v3348 = vand.u32 %v3347, 4294901760
    %v3349 = vsub.f32 %v3347, %v3348
    %v3350 = vand.u32 %v3349, 4294901760
    %3351 = vmatpush1.msra.mxu0 %v3350
    %3352 = vmatprep.subr.mxu0 0.0
    %v3353 = vand.u32 %v2113, 4294901760
    %v3354 = vsub.f32 %v2113, %v3353
    %v3355 = vand.u32 %v3354, 4294901760
    %v3356 = vsub.f32 %v3354, %v3355
    %v3357 = vand.u32 %v3356, 4294901760
    %3358 = vmatpush1.msra.mxu0 %v3357
    %3359 = vmatprep.subr.mxu0 0.0
    %v3360 = vand.u32 %v2114, 4294901760
    %v3361 = vsub.f32 %v2114, %v3360
    %v3362 = vand.u32 %v3361, 4294901760
    %v3363 = vsub.f32 %v3361, %v3362
    %v3364 = vand.u32 %v3363, 4294901760
    %3365 = vmatpush1.msra.mxu0 %v3364
    %3366 = vmatprep.subr.mxu0 0.0
    %v3367 = vand.u32 %v2115, 4294901760
    %v3368 = vsub.f32 %v2115, %v3367
    %v3369 = vand.u32 %v3368, 4294901760
    %v3370 = vsub.f32 %v3368, %v3369
    %v3371 = vand.u32 %v3370, 4294901760
    %3372 = vmatpush1.msra.mxu0 %v3371
    %3373 = vmatprep.subr.mxu0 0.0
    %v3374 = vand.u32 %v2116, 4294901760
    %v3375 = vsub.f32 %v2116, %v3374
    %v3376 = vand.u32 %v3375, 4294901760
    %v3377 = vsub.f32 %v3375, %v3376
    %v3378 = vand.u32 %v3377, 4294901760
    %3379 = vmatpush1.msra.mxu0 %v3378
    %3380 = vmatprep.subr.mxu0 0.0
    %3381 = vmatpush1.msra.mxu0 0.0
    %3382 = vmatprep.subr.mxu0 0.0
    %3383 = vmatpush1.msra.mxu0 0.0
    %3384 = vmatprep.subr.mxu0 0.0
    %3385 = vmatpush1.msra.mxu0 0.0
    %3386 = vmatprep.subr.mxu0 0.0
    %3387 = vmatpush1.msra.mxu0 0.0
    %3388 = vmatprep.subr.mxu0 0.0
    %3389 = vmatpush1.msra.mxu0 0.0
    %3390 = vmatprep.subr.mxu0 0.0
    %3391 = vmatpush1.msra.mxu0 0.0
    %3392 = vmatprep.subr.mxu0 0.0
    %3393 = vmatpush1.msra.mxu0 0.0
    %3394 = vmatprep.subr.mxu0 0.0
    %3395 = vmatpush1.msra.mxu0 0.0
    %3396 = vmatprep.subr.mxu0 0.0
    %3397 = vmatpush1.msra.mxu0 0.0
    %3398 = vmatprep.subr.mxu0 0.0
    %3399 = vmatpush1.msra.mxu0 0.0
    %3400 = vmatprep.subr.mxu0 0.0
    %3401 = vmatpush1.msra.mxu0 0.0
    %3402 = vmatprep.subr.mxu0 0.0
    %3403 = vmatpush1.msra.mxu0 0.0
    %3404 = vmatprep.subr.mxu0 0.0
    %3405 = vmatpush1.msra.mxu0 0.0
    %3406 = vmatprep.subr.mxu0 0.0
    %3407 = vmatpush1.msra.mxu0 0.0
    %3408 = vmatprep.subr.mxu0 0.0
    %3409 = vmatpush1.msra.mxu0 0.0
    %3410 = vmatprep.subr.mxu0 0.0
    %3411 = vmatpush1.msra.mxu0 0.0
    %3412 = vmatprep.mubr.f32.mxu0 0.0
    %v3413 = vand.u32 %v2057, 4294901760
    %3414 = vmatmul.mubr.f32.gmra.mrb[0].mxu0 %v3413
    %v3415 = vpop.f32.mrb[0].mxu0
    %v3416 = vadd.f32 %v3235, %v3415
    %v3417 = vpop.f32.mrb[0].mxu0
    %3418 = vmatprep.mubr.f32.mxu0 0.0
    %v3419 = vand.u32 %v2059, 4294901760
    %3420 = vmatmul.mubr.f32.gmra.mrb[0].mxu0 %v3419
    %v3421 = vpop.f32.mrb[0].mxu0
    %v3422 = vadd.f32 %v3245, %v3421
    %v3423 = vpop.f32.mrb[0].mxu0
    %3424 = vmatprep.mubr.f32.mxu0 0.0
    %v3425 = vand.u32 %v2062, 4294901760
    %3426 = vmatmul.mubr.f32.gmra.mrb[0].mxu0 %v3425
    %v3427 = vpop.f32.mrb[0].mxu0
    %v3428 = vadd.f32 %v3255, %v3427
    %v3429 = vpop.f32.mrb[0].mxu0
    %3430 = vmatprep.mubr.f32.mxu0 0.0
    %v3431 = vand.u32 %v2064, 4294901760
    %3432 = vmatmul.mubr.f32.gmra.mrb[0].mxu0 %v3431
    %v3433 = vpop.f32.mrb[0].mxu0
    %v3434 = vadd.f32 %v3265, %v3433
    %v3435 = vpop.f32.mrb[0].mxu0
    %3436 = vdwg.mxu0
    %3437 = vmatprep.subr.mxu0 0.0
    %v3438 = vand.u32 %v2101, 4294901760
    %v3439 = vsub.f32 %v2101, %v3438
    %3440 = vmatpush1.msra.mxu0 %v3439
    %3441 = vmatprep.subr.mxu0 0.0
    %v3442 = vand.u32 %v2102, 4294901760
    %v3443 = vsub.f32 %v2102, %v3442
    %3444 = vmatpush1.msra.mxu0 %v3443
    %3445 = vmatprep.subr.mxu0 0.0
    %v3446 = vand.u32 %v2103, 4294901760
    %v3447 = vsub.f32 %v2103, %v3446
    %3448 = vmatpush1.msra.mxu0 %v3447
    %3449 = vmatprep.subr.mxu0 0.0
    %v3450 = vand.u32 %v2104, 4294901760
    %v3451 = vsub.f32 %v2104, %v3450
    %3452 = vmatpush1.msra.mxu0 %v3451
    %3453 = vmatprep.subr.mxu0 0.0
    %v3454 = vand.u32 %v2105, 4294901760
    %v3455 = vsub.f32 %v2105, %v3454
    %3456 = vmatpush1.msra.mxu0 %v3455
    %3457 = vmatprep.subr.mxu0 0.0
    %v3458 = vand.u32 %v2106, 4294901760
    %v3459 = vsub.f32 %v2106, %v3458
    %3460 = vmatpush1.msra.mxu0 %v3459
    %3461 = vmatprep.subr.mxu0 0.0
    %v3462 = vand.u32 %v2107, 4294901760
    %v3463 = vsub.f32 %v2107, %v3462
    %3464 = vmatpush1.msra.mxu0 %v3463
    %3465 = vmatprep.subr.mxu0 0.0
    %v3466 = vand.u32 %v2108, 4294901760
    %v3467 = vsub.f32 %v2108, %v3466
    %3468 = vmatpush1.msra.mxu0 %v3467
    %3469 = vmatprep.subr.mxu0 0.0
    %v3470 = vand.u32 %v2109, 4294901760
    %v3471 = vsub.f32 %v2109, %v3470
    %3472 = vmatpush1.msra.mxu0 %v3471
    %3473 = vmatprep.subr.mxu0 0.0
    %v3474 = vand.u32 %v2110, 4294901760
    %v3475 = vsub.f32 %v2110, %v3474
    %3476 = vmatpush1.msra.mxu0 %v3475
    %3477 = vmatprep.subr.mxu0 0.0
    %v3478 = vand.u32 %v2111, 4294901760
    %v3479 = vsub.f32 %v2111, %v3478
    %3480 = vmatpush1.msra.mxu0 %v3479
    %3481 = vmatprep.subr.mxu0 0.0
    %v3482 = vand.u32 %v2112, 4294901760
    %v3483 = vsub.f32 %v2112, %v3482
    %3484 = vmatpush1.msra.mxu0 %v3483
    %3485 = vmatprep.subr.mxu0 0.0
    %v3486 = vand.u32 %v2113, 4294901760
    %v3487 = vsub.f32 %v2113, %v3486
    %3488 = vmatpush1.msra.mxu0 %v3487
    %3489 = vmatprep.subr.mxu0 0.0
    %v3490 = vand.u32 %v2114, 4294901760
    %v3491 = vsub.f32 %v2114, %v3490
    %3492 = vmatpush1.msra.mxu0 %v3491
    %3493 = vmatprep.subr.mxu0 0.0
    %v3494 = vand.u32 %v2115, 4294901760
    %v3495 = vsub.f32 %v2115, %v3494
    %3496 = vmatpush1.msra.mxu0 %v3495
    %3497 = vmatprep.subr.mxu0 0.0
    %v3498 = vand.u32 %v2116, 4294901760
    %v3499 = vsub.f32 %v2116, %v3498
    %3500 = vmatpush1.msra.mxu0 %v3499
    %3501 = vmatprep.subr.mxu0 0.0
    %3502 = vmatpush1.msra.mxu0 0.0
    %3503 = vmatprep.subr.mxu0 0.0
    %3504 = vmatpush1.msra.mxu0 0.0
    %3505 = vmatprep.subr.mxu0 0.0
    %3506 = vmatpush1.msra.mxu0 0.0
    %3507 = vmatprep.subr.mxu0 0.0
    %3508 = vmatpush1.msra.mxu0 0.0
    %3509 = vmatprep.subr.mxu0 0.0
    %3510 = vmatpush1.msra.mxu0 0.0
    %3511 = vmatprep.subr.mxu0 0.0
    %3512 = vmatpush1.msra.mxu0 0.0
    %3513 = vmatprep.subr.mxu0 0.0
    %3514 = vmatpush1.msra.mxu0 0.0
    %3515 = vmatprep.subr.mxu0 0.0
    %3516 = vmatpush1.msra.mxu0 0.0
    %3517 = vmatprep.subr.mxu0 0.0
    %3518 = vmatpush1.msra.mxu0 0.0
    %3519 = vmatprep.subr.mxu0 0.0
    %3520 = vmatpush1.msra.mxu0 0.0
    %3521 = vmatprep.subr.mxu0 0.0
    %3522 = vmatpush1.msra.mxu0 0.0
    %3523 = vmatprep.subr.mxu0 0.0
    %3524 = vmatpush1.msra.mxu0 0.0
    %3525 = vmatprep.subr.mxu0 0.0
    %3526 = vmatpush1.msra.mxu0 0.0
    %3527 = vmatprep.subr.mxu0 0.0
    %3528 = vmatpush1.msra.mxu0 0.0
    %3529 = vmatprep.subr.mxu0 0.0
    %3530 = vmatpush1.msra.mxu0 0.0
    %3531 = vmatprep.subr.mxu0 0.0
    %3532 = vmatpush1.msra.mxu0 0.0
    %3533 = vmatprep.mubr.f32.mxu0 0.0
    %v3534 = vand.u32 %v2057, 4294901760
    %v3535 = vsub.f32 %v2057, %v3534
    %3536 = vmatmul.mubr.f32.gmra.mrb[0].mxu0 %v3535
    %v3537 = vpop.f32.mrb[0].mxu0
    %v3538 = vadd.f32 %v3416, %v3537
    %v3539 = vpop.f32.mrb[0].mxu0
    %3540 = vmatprep.mubr.f32.mxu0 0.0
    %v3541 = vand.u32 %v2059, 4294901760
    %v3542 = vsub.f32 %v2059, %v3541
    %3543 = vmatmul.mubr.f32.gmra.mrb[0].mxu0 %v3542
    %v3544 = vpop.f32.mrb[0].mxu0
    %v3545 = vadd.f32 %v3422, %v3544
    %v3546 = vpop.f32.mrb[0].mxu0
    %3547 = vmatprep.mubr.f32.mxu0 0.0
    %v3548 = vand.u32 %v2062, 4294901760
    %v3549 = vsub.f32 %v2062, %v3548
    %3550 = vmatmul.mubr.f32.gmra.mrb[0].mxu0 %v3549
    %v3551 = vpop.f32.mrb[0].mxu0
    %v3552 = vadd.f32 %v3428, %v3551
    %v3553 = vpop.f32.mrb[0].mxu0
    %3554 = vmatprep.mubr.f32.mxu0 0.0
    %v3555 = vand.u32 %v2064, 4294901760
    %v3556 = vsub.f32 %v2064, %v3555
    %3557 = vmatmul.mubr.f32.gmra.mrb[0].mxu0 %v3556
    %v3558 = vpop.f32.mrb[0].mxu0
    %v3559 = vadd.f32 %v3434, %v3558
    %v3560 = vpop.f32.mrb[0].mxu0
    %3561 = vdwg.mxu0
    %3562 = vmatprep.subr.mxu0 0.0
    %v3563 = vand.u32 %v2101, 4294901760
    %3564 = vmatpush1.msra.mxu0 %v3563
    %3565 = vmatprep.subr.mxu0 0.0
    %v3566 = vand.u32 %v2102, 4294901760
    %3567 = vmatpush1.msra.mxu0 %v3566
    %3568 = vmatprep.subr.mxu0 0.0
    %v3569 = vand.u32 %v2103, 4294901760
    %3570 = vmatpush1.msra.mxu0 %v3569
    %3571 = vmatprep.subr.mxu0 0.0
    %v3572 = vand.u32 %v2104, 4294901760
    %3573 = vmatpush1.msra.mxu0 %v3572
    %3574 = vmatprep.subr.mxu0 0.0
    %v3575 = vand.u32 %v2105, 4294901760
    %3576 = vmatpush1.msra.mxu0 %v3575
    %3577 = vmatprep.subr.mxu0 0.0
    %v3578 = vand.u32 %v2106, 4294901760
    %3579 = vmatpush1.msra.mxu0 %v3578
    %3580 = vmatprep.subr.mxu0 0.0
    %v3581 = vand.u32 %v2107, 4294901760
    %3582 = vmatpush1.msra.mxu0 %v3581
    %3583 = vmatprep.subr.mxu0 0.0
    %v3584 = vand.u32 %v2108, 4294901760
    %3585 = vmatpush1.msra.mxu0 %v3584
    %3586 = vmatprep.subr.mxu0 0.0
    %v3587 = vand.u32 %v2109, 4294901760
    %3588 = vmatpush1.msra.mxu0 %v3587
    %3589 = vmatprep.subr.mxu0 0.0
    %v3590 = vand.u32 %v2110, 4294901760
    %3591 = vmatpush1.msra.mxu0 %v3590
    %3592 = vmatprep.subr.mxu0 0.0
    %v3593 = vand.u32 %v2111, 4294901760
    %3594 = vmatpush1.msra.mxu0 %v3593
    %3595 = vmatprep.subr.mxu0 0.0
    %v3596 = vand.u32 %v2112, 4294901760
    %3597 = vmatpush1.msra.mxu0 %v3596
    %3598 = vmatprep.subr.mxu0 0.0
    %v3599 = vand.u32 %v2113, 4294901760
    %3600 = vmatpush1.msra.mxu0 %v3599
    %3601 = vmatprep.subr.mxu0 0.0
    %v3602 = vand.u32 %v2114, 4294901760
    %3603 = vmatpush1.msra.mxu0 %v3602
    %3604 = vmatprep.subr.mxu0 0.0
    %v3605 = vand.u32 %v2115, 4294901760
    %3606 = vmatpush1.msra.mxu0 %v3605
    %3607 = vmatprep.subr.mxu0 0.0
    %v3608 = vand.u32 %v2116, 4294901760
    %3609 = vmatpush1.msra.mxu0 %v3608
    %3610 = vmatprep.subr.mxu0 0.0
    %3611 = vmatpush1.msra.mxu0 0.0
    %3612 = vmatprep.subr.mxu0 0.0
    %3613 = vmatpush1.msra.mxu0 0.0
    %3614 = vmatprep.subr.mxu0 0.0
    %3615 = vmatpush1.msra.mxu0 0.0
    %3616 = vmatprep.subr.mxu0 0.0
    %3617 = vmatpush1.msra.mxu0 0.0
    %3618 = vmatprep.subr.mxu0 0.0
    %3619 = vmatpush1.msra.mxu0 0.0
    %3620 = vmatprep.subr.mxu0 0.0
    %3621 = vmatpush1.msra.mxu0 0.0
    %3622 = vmatprep.subr.mxu0 0.0
    %3623 = vmatpush1.msra.mxu0 0.0
    %3624 = vmatprep.subr.mxu0 0.0
    %3625 = vmatpush1.msra.mxu0 0.0
    %3626 = vmatprep.subr.mxu0 0.0
    %3627 = vmatpush1.msra.mxu0 0.0
    %3628 = vmatprep.subr.mxu0 0.0
    %3629 = vmatpush1.msra.mxu0 0.0
    %3630 = vmatprep.subr.mxu0 0.0
    %3631 = vmatpush1.msra.mxu0 0.0
    %3632 = vmatprep.subr.mxu0 0.0
    %3633 = vmatpush1.msra.mxu0 0.0
    %3634 = vmatprep.subr.mxu0 0.0
    %3635 = vmatpush1.msra.mxu0 0.0
    %3636 = vmatprep.subr.mxu0 0.0
    %3637 = vmatpush1.msra.mxu0 0.0
    %3638 = vmatprep.subr.mxu0 0.0
    %3639 = vmatpush1.msra.mxu0 0.0
    %3640 = vmatprep.subr.mxu0 0.0
    %3641 = vmatpush1.msra.mxu0 0.0
    %3642 = vmatprep.mubr.f32.mxu0 0.0
    %v3643 = vand.u32 %v2057, 4294901760
    %v3644 = vsub.f32 %v2057, %v3643
    %v3645 = vand.u32 %v3644, 4294901760
    %3646 = vmatmul.mubr.f32.gmra.mrb[0].mxu0 %v3645
    %v3647 = vpop.f32.mrb[0].mxu0
    %v3648 = vadd.f32 %v3538, %v3647
    %v3649 = vpop.f32.mrb[0].mxu0
    %3650 = vmatprep.mubr.f32.mxu0 0.0
    %v3651 = vand.u32 %v2059, 4294901760
    %v3652 = vsub.f32 %v2059, %v3651
    %v3653 = vand.u32 %v3652, 4294901760
    %3654 = vmatmul.mubr.f32.gmra.mrb[0].mxu0 %v3653
    %v3655 = vpop.f32.mrb[0].mxu0
    %v3656 = vadd.f32 %v3545, %v3655
    %v3657 = vpop.f32.mrb[0].mxu0
    %3658 = vmatprep.mubr.f32.mxu0 0.0
    %v3659 = vand.u32 %v2062, 4294901760
    %v3660 = vsub.f32 %v2062, %v3659
    %v3661 = vand.u32 %v3660, 4294901760
    %3662 = vmatmul.mubr.f32.gmra.mrb[0].mxu0 %v3661
    %v3663 = vpop.f32.mrb[0].mxu0
    %v3664 = vadd.f32 %v3552, %v3663
    %v3665 = vpop.f32.mrb[0].mxu0
    %3666 = vmatprep.mubr.f32.mxu0 0.0
    %v3667 = vand.u32 %v2064, 4294901760
    %v3668 = vsub.f32 %v2064, %v3667
    %v3669 = vand.u32 %v3668, 4294901760
    %3670 = vmatmul.mubr.f32.gmra.mrb[0].mxu0 %v3669
    %v3671 = vpop.f32.mrb[0].mxu0
    %v3672 = vadd.f32 %v3559, %v3671
    %v3673 = vpop.f32.mrb[0].mxu0
    %3674 = vdwg.mxu0
    %3675 = vmatprep.subr.mxu0 0.0
    %v3676 = vand.u32 %v2101, 4294901760
    %v3677 = vsub.f32 %v2101, %v3676
    %v3678 = vand.u32 %v3677, 4294901760
    %3679 = vmatpush1.msra.mxu0 %v3678
    %3680 = vmatprep.subr.mxu0 0.0
    %v3681 = vand.u32 %v2102, 4294901760
    %v3682 = vsub.f32 %v2102, %v3681
    %v3683 = vand.u32 %v3682, 4294901760
    %3684 = vmatpush1.msra.mxu0 %v3683
    %3685 = vmatprep.subr.mxu0 0.0
    %v3686 = vand.u32 %v2103, 4294901760
    %v3687 = vsub.f32 %v2103, %v3686
    %v3688 = vand.u32 %v3687, 4294901760
    %3689 = vmatpush1.msra.mxu0 %v3688
    %3690 = vmatprep.subr.mxu0 0.0
    %v3691 = vand.u32 %v2104, 4294901760
    %v3692 = vsub.f32 %v2104, %v3691
    %v3693 = vand.u32 %v3692, 4294901760
    %3694 = vmatpush1.msra.mxu0 %v3693
    %3695 = vmatprep.subr.mxu0 0.0
    %v3696 = vand.u32 %v2105, 4294901760
    %v3697 = vsub.f32 %v2105, %v3696
    %v3698 = vand.u32 %v3697, 4294901760
    %3699 = vmatpush1.msra.mxu0 %v3698
    %3700 = vmatprep.subr.mxu0 0.0
    %v3701 = vand.u32 %v2106, 4294901760
    %v3702 = vsub.f32 %v2106, %v3701
    %v3703 = vand.u32 %v3702, 4294901760
    %3704 = vmatpush1.msra.mxu0 %v3703
    %3705 = vmatprep.subr.mxu0 0.0
    %v3706 = vand.u32 %v2107, 4294901760
    %v3707 = vsub.f32 %v2107, %v3706
    %v3708 = vand.u32 %v3707, 4294901760
    %3709 = vmatpush1.msra.mxu0 %v3708
    %3710 = vmatprep.subr.mxu0 0.0
    %v3711 = vand.u32 %v2108, 4294901760
    %v3712 = vsub.f32 %v2108, %v3711
    %v3713 = vand.u32 %v3712, 4294901760
    %3714 = vmatpush1.msra.mxu0 %v3713
    %3715 = vmatprep.subr.mxu0 0.0
    %v3716 = vand.u32 %v2109, 4294901760
    %v3717 = vsub.f32 %v2109, %v3716
    %v3718 = vand.u32 %v3717, 4294901760
    %3719 = vmatpush1.msra.mxu0 %v3718
    %3720 = vmatprep.subr.mxu0 0.0
    %v3721 = vand.u32 %v2110, 4294901760
    %v3722 = vsub.f32 %v2110, %v3721
    %v3723 = vand.u32 %v3722, 4294901760
    %3724 = vmatpush1.msra.mxu0 %v3723
    %3725 = vmatprep.subr.mxu0 0.0
    %v3726 = vand.u32 %v2111, 4294901760
    %v3727 = vsub.f32 %v2111, %v3726
    %v3728 = vand.u32 %v3727, 4294901760
    %3729 = vmatpush1.msra.mxu0 %v3728
    %3730 = vmatprep.subr.mxu0 0.0
    %v3731 = vand.u32 %v2112, 4294901760
    %v3732 = vsub.f32 %v2112, %v3731
    %v3733 = vand.u32 %v3732, 4294901760
    %3734 = vmatpush1.msra.mxu0 %v3733
    %3735 = vmatprep.subr.mxu0 0.0
    %v3736 = vand.u32 %v2113, 4294901760
    %v3737 = vsub.f32 %v2113, %v3736
    %v3738 = vand.u32 %v3737, 4294901760
    %3739 = vmatpush1.msra.mxu0 %v3738
    %3740 = vmatprep.subr.mxu0 0.0
    %v3741 = vand.u32 %v2114, 4294901760
    %v3742 = vsub.f32 %v2114, %v3741
    %v3743 = vand.u32 %v3742, 4294901760
    %3744 = vmatpush1.msra.mxu0 %v3743
    %3745 = vmatprep.subr.mxu0 0.0
    %v3746 = vand.u32 %v2115, 4294901760
    %v3747 = vsub.f32 %v2115, %v3746
    %v3748 = vand.u32 %v3747, 4294901760
    %3749 = vmatpush1.msra.mxu0 %v3748
    %3750 = vmatprep.subr.mxu0 0.0
    %v3751 = vand.u32 %v2116, 4294901760
    %v3752 = vsub.f32 %v2116, %v3751
    %v3753 = vand.u32 %v3752, 4294901760
    %3754 = vmatpush1.msra.mxu0 %v3753
    %3755 = vmatprep.subr.mxu0 0.0
    %3756 = vmatpush1.msra.mxu0 0.0
    %3757 = vmatprep.subr.mxu0 0.0
    %3758 = vmatpush1.msra.mxu0 0.0
    %3759 = vmatprep.subr.mxu0 0.0
    %3760 = vmatpush1.msra.mxu0 0.0
    %3761 = vmatprep.subr.mxu0 0.0
    %3762 = vmatpush1.msra.mxu0 0.0
    %3763 = vmatprep.subr.mxu0 0.0
    %3764 = vmatpush1.msra.mxu0 0.0
    %3765 = vmatprep.subr.mxu0 0.0
    %3766 = vmatpush1.msra.mxu0 0.0
    %3767 = vmatprep.subr.mxu0 0.0
    %3768 = vmatpush1.msra.mxu0 0.0
    %3769 = vmatprep.subr.mxu0 0.0
    %3770 = vmatpush1.msra.mxu0 0.0
    %3771 = vmatprep.subr.mxu0 0.0
    %3772 = vmatpush1.msra.mxu0 0.0
    %3773 = vmatprep.subr.mxu0 0.0
    %3774 = vmatpush1.msra.mxu0 0.0
    %3775 = vmatprep.subr.mxu0 0.0
    %3776 = vmatpush1.msra.mxu0 0.0
    %3777 = vmatprep.subr.mxu0 0.0
    %3778 = vmatpush1.msra.mxu0 0.0
    %3779 = vmatprep.subr.mxu0 0.0
    %3780 = vmatpush1.msra.mxu0 0.0
    %3781 = vmatprep.subr.mxu0 0.0
    %3782 = vmatpush1.msra.mxu0 0.0
    %3783 = vmatprep.subr.mxu0 0.0
    %3784 = vmatpush1.msra.mxu0 0.0
    %3785 = vmatprep.subr.mxu0 0.0
    %3786 = vmatpush1.msra.mxu0 0.0
    %3787 = vmatprep.mubr.f32.mxu0 0.0
    %v3788 = vand.u32 %v2057, 4294901760
    %3789 = vmatmul.mubr.f32.gmra.mrb[0].mxu0 %v3788
    %v3790 = vpop.f32.mrb[0].mxu0
    %v3791 = vadd.f32 %v3648, %v3790
    %v3792 = vpop.f32.mrb[0].mxu0
    %3793 = vmatprep.mubr.f32.mxu0 0.0
    %v3794 = vand.u32 %v2059, 4294901760
    %3795 = vmatmul.mubr.f32.gmra.mrb[0].mxu0 %v3794
    %v3796 = vpop.f32.mrb[0].mxu0
    %v3797 = vadd.f32 %v3656, %v3796
    %v3798 = vpop.f32.mrb[0].mxu0
    %3799 = vmatprep.mubr.f32.mxu0 0.0
    %v3800 = vand.u32 %v2062, 4294901760
    %3801 = vmatmul.mubr.f32.gmra.mrb[0].mxu0 %v3800
    %v3802 = vpop.f32.mrb[0].mxu0
    %v3803 = vadd.f32 %v3664, %v3802
    %v3804 = vpop.f32.mrb[0].mxu0
    %3805 = vmatprep.mubr.f32.mxu0 0.0
    %v3806 = vand.u32 %v2064, 4294901760
    %3807 = vmatmul.mubr.f32.gmra.mrb[0].mxu0 %v3806
    %v3808 = vpop.f32.mrb[0].mxu0
    %v3809 = vadd.f32 %v3672, %v3808
    %v3810 = vpop.f32.mrb[0].mxu0
    %3811 = vdwg.mxu0
    %3812 = vmatprep.subr.mxu0 0.0
    %v3813 = vand.u32 %v2101, 4294901760
    %3814 = vmatpush1.msra.mxu0 %v3813
    %3815 = vmatprep.subr.mxu0 0.0
    %v3816 = vand.u32 %v2102, 4294901760
    %3817 = vmatpush1.msra.mxu0 %v3816
    %3818 = vmatprep.subr.mxu0 0.0
    %v3819 = vand.u32 %v2103, 4294901760
    %3820 = vmatpush1.msra.mxu0 %v3819
    %3821 = vmatprep.subr.mxu0 0.0
    %v3822 = vand.u32 %v2104, 4294901760
    %3823 = vmatpush1.msra.mxu0 %v3822
    %3824 = vmatprep.subr.mxu0 0.0
    %v3825 = vand.u32 %v2105, 4294901760
    %3826 = vmatpush1.msra.mxu0 %v3825
    %3827 = vmatprep.subr.mxu0 0.0
    %v3828 = vand.u32 %v2106, 4294901760
    %3829 = vmatpush1.msra.mxu0 %v3828
    %3830 = vmatprep.subr.mxu0 0.0
    %v3831 = vand.u32 %v2107, 4294901760
    %3832 = vmatpush1.msra.mxu0 %v3831
    %3833 = vmatprep.subr.mxu0 0.0
    %v3834 = vand.u32 %v2108, 4294901760
    %3835 = vmatpush1.msra.mxu0 %v3834
    %3836 = vmatprep.subr.mxu0 0.0
    %v3837 = vand.u32 %v2109, 4294901760
    %3838 = vmatpush1.msra.mxu0 %v3837
    %3839 = vmatprep.subr.mxu0 0.0
    %v3840 = vand.u32 %v2110, 4294901760
    %3841 = vmatpush1.msra.mxu0 %v3840
    %3842 = vmatprep.subr.mxu0 0.0
    %v3843 = vand.u32 %v2111, 4294901760
    %3844 = vmatpush1.msra.mxu0 %v3843
    %3845 = vmatprep.subr.mxu0 0.0
    %v3846 = vand.u32 %v2112, 4294901760
    %3847 = vmatpush1.msra.mxu0 %v3846
    %3848 = vmatprep.subr.mxu0 0.0
    %v3849 = vand.u32 %v2113, 4294901760
    %3850 = vmatpush1.msra.mxu0 %v3849
    %3851 = vmatprep.subr.mxu0 0.0
    %v3852 = vand.u32 %v2114, 4294901760
    %3853 = vmatpush1.msra.mxu0 %v3852
    %3854 = vmatprep.subr.mxu0 0.0
    %v3855 = vand.u32 %v2115, 4294901760
    %3856 = vmatpush1.msra.mxu0 %v3855
    %3857 = vmatprep.subr.mxu0 0.0
    %v3858 = vand.u32 %v2116, 4294901760
    %3859 = vmatpush1.msra.mxu0 %v3858
    %3860 = vmatprep.subr.mxu0 0.0
    %3861 = vmatpush1.msra.mxu0 0.0
    %3862 = vmatprep.subr.mxu0 0.0
    %3863 = vmatpush1.msra.mxu0 0.0
    %3864 = vmatprep.subr.mxu0 0.0
    %3865 = vmatpush1.msra.mxu0 0.0
    %3866 = vmatprep.subr.mxu0 0.0
    %3867 = vmatpush1.msra.mxu0 0.0
    %3868 = vmatprep.subr.mxu0 0.0
    %3869 = vmatpush1.msra.mxu0 0.0
    %3870 = vmatprep.subr.mxu0 0.0
    %3871 = vmatpush1.msra.mxu0 0.0
    %3872 = vmatprep.subr.mxu0 0.0
    %3873 = vmatpush1.msra.mxu0 0.0
    %3874 = vmatprep.subr.mxu0 0.0
    %3875 = vmatpush1.msra.mxu0 0.0
    %3876 = vmatprep.subr.mxu0 0.0
    %3877 = vmatpush1.msra.mxu0 0.0
    %3878 = vmatprep.subr.mxu0 0.0
    %3879 = vmatpush1.msra.mxu0 0.0
    %3880 = vmatprep.subr.mxu0 0.0
    %3881 = vmatpush1.msra.mxu0 0.0
    %3882 = vmatprep.subr.mxu0 0.0
    %3883 = vmatpush1.msra.mxu0 0.0
    %3884 = vmatprep.subr.mxu0 0.0
    %3885 = vmatpush1.msra.mxu0 0.0
    %3886 = vmatprep.subr.mxu0 0.0
    %3887 = vmatpush1.msra.mxu0 0.0
    %3888 = vmatprep.subr.mxu0 0.0
    %3889 = vmatpush1.msra.mxu0 0.0
    %3890 = vmatprep.subr.mxu0 0.0
    %3891 = vmatpush1.msra.mxu0 0.0
    %3892 = vmatprep.mubr.f32.mxu0 0.0
    %v3893 = vand.u32 %v2057, 4294901760
    %3894 = vmatmul.mubr.f32.gmra.mrb[0].mxu0 %v3893
    %v3895 = vpop.f32.mrb[0].mxu0
    %v3896 = vadd.f32 %v3791, %v3895
    %v3897 = vpop.f32.mrb[0].mxu0
    %3898 = vmatprep.mubr.f32.mxu0 0.0
    %v3899 = vand.u32 %v2059, 4294901760
    %3900 = vmatmul.mubr.f32.gmra.mrb[0].mxu0 %v3899
    %v3901 = vpop.f32.mrb[0].mxu0
    %v3902 = vadd.f32 %v3797, %v3901
    %v3903 = vpop.f32.mrb[0].mxu0
    %3904 = vmatprep.mubr.f32.mxu0 0.0
    %v3905 = vand.u32 %v2062, 4294901760
    %3906 = vmatmul.mubr.f32.gmra.mrb[0].mxu0 %v3905
    %v3907 = vpop.f32.mrb[0].mxu0
    %v3908 = vadd.f32 %v3803, %v3907
    %v3909 = vpop.f32.mrb[0].mxu0
    %3910 = vmatprep.mubr.f32.mxu0 0.0
    %v3911 = vand.u32 %v2064, 4294901760
    %3912 = vmatmul.mubr.f32.gmra.mrb[0].mxu0 %v3911
    %v3913 = vpop.f32.mrb[0].mxu0
    %v3914 = vadd.f32 %v3809, %v3913
    %v3915 = vpop.f32.mrb[0].mxu0
    %3916 = vdwg.mxu0
    %v3917 = vld [vmem:[%s5] sm:$0x1]
    %v3919 = vlaneseq
    %v3920 = vshrl.u32 %v3919, 7
    %v3921 = vsub.s32 0, %v3920
    %v3922 = vrot.slane %v3917, %v3921
    %v3924 = vmul.f32 %v3896, %v3922
    %v3925 = vmul.f32 %v3902, %v3922
    %v3926 = vmul.f32 %v3908, %v3922
    %v3927 = vmul.f32 %v3914, %v3922
    %v3928 = vld [vmem:[%s6] sm:$0x1]
    %v3930 = vlaneseq
    %v3931 = vshrl.u32 %v3930, 7
    %v3932 = vsub.s32 0, %v3931
    %v3933 = vrot.slane %v3928, %v3932
    %v3935 = vadd.f32 %v3924, %v3933
    %v3936 = vadd.f32 %v3925, %v3933
    %v3937 = vadd.f32 %v3926, %v3933
    %v3938 = vadd.f32 %v3927, %v3933
    %v3939 = vadd.f32 %v3935, %v68
    %v3940 = vadd.f32 %v3936, %v69
    %v3941 = vadd.f32 %v3937, %v70
    %v3942 = vadd.f32 %v3938, %v71
    %v3943 = vmul.f32 %v3939, 0.5
    %v3944 = vmul.f32 %v3940, 0.5
    %v3945 = vmul.f32 %v3941, 0.5
    %v3946 = vmul.f32 %v3942, 0.5
    %v3947 = vmul.f32 %v3939, 0.70710677
    %v3948 = vmul.f32 %v3940, 0.70710677
    %v3949 = vmul.f32 %v3941, 0.70710677
    %v3950 = vmul.f32 %v3942, 0.70710677
    %v3951 = verf.f32.pop %v3947
    %v3952 = verf.f32.pop %v3948
    %v3953 = verf.f32.pop %v3949
    %v3954 = verf.f32.pop %v3950
    %v3955 = vadd.f32 %v3951, 1.0
    %v3956 = vadd.f32 %v3952, 1.0
    %v3957 = vadd.f32 %v3953, 1.0
    %v3958 = vadd.f32 %v3954, 1.0
    %v3959 = vmul.f32 %v3943, %v3955
    %v3960 = vmul.f32 %v3944, %v3956
    %v3961 = vmul.f32 %v3945, %v3957
    %v3962 = vmul.f32 %v3946, %v3958
    %3963 = vst [vmem:[#allocation8] sm:$0xff] %v3959
    %3964 = vst [vmem:[#allocation8 + $0x8] sm:$0xff] %v3960
    %3965 = vst [vmem:[#allocation8 + $0x10] sm:$0xff] %v3961
    %3966 = vst [vmem:[#allocation8 + $0x18] sm:$0xff] %v3962
    // Predicated region
    $region42: #{tpu_custom_call.1} parent=1 // pred_check
      _
    $region43: #{tpu_custom_call.1} parent=1 // pred_check_branch
      %3968 = sbr.rel (0) target = $region45
    $region44: #{tpu_custom_call.1} parent=1 // pred_region
      %s3970 = ssub.s32 512, 512
      %3971 = vsyncadd [#allocation4], %s3970
      %s3972 = sshll.u32 [#allocation8], 4
      %s3973 = int_to_ptr.vmem [resolvable:$true] %s3972
      %3978 = dma.vmem_to_hbm [thread:$0]  %s3973, 512, %s7, [#allocation4], 128, 128, 8
    $region45: #{tpu_custom_call.1} parent=1 // pred_fallthru
      _
    // Predicated region
    $region46: #{tpu_custom_call.1} parent=1 // pred_check
      _
    $region47: #{tpu_custom_call.1} parent=1 // pred_check_branch
      %3980 = sbr.rel (0) target = $region49
    $region48: #{tpu_custom_call.1} parent=1 // pred_region
      %3981 = dma.done [#allocation4], 512
    $region49: #{tpu_custom_call.1} parent=1 // pred_fallthru
      _
    %3982 = vsyncpa [#allocation3], 1
    %3983 = vsyncpa [#allocation6], 1
    %3984 = vsyncpa [#allocation4], 1

</llo_original>
